<compile_context>
chip_gen: v7x
topology: tpu7x:2x2x1
jax: 0.10.0
libtpu: 0.0.40
codegen_flags: <defaults>
</compile_context>

<pallas_src>
import math
import functools

import jax
import jax.numpy as jnp
from jax import lax
from jax.experimental import pallas as pl
from jax.experimental.pallas import tpu as pltpu


LANE = 128  # lane-dense padded width for the classifier output


# ----------------------------- fused Pallas kernel -----------------------------

def _bert_fused_kernel(emb_ref, mask_ref,
                       emb_ln_g_ref, emb_ln_b_ref,
                       qkv_w_ref, qkv_b_ref, ao_w_ref, ao_b_ref,
                       ln1_g_ref, ln1_b_ref, i_w_ref, i_b_ref,
                       o_w_ref, o_b_ref, ln2_g_ref, ln2_b_ref,
                       pool_w_ref, pool_b_ref, cls_w_ref, cls_b_ref,
                       out_ref,
                       *, S, H, nH, Dh, L):
    bf16 = jnp.bfloat16

    def ln(x, g, b):
        # LayerNorm (eps = 1e-12, BERT); residual already folded into x by caller. f32 stats.
        mu = jnp.mean(x, axis=-1, keepdims=True)
        xc = x - mu
        var = jnp.mean(xc * xc, axis=-1, keepdims=True)
        return xc * lax.rsqrt(var + 1e-12) * g + b

    def matmul(x, w, bias):
        # bf16 MXU operands, f32 accumulation; bias add in f32 (VPU).
        y = jnp.dot(x.astype(bf16), w, preferred_element_type=jnp.float32)
        return y + bias

    def gelu(y):
        # TODO(synk): HF bert-base-uncased uses exact erf-GELU; tanh approximation used here.
        c = math.sqrt(2.0 / math.pi)
        return 0.5 * y * (1.0 + jnp.tanh(c * (y + 0.044715 * y * y * y)))

    # --- one program == one batch element (grid axis 0 is "parallel") ---
    h = ln(emb_ref[0], emb_ln_g_ref[...], emb_ln_b_ref[...])                 # (S, H) f32

    # additive attention mask broadcast ONCE to (nH, S, S), hoisted out of the layer loop
    mask = jnp.broadcast_to(mask_ref[0].reshape(1, 1, S), (nH, S, S))

    # --- encoder layers (static unroll; fine at L=2) ---
    for l in range(L):
        # fused QKV projection; 1/sqrt(Dh) already folded into the Q columns at init
        qkv = matmul(h, qkv_w_ref[l], qkv_b_ref[l])                          # (S, 3H) f32

        # head-major relayout: one 2-D minor transpose, then a free leading-dim split.
        # Columns of qkv are ordered [Q|K|V] x head x Dh, so rows of qkv.T split cleanly.
        qkv_t = qkv.T.reshape(3 * nH, Dh, S)                                  # (3nH, Dh, S)
        q   = jnp.transpose(qkv_t[0 * nH:1 * nH], (0, 2, 1))                  # (nH, S, Dh)
        k_t = qkv_t[1 * nH:2 * nH]                                            # (nH, Dh, S) == K^T
        v   = jnp.transpose(qkv_t[2 * nH:3 * nH], (0, 2, 1))                  # (nH, S, Dh)

        # one batched QK^T, one softmax, one batched PV per layer
        s = jnp.einsum('nqd,ndk->nqk', q.astype(bf16), k_t.astype(bf16),
                       preferred_element_type=jnp.float32) + mask             # (nH, S, S) f32
        s_max = jnp.max(s, axis=-1, keepdims=True)
        p = jnp.exp(s - s_max)
        denom = jnp.sum(p, axis=-1, keepdims=True)
        p = p * pl.reciprocal(denom, approx=True)                             # EUP divide
        ctx = jnp.einsum('nqk,nkd->nqd', p.astype(bf16), v.astype(bf16),
                         preferred_element_type=jnp.float32)                  # (nH, S, Dh)

        # merge heads back to (S, H): batched minor transpose + free reshape + 2-D transpose
        ctx_sh = jnp.transpose(ctx, (0, 2, 1)).reshape(H, S).T                # (S, H)

        # attention output projection + residual + LN
        ao = matmul(ctx_sh, ao_w_ref[l], ao_b_ref[l])
        h = ln(ao + h, ln1_g_ref[l], ln1_b_ref[l])

        # FFN: up-proj + GELU, down-proj, residual + LN
        it = gelu(matmul(h, i_w_ref[l], i_b_ref[l]))                          # (S, I)
        oo = matmul(it, o_w_ref[l], o_b_ref[l])                               # (S, H)
        h = ln(oo + h, ln2_g_ref[l], ln2_b_ref[l])

    # --- pooler (Linear + tanh) + classifier on the CLS row only (row 0 of this sequence) ---
    pooled = jnp.tanh(matmul(h[0:1, :], pool_w_ref[...], pool_b_ref[...]))    # (1, H)
    logits = matmul(pooled, cls_w_ref[...], cls_b_ref[...])                   # (1, LANE)
    # fill the whole (8, 128) output block -> unmasked, lane/sublane-dense store
    out_ref[0] = jnp.broadcast_to(logits, (8, LANE))


# ----------------------------- model config / params -----------------------------

class Cfg:
    vocab = 64
    max_pos = 16
    type_vocab = 2
    hidden = 32
    heads = 4
    layers = 2
    inter = 64
    n_classes = 3


def init_params(key, cfg):
    H, I, L = cfg.hidden, cfg.inter, cfg.layers
    Dh = H // cfg.heads
    bf16 = jnp.bfloat16

    def nrm(k, shape):
        return jax.random.normal(k, shape, jnp.float32) * 0.02

    keys = iter(jax.random.split(key, 32))

    # fused QKV weight, columns ordered [Q | K | V], heads contiguous within each matrix.
    # 1/sqrt(Dh) is folded into the Q third (weight and bias) so the kernel never scales scores.
    scale = 1.0 / math.sqrt(Dh)
    qkv_w = nrm(next(keys), (L, H, 3 * H))
    qkv_w = qkv_w.at[:, :, :H].multiply(scale)
    qkv_b = jnp.zeros((L, 1, 3 * H), jnp.float32)
    qkv_b = qkv_b.at[:, :, :H].multiply(scale)

    p = {
        "word_emb": nrm(next(keys), (cfg.vocab, H)),
        "pos_emb": nrm(next(keys), (cfg.max_pos, H)),
        "type_emb": nrm(next(keys), (cfg.type_vocab, H)),
        "emb_ln_g": jnp.ones((1, H), jnp.float32),
        "emb_ln_b": jnp.zeros((1, H), jnp.float32),
        # per-layer weights stacked on a leading layer axis; matmul weights bf16 (MXU operands),
        # biases / LN params stay f32 (VPU path). PyTorch (out,in) weights stored pre-transposed.
        "qkv_w": qkv_w.astype(bf16),
        "qkv_b": qkv_b,
        "ao_w": nrm(next(keys), (L, H, H)).astype(bf16),
        "ao_b": jnp.zeros((L, 1, H), jnp.float32),
        "ln1_g": jnp.ones((L, 1, H), jnp.float32),
        "ln1_b": jnp.zeros((L, 1, H), jnp.float32),
        "i_w": nrm(next(keys), (L, H, I)).astype(bf16),
        "i_b": jnp.zeros((L, 1, I), jnp.float32),
        "o_w": nrm(next(keys), (L, I, H)).astype(bf16),
        "o_b": jnp.zeros((L, 1, H), jnp.float32),
        "ln2_g": jnp.ones((L, 1, H), jnp.float32),
        "ln2_b": jnp.zeros((L, 1, H), jnp.float32),
        "pool_w": nrm(next(keys), (H, H)).astype(bf16),
        "pool_b": jnp.zeros((1, H), jnp.float32),
    }
    # classifier padded to lane-dense width 128; sliced back to n_classes outside the kernel
    cls_w = nrm(next(keys), (H, cfg.n_classes))
    p["cls_w_pad"] = jnp.zeros((H, LANE), jnp.float32).at[:, :cfg.n_classes].set(cls_w).astype(bf16)
    p["cls_b_pad"] = jnp.zeros((1, LANE), jnp.float32)
    return p


# ----------------------------- forward (glue + single pallas_call) -----------------------------

def custom_bert_forward(params, input_ids, attention_mask, cfg):
    B, S = input_ids.shape
    H, nH, L, I = cfg.hidden, cfg.heads, cfg.layers, cfg.inter
    Dh = H // nH

    # --- embedding gather stays in XLA glue (gather has no clean small-Pallas equivalent);
    #     token_type_ids are assumed all-zero, S <= max_pos ---
    we = jnp.take(params["word_emb"], input_ids, axis=0)                      # (B, S, H)
    pe = params["pos_emb"][:S][None, :, :]
    te = params["type_emb"][0][None, None, :]
    emb = we + pe + te                                                        # (B, S, H) f32

    # BERT-style additive attention mask, per (batch, key) position
    mask_add = ((1.0 - attention_mask.astype(jnp.float32)) * -10000.0).reshape(B, 1, S)

    kernel = functools.partial(_bert_fused_kernel, S=S, H=H, nH=nH, Dh=Dh, L=L)

    const3 = lambda b: (0, 0, 0)
    const2 = lambda b: (0, 0)
    in_specs = [
        pl.BlockSpec((1, S, H), lambda b: (b, 0, 0)),                         # embeddings
        pl.BlockSpec((1, 1, S), lambda b: (b, 0, 0)),                         # additive mask
        pl.BlockSpec((1, H), const2), pl.BlockSpec((1, H), const2),           # emb LN
        pl.BlockSpec((L, H, 3 * H), const3), pl.BlockSpec((L, 1, 3 * H), const3),
        pl.BlockSpec((L, H, H), const3), pl.BlockSpec((L, 1, H), const3),
        pl.BlockSpec((L, 1, H), const3), pl.BlockSpec((L, 1, H), const3),     # LN1
        pl.BlockSpec((L, H, I), const3), pl.BlockSpec((L, 1, I), const3),
        pl.BlockSpec((L, I, H), const3), pl.BlockSpec((L, 1, H), const3),
        pl.BlockSpec((L, 1, H), const3), pl.BlockSpec((L, 1, H), const3),     # LN2
        pl.BlockSpec((H, H), const2), pl.BlockSpec((1, H), const2),           # pooler
        pl.BlockSpec((H, LANE), const2), pl.BlockSpec((1, LANE), const2),     # classifier
    ]

    logits_pad = pl.pallas_call(
        kernel,
        out_shape=jax.ShapeDtypeStruct((B, 8, LANE), jnp.float32),
        grid_spec=pltpu.PrefetchScalarGridSpec(
            num_scalar_prefetch=0,
            grid=(B,),
            in_specs=in_specs,
            out_specs=pl.BlockSpec((1, 8, LANE), lambda b: (b, 0, 0)),
        ),
        compiler_params=pltpu.CompilerParams(dimension_semantics=("parallel",)),
    )(emb, mask_add,
      params["emb_ln_g"], params["emb_ln_b"],
      params["qkv_w"], params["qkv_b"], params["ao_w"], params["ao_b"],
      params["ln1_g"], params["ln1_b"], params["i_w"], params["i_b"],
      params["o_w"], params["o_b"], params["ln2_g"], params["ln2_b"],
      params["pool_w"], params["pool_b"], params["cls_w_pad"], params["cls_b_pad"])

    # CLS logits: row 0 of each program's padded (8, 128) block, first n_classes columns
    return logits_pad[:, 0, :cfg.n_classes]


# ----------------------------- main -----------------------------

if __name__ == "__main__":
    cfg = Cfg()
    key = jax.random.PRNGKey(0)
    pkey, ikey = jax.random.split(key)
    params = init_params(pkey, cfg)

    B, S = 2, 8
    input_ids = jax.random.randint(ikey, (B, S), 0, cfg.vocab, dtype=jnp.int32)
    attention_mask = jnp.ones((B, S), jnp.int32).at[1, 6:].set(0)             # pad last 2 of batch 1

    forward = jax.jit(functools.partial(custom_bert_forward, cfg=cfg))
    logits = forward(params, input_ids, attention_mask)
    logits = jax.block_until_ready(logits)
    assert logits.shape == (B, cfg.n_classes) and logits.dtype == jnp.float32
    print("KERNEL_OK")
</pallas_src>

<mosaic_0001>
module attributes {stable_mosaic.version = 11 : i64} {
  func.func @_bert_fused_kernel(%arg0: i32, %arg1: memref<1x8x32xf32, #tpu.memory_space<vmem>>, %arg2: memref<1x1x8xf32, #tpu.memory_space<vmem>>, %arg3: memref<1x32xf32, #tpu.memory_space<vmem>>, %arg4: memref<1x32xf32, #tpu.memory_space<vmem>>, %arg5: memref<2x32x96xbf16, #tpu.memory_space<vmem>>, %arg6: memref<2x1x96xf32, #tpu.memory_space<vmem>>, %arg7: memref<2x32x32xbf16, #tpu.memory_space<vmem>>, %arg8: memref<2x1x32xf32, #tpu.memory_space<vmem>>, %arg9: memref<2x1x32xf32, #tpu.memory_space<vmem>>, %arg10: memref<2x1x32xf32, #tpu.memory_space<vmem>>, %arg11: memref<2x32x64xbf16, #tpu.memory_space<vmem>>, %arg12: memref<2x1x64xf32, #tpu.memory_space<vmem>>, %arg13: memref<2x64x32xbf16, #tpu.memory_space<vmem>>, %arg14: memref<2x1x32xf32, #tpu.memory_space<vmem>>, %arg15: memref<2x1x32xf32, #tpu.memory_space<vmem>>, %arg16: memref<2x1x32xf32, #tpu.memory_space<vmem>>, %arg17: memref<32x32xbf16, #tpu.memory_space<vmem>>, %arg18: memref<1x32xf32, #tpu.memory_space<vmem>>, %arg19: memref<32x128xbf16, #tpu.memory_space<vmem>>, %arg20: memref<1x128xf32, #tpu.memory_space<vmem>>, %arg21: memref<1x8x128xf32, #tpu.memory_space<vmem>>) attributes {dimension_semantics = [#tpu.dimension_semantics<parallel>], iteration_bounds = array<i64: 2>, scalar_prefetch = 0 : i64, scratch_operands = 0 : i64, tpu.core_type = #tpu.core_type<tc>, window_params = [{transform_indices = @transform_0, window_bounds = array<i64: 1, 8, 32>}, {transform_indices = @transform_1, window_bounds = array<i64: 1, 1, 8>}, {pipeline_mode = #tpu.pipeline_mode<synchronous>, transform_indices = @transform_2, window_bounds = array<i64: 1, 32>}, {pipeline_mode = #tpu.pipeline_mode<synchronous>, transform_indices = @transform_3, window_bounds = array<i64: 1, 32>}, {pipeline_mode = #tpu.pipeline_mode<synchronous>, transform_indices = @transform_4, window_bounds = array<i64: 2, 32, 96>}, {pipeline_mode = #tpu.pipeline_mode<synchronous>, transform_indices = @transform_5, window_bounds = array<i64: 2, 1, 96>}, {pipeline_mode = #tpu.pipeline_mode<synchronous>, transform_indices = @transform_6, window_bounds = array<i64: 2, 32, 32>}, {pipeline_mode = #tpu.pipeline_mode<synchronous>, transform_indices = @transform_7, window_bounds = array<i64: 2, 1, 32>}, {pipeline_mode = #tpu.pipeline_mode<synchronous>, transform_indices = @transform_8, window_bounds = array<i64: 2, 1, 32>}, {pipeline_mode = #tpu.pipeline_mode<synchronous>, transform_indices = @transform_9, window_bounds = array<i64: 2, 1, 32>}, {pipeline_mode = #tpu.pipeline_mode<synchronous>, transform_indices = @transform_10, window_bounds = array<i64: 2, 32, 64>}, {pipeline_mode = #tpu.pipeline_mode<synchronous>, transform_indices = @transform_11, window_bounds = array<i64: 2, 1, 64>}, {pipeline_mode = #tpu.pipeline_mode<synchronous>, transform_indices = @transform_12, window_bounds = array<i64: 2, 64, 32>}, {pipeline_mode = #tpu.pipeline_mode<synchronous>, transform_indices = @transform_13, window_bounds = array<i64: 2, 1, 32>}, {pipeline_mode = #tpu.pipeline_mode<synchronous>, transform_indices = @transform_14, window_bounds = array<i64: 2, 1, 32>}, {pipeline_mode = #tpu.pipeline_mode<synchronous>, transform_indices = @transform_15, window_bounds = array<i64: 2, 1, 32>}, {pipeline_mode = #tpu.pipeline_mode<synchronous>, transform_indices = @transform_16, window_bounds = array<i64: 32, 32>}, {pipeline_mode = #tpu.pipeline_mode<synchronous>, transform_indices = @transform_17, window_bounds = array<i64: 1, 32>}, {pipeline_mode = #tpu.pipeline_mode<synchronous>, transform_indices = @transform_18, window_bounds = array<i64: 32, 128>}, {pipeline_mode = #tpu.pipeline_mode<synchronous>, transform_indices = @transform_19, window_bounds = array<i64: 1, 128>}, {transform_indices = @transform_20, window_bounds = array<i64: 1, 8, 128>}]} {
    %c0 = arith.constant 0 : index
    %c0_0 = arith.constant 0 : index
    %c0_1 = arith.constant 0 : index
    %0 = vector.load %arg1[%c0, %c0_0, %c0_1] : memref<1x8x32xf32, #tpu.memory_space<vmem>>, vector<1x8x32xf32>
    %1 = vector.shape_cast %0 : vector<1x8x32xf32> to vector<8x32xf32>
    %c0_2 = arith.constant 0 : index
    %c0_3 = arith.constant 0 : index
    %2 = vector.load %arg3[%c0_2, %c0_3] : memref<1x32xf32, #tpu.memory_space<vmem>>, vector<1x32xf32>
    %c0_4 = arith.constant 0 : index
    %c0_5 = arith.constant 0 : index
    %3 = vector.load %arg4[%c0_4, %c0_5] : memref<1x32xf32, #tpu.memory_space<vmem>>, vector<1x32xf32>
    %cst = arith.constant dense<0.000000e+00> : vector<8xf32>
    %4 = vector.multi_reduction <add>, %1, %cst [1] : vector<8x32xf32> to vector<8xf32>
    %5 = vector.shape_cast %4 : vector<8xf32> to vector<8x1xf32>
    %cst_6 = arith.constant 3.200000e+01 : f32
    %6 = vector.broadcast %cst_6 : f32 to vector<8x1xf32>
    %7 = arith.divf %5, %6 : vector<8x1xf32>
    %8 = vector.broadcast %7 : vector<8x1xf32> to vector<8x32xf32>
    %9 = arith.subf %1, %8 : vector<8x32xf32>
    %10 = arith.mulf %9, %9 : vector<8x32xf32>
    %cst_7 = arith.constant dense<0.000000e+00> : vector<8xf32>
    %11 = vector.multi_reduction <add>, %10, %cst_7 [1] : vector<8x32xf32> to vector<8xf32>
    %12 = vector.shape_cast %11 : vector<8xf32> to vector<8x1xf32>
    %cst_8 = arith.constant 3.200000e+01 : f32
    %13 = vector.broadcast %cst_8 : f32 to vector<8x1xf32>
    %14 = arith.divf %12, %13 : vector<8x1xf32>
    %cst_9 = arith.constant 9.99999996E-13 : f32
    %15 = vector.broadcast %cst_9 : f32 to vector<8x1xf32>
    %16 = arith.addf %14, %15 : vector<8x1xf32>
    %17 = math.rsqrt %16 : vector<8x1xf32>
    %18 = vector.broadcast %17 : vector<8x1xf32> to vector<8x32xf32>
    %19 = arith.mulf %9, %18 : vector<8x32xf32>
    %20 = vector.broadcast %2 : vector<1x32xf32> to vector<8x32xf32>
    %21 = arith.mulf %19, %20 : vector<8x32xf32>
    %22 = vector.broadcast %3 : vector<1x32xf32> to vector<8x32xf32>
    %23 = arith.addf %21, %22 : vector<8x32xf32>
    %c0_10 = arith.constant 0 : index
    %c0_11 = arith.constant 0 : index
    %c0_12 = arith.constant 0 : index
    %24 = vector.load %arg2[%c0_10, %c0_11, %c0_12] : memref<1x1x8xf32, #tpu.memory_space<vmem>>, vector<1x1x8xf32>
    %25 = vector.shape_cast %24 : vector<1x1x8xf32> to vector<1x8xf32>
    %26 = vector.shape_cast %25 : vector<1x8xf32> to vector<1x1x8xf32>
    %27 = vector.shape_cast %26 : vector<1x1x8xf32> to vector<1x1x8xf32>
    %28 = vector.broadcast %27 : vector<1x1x8xf32> to vector<4x8x8xf32>
    %c0_13 = arith.constant 0 : index
    %c0_14 = arith.constant 0 : index
    %c0_15 = arith.constant 0 : index
    %29 = vector.load %arg5[%c0_13, %c0_14, %c0_15] : memref<2x32x96xbf16, #tpu.memory_space<vmem>>, vector<1x32x96xbf16>
    %30 = vector.shape_cast %29 : vector<1x32x96xbf16> to vector<32x96xbf16>
    %c0_16 = arith.constant 0 : index
    %c0_17 = arith.constant 0 : index
    %c0_18 = arith.constant 0 : index
    %31 = vector.load %arg6[%c0_16, %c0_17, %c0_18] : memref<2x1x96xf32, #tpu.memory_space<vmem>>, vector<1x1x96xf32>
    %32 = vector.shape_cast %31 : vector<1x1x96xf32> to vector<1x96xf32>
    %33 = arith.truncf %23 : vector<8x32xf32> to vector<8x32xbf16>
    %cst_19 = arith.constant dense<0.000000e+00> : vector<8x96xf32>
    %34 = tpu.matmul %33, %30, %cst_19 {dimension_numbers = #tpu.dot_dimension_numbers<[1], [0], [0], [1], [0, 0, 1, 1], [], []>} : vector<8x32xbf16>, vector<32x96xbf16>, vector<8x96xf32> -> vector<8x96xf32>
    %35 = vector.broadcast %32 : vector<1x96xf32> to vector<8x96xf32>
    %36 = arith.addf %34, %35 : vector<8x96xf32>
    %37 = tpu.transpose %36, [1, 0] : vector<8x96xf32> -> vector<96x8xf32>
    %38 = vector.shape_cast %37 : vector<96x8xf32> to vector<12x8x8xf32>
    %39 = vector.extract_strided_slice %38 {offsets = [0, 0, 0], sizes = [4, 8, 8], strides = [1, 1, 1]} : vector<12x8x8xf32> to vector<4x8x8xf32>
    %40 = tpu.transpose %39, [0, 2, 1] : vector<4x8x8xf32> -> vector<4x8x8xf32>
    %41 = vector.extract_strided_slice %38 {offsets = [4, 0, 0], sizes = [4, 8, 8], strides = [1, 1, 1]} : vector<12x8x8xf32> to vector<4x8x8xf32>
    %42 = vector.extract_strided_slice %38 {offsets = [8, 0, 0], sizes = [4, 8, 8], strides = [1, 1, 1]} : vector<12x8x8xf32> to vector<4x8x8xf32>
    %43 = tpu.transpose %42, [0, 2, 1] : vector<4x8x8xf32> -> vector<4x8x8xf32>
    %44 = arith.truncf %40 : vector<4x8x8xf32> to vector<4x8x8xbf16>
    %45 = arith.truncf %41 : vector<4x8x8xf32> to vector<4x8x8xbf16>
    "tpu.trace_start"() <{level = 10 : i32, message = "nqd,ndk->nqk"}> : () -> ()
    %cst_20 = arith.constant dense<0.000000e+00> : vector<4x8x8xf32>
    %46 = tpu.matmul %44, %45, %cst_20 {dimension_numbers = #tpu.dot_dimension_numbers<[2], [1], [1], [2], [0, 0, 0, 1, 1, 2], [0], [0]>} : vector<4x8x8xbf16>, vector<4x8x8xbf16>, vector<4x8x8xf32> -> vector<4x8x8xf32>
    "tpu.trace_stop"() : () -> ()
    %47 = arith.addf %46, %28 : vector<4x8x8xf32>
    %cst_21 = arith.constant dense<0xFF800000> : vector<4x8xf32>
    %48 = vector.multi_reduction <maximumf>, %47, %cst_21 [2] : vector<4x8x8xf32> to vector<4x8xf32>
    %49 = vector.shape_cast %48 : vector<4x8xf32> to vector<4x8x1xf32>
    %50 = vector.broadcast %49 : vector<4x8x1xf32> to vector<4x8x8xf32>
    %51 = arith.subf %47, %50 : vector<4x8x8xf32>
    %52 = math.exp %51 : vector<4x8x8xf32>
    %cst_22 = arith.constant dense<0.000000e+00> : vector<4x8xf32>
    %53 = vector.multi_reduction <add>, %52, %cst_22 [2] : vector<4x8x8xf32> to vector<4x8xf32>
    %54 = vector.shape_cast %53 : vector<4x8xf32> to vector<4x8x1xf32>
    %55 = tpu.reciprocal %54 {approx = true} : vector<4x8x1xf32> -> vector<4x8x1xf32>
    %56 = vector.broadcast %55 : vector<4x8x1xf32> to vector<4x8x8xf32>
    %57 = arith.mulf %52, %56 : vector<4x8x8xf32>
    %58 = arith.truncf %57 : vector<4x8x8xf32> to vector<4x8x8xbf16>
    %59 = arith.truncf %43 : vector<4x8x8xf32> to vector<4x8x8xbf16>
    "tpu.trace_start"() <{level = 10 : i32, message = "nqk,nkd->nqd"}> : () -> ()
    %cst_23 = arith.constant dense<0.000000e+00> : vector<4x8x8xf32>
    %60 = tpu.matmul %58, %59, %cst_23 {dimension_numbers = #tpu.dot_dimension_numbers<[2], [1], [1], [2], [0, 0, 0, 1, 1, 2], [0], [0]>} : vector<4x8x8xbf16>, vector<4x8x8xbf16>, vector<4x8x8xf32> -> vector<4x8x8xf32>
    "tpu.trace_stop"() : () -> ()
    %61 = tpu.transpose %60, [0, 2, 1] : vector<4x8x8xf32> -> vector<4x8x8xf32>
    %62 = vector.shape_cast %61 : vector<4x8x8xf32> to vector<32x8xf32>
    %63 = tpu.transpose %62, [1, 0] : vector<32x8xf32> -> vector<8x32xf32>
    %c0_24 = arith.constant 0 : index
    %c0_25 = arith.constant 0 : index
    %c0_26 = arith.constant 0 : index
    %64 = vector.load %arg7[%c0_24, %c0_25, %c0_26] : memref<2x32x32xbf16, #tpu.memory_space<vmem>>, vector<1x32x32xbf16>
    %65 = vector.shape_cast %64 : vector<1x32x32xbf16> to vector<32x32xbf16>
    %c0_27 = arith.constant 0 : index
    %c0_28 = arith.constant 0 : index
    %c0_29 = arith.constant 0 : index
    %66 = vector.load %arg8[%c0_27, %c0_28, %c0_29] : memref<2x1x32xf32, #tpu.memory_space<vmem>>, vector<1x1x32xf32>
    %67 = vector.shape_cast %66 : vector<1x1x32xf32> to vector<1x32xf32>
    %68 = arith.truncf %63 : vector<8x32xf32> to vector<8x32xbf16>
    %cst_30 = arith.constant dense<0.000000e+00> : vector<8x32xf32>
    %69 = tpu.matmul %68, %65, %cst_30 {dimension_numbers = #tpu.dot_dimension_numbers<[1], [0], [0], [1], [0, 0, 1, 1], [], []>} : vector<8x32xbf16>, vector<32x32xbf16>, vector<8x32xf32> -> vector<8x32xf32>
    %70 = vector.broadcast %67 : vector<1x32xf32> to vector<8x32xf32>
    %71 = arith.addf %69, %70 : vector<8x32xf32>
    %72 = arith.addf %71, %23 : vector<8x32xf32>
    %c0_31 = arith.constant 0 : index
    %c0_32 = arith.constant 0 : index
    %c0_33 = arith.constant 0 : index
    %73 = vector.load %arg9[%c0_31, %c0_32, %c0_33] : memref<2x1x32xf32, #tpu.memory_space<vmem>>, vector<1x1x32xf32>
    %74 = vector.shape_cast %73 : vector<1x1x32xf32> to vector<1x32xf32>
    %c0_34 = arith.constant 0 : index
    %c0_35 = arith.constant 0 : index
    %c0_36 = arith.constant 0 : index
    %75 = vector.load %arg10[%c0_34, %c0_35, %c0_36] : memref<2x1x32xf32, #tpu.memory_space<vmem>>, vector<1x1x32xf32>
    %76 = vector.shape_cast %75 : vector<1x1x32xf32> to vector<1x32xf32>
    %cst_37 = arith.constant dense<0.000000e+00> : vector<8xf32>
    %77 = vector.multi_reduction <add>, %72, %cst_37 [1] : vector<8x32xf32> to vector<8xf32>
    %78 = vector.shape_cast %77 : vector<8xf32> to vector<8x1xf32>
    %cst_38 = arith.constant 3.200000e+01 : f32
    %79 = vector.broadcast %cst_38 : f32 to vector<8x1xf32>
    %80 = arith.divf %78, %79 : vector<8x1xf32>
    %81 = vector.broadcast %80 : vector<8x1xf32> to vector<8x32xf32>
    %82 = arith.subf %72, %81 : vector<8x32xf32>
    %83 = arith.mulf %82, %82 : vector<8x32xf32>
    %cst_39 = arith.constant dense<0.000000e+00> : vector<8xf32>
    %84 = vector.multi_reduction <add>, %83, %cst_39 [1] : vector<8x32xf32> to vector<8xf32>
    %85 = vector.shape_cast %84 : vector<8xf32> to vector<8x1xf32>
    %cst_40 = arith.constant 3.200000e+01 : f32
    %86 = vector.broadcast %cst_40 : f32 to vector<8x1xf32>
    %87 = arith.divf %85, %86 : vector<8x1xf32>
    %cst_41 = arith.constant 9.99999996E-13 : f32
    %88 = vector.broadcast %cst_41 : f32 to vector<8x1xf32>
    %89 = arith.addf %87, %88 : vector<8x1xf32>
    %90 = math.rsqrt %89 : vector<8x1xf32>
    %91 = vector.broadcast %90 : vector<8x1xf32> to vector<8x32xf32>
    %92 = arith.mulf %82, %91 : vector<8x32xf32>
    %93 = vector.broadcast %74 : vector<1x32xf32> to vector<8x32xf32>
    %94 = arith.mulf %92, %93 : vector<8x32xf32>
    %95 = vector.broadcast %76 : vector<1x32xf32> to vector<8x32xf32>
    %96 = arith.addf %94, %95 : vector<8x32xf32>
    %c0_42 = arith.constant 0 : index
    %c0_43 = arith.constant 0 : index
    %c0_44 = arith.constant 0 : index
    %97 = vector.load %arg11[%c0_42, %c0_43, %c0_44] : memref<2x32x64xbf16, #tpu.memory_space<vmem>>, vector<1x32x64xbf16>
    %98 = vector.shape_cast %97 : vector<1x32x64xbf16> to vector<32x64xbf16>
    %c0_45 = arith.constant 0 : index
    %c0_46 = arith.constant 0 : index
    %c0_47 = arith.constant 0 : index
    %99 = vector.load %arg12[%c0_45, %c0_46, %c0_47] : memref<2x1x64xf32, #tpu.memory_space<vmem>>, vector<1x1x64xf32>
    %100 = vector.shape_cast %99 : vector<1x1x64xf32> to vector<1x64xf32>
    %101 = arith.truncf %96 : vector<8x32xf32> to vector<8x32xbf16>
    %cst_48 = arith.constant dense<0.000000e+00> : vector<8x64xf32>
    %102 = tpu.matmul %101, %98, %cst_48 {dimension_numbers = #tpu.dot_dimension_numbers<[1], [0], [0], [1], [0, 0, 1, 1], [], []>} : vector<8x32xbf16>, vector<32x64xbf16>, vector<8x64xf32> -> vector<8x64xf32>
    %103 = vector.broadcast %100 : vector<1x64xf32> to vector<8x64xf32>
    %104 = arith.addf %102, %103 : vector<8x64xf32>
    %cst_49 = arith.constant 5.000000e-01 : f32
    %105 = vector.broadcast %cst_49 : f32 to vector<8x64xf32>
    %106 = arith.mulf %105, %104 : vector<8x64xf32>
    %cst_50 = arith.constant 4.471500e-02 : f32
    %107 = vector.broadcast %cst_50 : f32 to vector<8x64xf32>
    %108 = arith.mulf %107, %104 : vector<8x64xf32>
    %109 = arith.mulf %108, %104 : vector<8x64xf32>
    %110 = arith.mulf %109, %104 : vector<8x64xf32>
    %111 = arith.addf %104, %110 : vector<8x64xf32>
    %cst_51 = arith.constant 0.797884583 : f32
    %112 = vector.broadcast %cst_51 : f32 to vector<8x64xf32>
    %113 = arith.mulf %112, %111 : vector<8x64xf32>
    %114 = math.tanh %113 : vector<8x64xf32>
    %cst_52 = arith.constant 1.000000e+00 : f32
    %115 = vector.broadcast %cst_52 : f32 to vector<8x64xf32>
    %116 = arith.addf %115, %114 : vector<8x64xf32>
    %117 = arith.mulf %106, %116 : vector<8x64xf32>
    %c0_53 = arith.constant 0 : index
    %c0_54 = arith.constant 0 : index
    %c0_55 = arith.constant 0 : index
    %118 = vector.load %arg13[%c0_53, %c0_54, %c0_55] : memref<2x64x32xbf16, #tpu.memory_space<vmem>>, vector<1x64x32xbf16>
    %119 = vector.shape_cast %118 : vector<1x64x32xbf16> to vector<64x32xbf16>
    %c0_56 = arith.constant 0 : index
    %c0_57 = arith.constant 0 : index
    %c0_58 = arith.constant 0 : index
    %120 = vector.load %arg14[%c0_56, %c0_57, %c0_58] : memref<2x1x32xf32, #tpu.memory_space<vmem>>, vector<1x1x32xf32>
    %121 = vector.shape_cast %120 : vector<1x1x32xf32> to vector<1x32xf32>
    %122 = arith.truncf %117 : vector<8x64xf32> to vector<8x64xbf16>
    %cst_59 = arith.constant dense<0.000000e+00> : vector<8x32xf32>
    %123 = tpu.matmul %122, %119, %cst_59 {dimension_numbers = #tpu.dot_dimension_numbers<[1], [0], [0], [1], [0, 0, 1, 1], [], []>} : vector<8x64xbf16>, vector<64x32xbf16>, vector<8x32xf32> -> vector<8x32xf32>
    %124 = vector.broadcast %121 : vector<1x32xf32> to vector<8x32xf32>
    %125 = arith.addf %123, %124 : vector<8x32xf32>
    %126 = arith.addf %125, %96 : vector<8x32xf32>
    %c0_60 = arith.constant 0 : index
    %c0_61 = arith.constant 0 : index
    %c0_62 = arith.constant 0 : index
    %127 = vector.load %arg15[%c0_60, %c0_61, %c0_62] : memref<2x1x32xf32, #tpu.memory_space<vmem>>, vector<1x1x32xf32>
    %128 = vector.shape_cast %127 : vector<1x1x32xf32> to vector<1x32xf32>
    %c0_63 = arith.constant 0 : index
    %c0_64 = arith.constant 0 : index
    %c0_65 = arith.constant 0 : index
    %129 = vector.load %arg16[%c0_63, %c0_64, %c0_65] : memref<2x1x32xf32, #tpu.memory_space<vmem>>, vector<1x1x32xf32>
    %130 = vector.shape_cast %129 : vector<1x1x32xf32> to vector<1x32xf32>
    %cst_66 = arith.constant dense<0.000000e+00> : vector<8xf32>
    %131 = vector.multi_reduction <add>, %126, %cst_66 [1] : vector<8x32xf32> to vector<8xf32>
    %132 = vector.shape_cast %131 : vector<8xf32> to vector<8x1xf32>
    %cst_67 = arith.constant 3.200000e+01 : f32
    %133 = vector.broadcast %cst_67 : f32 to vector<8x1xf32>
    %134 = arith.divf %132, %133 : vector<8x1xf32>
    %135 = vector.broadcast %134 : vector<8x1xf32> to vector<8x32xf32>
    %136 = arith.subf %126, %135 : vector<8x32xf32>
    %137 = arith.mulf %136, %136 : vector<8x32xf32>
    %cst_68 = arith.constant dense<0.000000e+00> : vector<8xf32>
    %138 = vector.multi_reduction <add>, %137, %cst_68 [1] : vector<8x32xf32> to vector<8xf32>
    %139 = vector.shape_cast %138 : vector<8xf32> to vector<8x1xf32>
    %cst_69 = arith.constant 3.200000e+01 : f32
    %140 = vector.broadcast %cst_69 : f32 to vector<8x1xf32>
    %141 = arith.divf %139, %140 : vector<8x1xf32>
    %cst_70 = arith.constant 9.99999996E-13 : f32
    %142 = vector.broadcast %cst_70 : f32 to vector<8x1xf32>
    %143 = arith.addf %141, %142 : vector<8x1xf32>
    %144 = math.rsqrt %143 : vector<8x1xf32>
    %145 = vector.broadcast %144 : vector<8x1xf32> to vector<8x32xf32>
    %146 = arith.mulf %136, %145 : vector<8x32xf32>
    %147 = vector.broadcast %128 : vector<1x32xf32> to vector<8x32xf32>
    %148 = arith.mulf %146, %147 : vector<8x32xf32>
    %149 = vector.broadcast %130 : vector<1x32xf32> to vector<8x32xf32>
    %150 = arith.addf %148, %149 : vector<8x32xf32>
    %c1 = arith.constant 1 : index
    %c0_71 = arith.constant 0 : index
    %c0_72 = arith.constant 0 : index
    %151 = vector.load %arg5[%c1, %c0_71, %c0_72] : memref<2x32x96xbf16, #tpu.memory_space<vmem>>, vector<1x32x96xbf16>
    %152 = vector.shape_cast %151 : vector<1x32x96xbf16> to vector<32x96xbf16>
    %c1_73 = arith.constant 1 : index
    %c0_74 = arith.constant 0 : index
    %c0_75 = arith.constant 0 : index
    %153 = vector.load %arg6[%c1_73, %c0_74, %c0_75] : memref<2x1x96xf32, #tpu.memory_space<vmem>>, vector<1x1x96xf32>
    %154 = vector.shape_cast %153 : vector<1x1x96xf32> to vector<1x96xf32>
    %155 = arith.truncf %150 : vector<8x32xf32> to vector<8x32xbf16>
    %cst_76 = arith.constant dense<0.000000e+00> : vector<8x96xf32>
    %156 = tpu.matmul %155, %152, %cst_76 {dimension_numbers = #tpu.dot_dimension_numbers<[1], [0], [0], [1], [0, 0, 1, 1], [], []>} : vector<8x32xbf16>, vector<32x96xbf16>, vector<8x96xf32> -> vector<8x96xf32>
    %157 = vector.broadcast %154 : vector<1x96xf32> to vector<8x96xf32>
    %158 = arith.addf %156, %157 : vector<8x96xf32>
    %159 = tpu.transpose %158, [1, 0] : vector<8x96xf32> -> vector<96x8xf32>
    %160 = vector.shape_cast %159 : vector<96x8xf32> to vector<12x8x8xf32>
    %161 = vector.extract_strided_slice %160 {offsets = [0, 0, 0], sizes = [4, 8, 8], strides = [1, 1, 1]} : vector<12x8x8xf32> to vector<4x8x8xf32>
    %162 = tpu.transpose %161, [0, 2, 1] : vector<4x8x8xf32> -> vector<4x8x8xf32>
    %163 = vector.extract_strided_slice %160 {offsets = [4, 0, 0], sizes = [4, 8, 8], strides = [1, 1, 1]} : vector<12x8x8xf32> to vector<4x8x8xf32>
    %164 = vector.extract_strided_slice %160 {offsets = [8, 0, 0], sizes = [4, 8, 8], strides = [1, 1, 1]} : vector<12x8x8xf32> to vector<4x8x8xf32>
    %165 = tpu.transpose %164, [0, 2, 1] : vector<4x8x8xf32> -> vector<4x8x8xf32>
    %166 = arith.truncf %162 : vector<4x8x8xf32> to vector<4x8x8xbf16>
    %167 = arith.truncf %163 : vector<4x8x8xf32> to vector<4x8x8xbf16>
    "tpu.trace_start"() <{level = 10 : i32, message = "nqd,ndk->nqk"}> : () -> ()
    %cst_77 = arith.constant dense<0.000000e+00> : vector<4x8x8xf32>
    %168 = tpu.matmul %166, %167, %cst_77 {dimension_numbers = #tpu.dot_dimension_numbers<[2], [1], [1], [2], [0, 0, 0, 1, 1, 2], [0], [0]>} : vector<4x8x8xbf16>, vector<4x8x8xbf16>, vector<4x8x8xf32> -> vector<4x8x8xf32>
    "tpu.trace_stop"() : () -> ()
    %169 = arith.addf %168, %28 : vector<4x8x8xf32>
    %cst_78 = arith.constant dense<0xFF800000> : vector<4x8xf32>
    %170 = vector.multi_reduction <maximumf>, %169, %cst_78 [2] : vector<4x8x8xf32> to vector<4x8xf32>
    %171 = vector.shape_cast %170 : vector<4x8xf32> to vector<4x8x1xf32>
    %172 = vector.broadcast %171 : vector<4x8x1xf32> to vector<4x8x8xf32>
    %173 = arith.subf %169, %172 : vector<4x8x8xf32>
    %174 = math.exp %173 : vector<4x8x8xf32>
    %cst_79 = arith.constant dense<0.000000e+00> : vector<4x8xf32>
    %175 = vector.multi_reduction <add>, %174, %cst_79 [2] : vector<4x8x8xf32> to vector<4x8xf32>
    %176 = vector.shape_cast %175 : vector<4x8xf32> to vector<4x8x1xf32>
    %177 = tpu.reciprocal %176 {approx = true} : vector<4x8x1xf32> -> vector<4x8x1xf32>
    %178 = vector.broadcast %177 : vector<4x8x1xf32> to vector<4x8x8xf32>
    %179 = arith.mulf %174, %178 : vector<4x8x8xf32>
    %180 = arith.truncf %179 : vector<4x8x8xf32> to vector<4x8x8xbf16>
    %181 = arith.truncf %165 : vector<4x8x8xf32> to vector<4x8x8xbf16>
    "tpu.trace_start"() <{level = 10 : i32, message = "nqk,nkd->nqd"}> : () -> ()
    %cst_80 = arith.constant dense<0.000000e+00> : vector<4x8x8xf32>
    %182 = tpu.matmul %180, %181, %cst_80 {dimension_numbers = #tpu.dot_dimension_numbers<[2], [1], [1], [2], [0, 0, 0, 1, 1, 2], [0], [0]>} : vector<4x8x8xbf16>, vector<4x8x8xbf16>, vector<4x8x8xf32> -> vector<4x8x8xf32>
    "tpu.trace_stop"() : () -> ()
    %183 = tpu.transpose %182, [0, 2, 1] : vector<4x8x8xf32> -> vector<4x8x8xf32>
    %184 = vector.shape_cast %183 : vector<4x8x8xf32> to vector<32x8xf32>
    %185 = tpu.transpose %184, [1, 0] : vector<32x8xf32> -> vector<8x32xf32>
    %c1_81 = arith.constant 1 : index
    %c0_82 = arith.constant 0 : index
    %c0_83 = arith.constant 0 : index
    %186 = vector.load %arg7[%c1_81, %c0_82, %c0_83] : memref<2x32x32xbf16, #tpu.memory_space<vmem>>, vector<1x32x32xbf16>
    %187 = vector.shape_cast %186 : vector<1x32x32xbf16> to vector<32x32xbf16>
    %c1_84 = arith.constant 1 : index
    %c0_85 = arith.constant 0 : index
    %c0_86 = arith.constant 0 : index
    %188 = vector.load %arg8[%c1_84, %c0_85, %c0_86] : memref<2x1x32xf32, #tpu.memory_space<vmem>>, vector<1x1x32xf32>
    %189 = vector.shape_cast %188 : vector<1x1x32xf32> to vector<1x32xf32>
    %190 = arith.truncf %185 : vector<8x32xf32> to vector<8x32xbf16>
    %cst_87 = arith.constant dense<0.000000e+00> : vector<8x32xf32>
    %191 = tpu.matmul %190, %187, %cst_87 {dimension_numbers = #tpu.dot_dimension_numbers<[1], [0], [0], [1], [0, 0, 1, 1], [], []>} : vector<8x32xbf16>, vector<32x32xbf16>, vector<8x32xf32> -> vector<8x32xf32>
    %192 = vector.broadcast %189 : vector<1x32xf32> to vector<8x32xf32>
    %193 = arith.addf %191, %192 : vector<8x32xf32>
    %194 = arith.addf %193, %150 : vector<8x32xf32>
    %c1_88 = arith.constant 1 : index
    %c0_89 = arith.constant 0 : index
    %c0_90 = arith.constant 0 : index
    %195 = vector.load %arg9[%c1_88, %c0_89, %c0_90] : memref<2x1x32xf32, #tpu.memory_space<vmem>>, vector<1x1x32xf32>
    %196 = vector.shape_cast %195 : vector<1x1x32xf32> to vector<1x32xf32>
    %c1_91 = arith.constant 1 : index
    %c0_92 = arith.constant 0 : index
    %c0_93 = arith.constant 0 : index
    %197 = vector.load %arg10[%c1_91, %c0_92, %c0_93] : memref<2x1x32xf32, #tpu.memory_space<vmem>>, vector<1x1x32xf32>
    %198 = vector.shape_cast %197 : vector<1x1x32xf32> to vector<1x32xf32>
    %cst_94 = arith.constant dense<0.000000e+00> : vector<8xf32>
    %199 = vector.multi_reduction <add>, %194, %cst_94 [1] : vector<8x32xf32> to vector<8xf32>
    %200 = vector.shape_cast %199 : vector<8xf32> to vector<8x1xf32>
    %cst_95 = arith.constant 3.200000e+01 : f32
    %201 = vector.broadcast %cst_95 : f32 to vector<8x1xf32>
    %202 = arith.divf %200, %201 : vector<8x1xf32>
    %203 = vector.broadcast %202 : vector<8x1xf32> to vector<8x32xf32>
    %204 = arith.subf %194, %203 : vector<8x32xf32>
    %205 = arith.mulf %204, %204 : vector<8x32xf32>
    %cst_96 = arith.constant dense<0.000000e+00> : vector<8xf32>
    %206 = vector.multi_reduction <add>, %205, %cst_96 [1] : vector<8x32xf32> to vector<8xf32>
    %207 = vector.shape_cast %206 : vector<8xf32> to vector<8x1xf32>
    %cst_97 = arith.constant 3.200000e+01 : f32
    %208 = vector.broadcast %cst_97 : f32 to vector<8x1xf32>
    %209 = arith.divf %207, %208 : vector<8x1xf32>
    %cst_98 = arith.constant 9.99999996E-13 : f32
    %210 = vector.broadcast %cst_98 : f32 to vector<8x1xf32>
    %211 = arith.addf %209, %210 : vector<8x1xf32>
    %212 = math.rsqrt %211 : vector<8x1xf32>
    %213 = vector.broadcast %212 : vector<8x1xf32> to vector<8x32xf32>
    %214 = arith.mulf %204, %213 : vector<8x32xf32>
    %215 = vector.broadcast %196 : vector<1x32xf32> to vector<8x32xf32>
    %216 = arith.mulf %214, %215 : vector<8x32xf32>
    %217 = vector.broadcast %198 : vector<1x32xf32> to vector<8x32xf32>
    %218 = arith.addf %216, %217 : vector<8x32xf32>
    %c1_99 = arith.constant 1 : index
    %c0_100 = arith.constant 0 : index
    %c0_101 = arith.constant 0 : index
    %219 = vector.load %arg11[%c1_99, %c0_100, %c0_101] : memref<2x32x64xbf16, #tpu.memory_space<vmem>>, vector<1x32x64xbf16>
    %220 = vector.shape_cast %219 : vector<1x32x64xbf16> to vector<32x64xbf16>
    %c1_102 = arith.constant 1 : index
    %c0_103 = arith.constant 0 : index
    %c0_104 = arith.constant 0 : index
    %221 = vector.load %arg12[%c1_102, %c0_103, %c0_104] : memref<2x1x64xf32, #tpu.memory_space<vmem>>, vector<1x1x64xf32>
    %222 = vector.shape_cast %221 : vector<1x1x64xf32> to vector<1x64xf32>
    %223 = arith.truncf %218 : vector<8x32xf32> to vector<8x32xbf16>
    %cst_105 = arith.constant dense<0.000000e+00> : vector<8x64xf32>
    %224 = tpu.matmul %223, %220, %cst_105 {dimension_numbers = #tpu.dot_dimension_numbers<[1], [0], [0], [1], [0, 0, 1, 1], [], []>} : vector<8x32xbf16>, vector<32x64xbf16>, vector<8x64xf32> -> vector<8x64xf32>
    %225 = vector.broadcast %222 : vector<1x64xf32> to vector<8x64xf32>
    %226 = arith.addf %224, %225 : vector<8x64xf32>
    %cst_106 = arith.constant 5.000000e-01 : f32
    %227 = vector.broadcast %cst_106 : f32 to vector<8x64xf32>
    %228 = arith.mulf %227, %226 : vector<8x64xf32>
    %cst_107 = arith.constant 4.471500e-02 : f32
    %229 = vector.broadcast %cst_107 : f32 to vector<8x64xf32>
    %230 = arith.mulf %229, %226 : vector<8x64xf32>
    %231 = arith.mulf %230, %226 : vector<8x64xf32>
    %232 = arith.mulf %231, %226 : vector<8x64xf32>
    %233 = arith.addf %226, %232 : vector<8x64xf32>
    %cst_108 = arith.constant 0.797884583 : f32
    %234 = vector.broadcast %cst_108 : f32 to vector<8x64xf32>
    %235 = arith.mulf %234, %233 : vector<8x64xf32>
    %236 = math.tanh %235 : vector<8x64xf32>
    %cst_109 = arith.constant 1.000000e+00 : f32
    %237 = vector.broadcast %cst_109 : f32 to vector<8x64xf32>
    %238 = arith.addf %237, %236 : vector<8x64xf32>
    %239 = arith.mulf %228, %238 : vector<8x64xf32>
    %c1_110 = arith.constant 1 : index
    %c0_111 = arith.constant 0 : index
    %c0_112 = arith.constant 0 : index
    %240 = vector.load %arg13[%c1_110, %c0_111, %c0_112] : memref<2x64x32xbf16, #tpu.memory_space<vmem>>, vector<1x64x32xbf16>
    %241 = vector.shape_cast %240 : vector<1x64x32xbf16> to vector<64x32xbf16>
    %c1_113 = arith.constant 1 : index
    %c0_114 = arith.constant 0 : index
    %c0_115 = arith.constant 0 : index
    %242 = vector.load %arg14[%c1_113, %c0_114, %c0_115] : memref<2x1x32xf32, #tpu.memory_space<vmem>>, vector<1x1x32xf32>
    %243 = vector.shape_cast %242 : vector<1x1x32xf32> to vector<1x32xf32>
    %244 = arith.truncf %239 : vector<8x64xf32> to vector<8x64xbf16>
    %cst_116 = arith.constant dense<0.000000e+00> : vector<8x32xf32>
    %245 = tpu.matmul %244, %241, %cst_116 {dimension_numbers = #tpu.dot_dimension_numbers<[1], [0], [0], [1], [0, 0, 1, 1], [], []>} : vector<8x64xbf16>, vector<64x32xbf16>, vector<8x32xf32> -> vector<8x32xf32>
    %246 = vector.broadcast %243 : vector<1x32xf32> to vector<8x32xf32>
    %247 = arith.addf %245, %246 : vector<8x32xf32>
    %248 = arith.addf %247, %218 : vector<8x32xf32>
    %c1_117 = arith.constant 1 : index
    %c0_118 = arith.constant 0 : index
    %c0_119 = arith.constant 0 : index
    %249 = vector.load %arg15[%c1_117, %c0_118, %c0_119] : memref<2x1x32xf32, #tpu.memory_space<vmem>>, vector<1x1x32xf32>
    %250 = vector.shape_cast %249 : vector<1x1x32xf32> to vector<1x32xf32>
    %c1_120 = arith.constant 1 : index
    %c0_121 = arith.constant 0 : index
    %c0_122 = arith.constant 0 : index
    %251 = vector.load %arg16[%c1_120, %c0_121, %c0_122] : memref<2x1x32xf32, #tpu.memory_space<vmem>>, vector<1x1x32xf32>
    %252 = vector.shape_cast %251 : vector<1x1x32xf32> to vector<1x32xf32>
    %cst_123 = arith.constant dense<0.000000e+00> : vector<8xf32>
    %253 = vector.multi_reduction <add>, %248, %cst_123 [1] : vector<8x32xf32> to vector<8xf32>
    %254 = vector.shape_cast %253 : vector<8xf32> to vector<8x1xf32>
    %cst_124 = arith.constant 3.200000e+01 : f32
    %255 = vector.broadcast %cst_124 : f32 to vector<8x1xf32>
    %256 = arith.divf %254, %255 : vector<8x1xf32>
    %257 = vector.broadcast %256 : vector<8x1xf32> to vector<8x32xf32>
    %258 = arith.subf %248, %257 : vector<8x32xf32>
    %259 = arith.mulf %258, %258 : vector<8x32xf32>
    %cst_125 = arith.constant dense<0.000000e+00> : vector<8xf32>
    %260 = vector.multi_reduction <add>, %259, %cst_125 [1] : vector<8x32xf32> to vector<8xf32>
    %261 = vector.shape_cast %260 : vector<8xf32> to vector<8x1xf32>
    %cst_126 = arith.constant 3.200000e+01 : f32
    %262 = vector.broadcast %cst_126 : f32 to vector<8x1xf32>
    %263 = arith.divf %261, %262 : vector<8x1xf32>
    %cst_127 = arith.constant 9.99999996E-13 : f32
    %264 = vector.broadcast %cst_127 : f32 to vector<8x1xf32>
    %265 = arith.addf %263, %264 : vector<8x1xf32>
    %266 = math.rsqrt %265 : vector<8x1xf32>
    %267 = vector.broadcast %266 : vector<8x1xf32> to vector<8x32xf32>
    %268 = arith.mulf %258, %267 : vector<8x32xf32>
    %269 = vector.broadcast %250 : vector<1x32xf32> to vector<8x32xf32>
    %270 = arith.mulf %268, %269 : vector<8x32xf32>
    %271 = vector.broadcast %252 : vector<1x32xf32> to vector<8x32xf32>
    %272 = arith.addf %270, %271 : vector<8x32xf32>
    %273 = vector.extract_strided_slice %272 {offsets = [0, 0], sizes = [1, 32], strides = [1, 1]} : vector<8x32xf32> to vector<1x32xf32>
    %c0_128 = arith.constant 0 : index
    %c0_129 = arith.constant 0 : index
    %274 = vector.load %arg17[%c0_128, %c0_129] : memref<32x32xbf16, #tpu.memory_space<vmem>>, vector<32x32xbf16>
    %c0_130 = arith.constant 0 : index
    %c0_131 = arith.constant 0 : index
    %275 = vector.load %arg18[%c0_130, %c0_131] : memref<1x32xf32, #tpu.memory_space<vmem>>, vector<1x32xf32>
    %276 = arith.truncf %273 : vector<1x32xf32> to vector<1x32xbf16>
    %cst_132 = arith.constant dense<0.000000e+00> : vector<1x32xf32>
    %277 = tpu.matmul %276, %274, %cst_132 {dimension_numbers = #tpu.dot_dimension_numbers<[1], [0], [0], [1], [0, 0, 1, 1], [], []>} : vector<1x32xbf16>, vector<32x32xbf16>, vector<1x32xf32> -> vector<1x32xf32>
    %278 = arith.addf %277, %275 : vector<1x32xf32>
    %279 = math.tanh %278 : vector<1x32xf32>
    %c0_133 = arith.constant 0 : index
    %c0_134 = arith.constant 0 : index
    %280 = vector.load %arg19[%c0_133, %c0_134] : memref<32x128xbf16, #tpu.memory_space<vmem>>, vector<32x128xbf16>
    %c0_135 = arith.constant 0 : index
    %c0_136 = arith.constant 0 : index
    %281 = vector.load %arg20[%c0_135, %c0_136] : memref<1x128xf32, #tpu.memory_space<vmem>>, vector<1x128xf32>
    %282 = arith.truncf %279 : vector<1x32xf32> to vector<1x32xbf16>
    %cst_137 = arith.constant dense<0.000000e+00> : vector<1x128xf32>
    %283 = tpu.matmul %282, %280, %cst_137 {dimension_numbers = #tpu.dot_dimension_numbers<[1], [0], [0], [1], [0, 0, 1, 1], [], []>} : vector<1x32xbf16>, vector<32x128xbf16>, vector<1x128xf32> -> vector<1x128xf32>
    %284 = arith.addf %283, %281 : vector<1x128xf32>
    %285 = vector.shape_cast %284 : vector<1x128xf32> to vector<1x128xf32>
    %286 = vector.broadcast %285 : vector<1x128xf32> to vector<8x128xf32>
    %c0_138 = arith.constant 0 : index
    %c0_139 = arith.constant 0 : index
    %c0_140 = arith.constant 0 : index
    %287 = vector.load %arg21[%c0_138, %c0_139, %c0_140] : memref<1x8x128xf32, #tpu.memory_space<vmem>>, vector<1x8x128xf32>
    %288 = vector.shape_cast %287 : vector<1x8x128xf32> to vector<8x128xf32>
    %289 = vector.shape_cast %286 : vector<8x128xf32> to vector<1x8x128xf32>
    tpu.vector_store %arg21[%c0_138, %c0_139, %c0_140], %289 {strides = array<i32>} : memref<1x8x128xf32, #tpu.memory_space<vmem>>, vector<1x8x128xf32>,
    return
  }
  func.func @transform_0(%arg0: i32) -> (i32, i32, i32) {
    %c0_i32 = arith.constant 0 : i32
    %c0_i32_0 = arith.constant 0 : i32
    %c0_i32_1 = arith.constant 0 : i32
    return %arg0, %c0_i32, %c0_i32_0 : i32, i32, i32
  }
  func.func @transform_1(%arg0: i32) -> (i32, i32, i32) {
    %c0_i32 = arith.constant 0 : i32
    %c0_i32_0 = arith.constant 0 : i32
    %c0_i32_1 = arith.constant 0 : i32
    return %arg0, %c0_i32, %c0_i32_0 : i32, i32, i32
  }
  func.func @transform_2(%arg0: i32) -> (i32, i32) {
    %c0_i32 = arith.constant 0 : i32
    %c0_i32_0 = arith.constant 0 : i32
    %c0_i32_1 = arith.constant 0 : i32
    return %c0_i32, %c0_i32_0 : i32, i32
  }
  func.func @transform_3(%arg0: i32) -> (i32, i32) {
    %c0_i32 = arith.constant 0 : i32
    %c0_i32_0 = arith.constant 0 : i32
    %c0_i32_1 = arith.constant 0 : i32
    return %c0_i32, %c0_i32_0 : i32, i32
  }
  func.func @transform_4(%arg0: i32) -> (i32, i32, i32) {
    %c0_i32 = arith.constant 0 : i32
    %c0_i32_0 = arith.constant 0 : i32
    %c0_i32_1 = arith.constant 0 : i32
    %c0_i32_2 = arith.constant 0 : i32
    return %c0_i32, %c0_i32_0, %c0_i32_1 : i32, i32, i32
  }
  func.func @transform_5(%arg0: i32) -> (i32, i32, i32) {
    %c0_i32 = arith.constant 0 : i32
    %c0_i32_0 = arith.constant 0 : i32
    %c0_i32_1 = arith.constant 0 : i32
    %c0_i32_2 = arith.constant 0 : i32
    return %c0_i32, %c0_i32_0, %c0_i32_1 : i32, i32, i32
  }
  func.func @transform_6(%arg0: i32) -> (i32, i32, i32) {
    %c0_i32 = arith.constant 0 : i32
    %c0_i32_0 = arith.constant 0 : i32
    %c0_i32_1 = arith.constant 0 : i32
    %c0_i32_2 = arith.constant 0 : i32
    return %c0_i32, %c0_i32_0, %c0_i32_1 : i32, i32, i32
  }
  func.func @transform_7(%arg0: i32) -> (i32, i32, i32) {
    %c0_i32 = arith.constant 0 : i32
    %c0_i32_0 = arith.constant 0 : i32
    %c0_i32_1 = arith.constant 0 : i32
    %c0_i32_2 = arith.constant 0 : i32
    return %c0_i32, %c0_i32_0, %c0_i32_1 : i32, i32, i32
  }
  func.func @transform_8(%arg0: i32) -> (i32, i32, i32) {
    %c0_i32 = arith.constant 0 : i32
    %c0_i32_0 = arith.constant 0 : i32
    %c0_i32_1 = arith.constant 0 : i32
    %c0_i32_2 = arith.constant 0 : i32
    return %c0_i32, %c0_i32_0, %c0_i32_1 : i32, i32, i32
  }
  func.func @transform_9(%arg0: i32) -> (i32, i32, i32) {
    %c0_i32 = arith.constant 0 : i32
    %c0_i32_0 = arith.constant 0 : i32
    %c0_i32_1 = arith.constant 0 : i32
    %c0_i32_2 = arith.constant 0 : i32
    return %c0_i32, %c0_i32_0, %c0_i32_1 : i32, i32, i32
  }
  func.func @transform_10(%arg0: i32) -> (i32, i32, i32) {
    %c0_i32 = arith.constant 0 : i32
    %c0_i32_0 = arith.constant 0 : i32
    %c0_i32_1 = arith.constant 0 : i32
    %c0_i32_2 = arith.constant 0 : i32
    return %c0_i32, %c0_i32_0, %c0_i32_1 : i32, i32, i32
  }
  func.func @transform_11(%arg0: i32) -> (i32, i32, i32) {
    %c0_i32 = arith.constant 0 : i32
    %c0_i32_0 = arith.constant 0 : i32
    %c0_i32_1 = arith.constant 0 : i32
    %c0_i32_2 = arith.constant 0 : i32
    return %c0_i32, %c0_i32_0, %c0_i32_1 : i32, i32, i32
  }
  func.func @transform_12(%arg0: i32) -> (i32, i32, i32) {
    %c0_i32 = arith.constant 0 : i32
    %c0_i32_0 = arith.constant 0 : i32
    %c0_i32_1 = arith.constant 0 : i32
    %c0_i32_2 = arith.constant 0 : i32
    return %c0_i32, %c0_i32_0, %c0_i32_1 : i32, i32, i32
  }
  func.func @transform_13(%arg0: i32) -> (i32, i32, i32) {
    %c0_i32 = arith.constant 0 : i32
    %c0_i32_0 = arith.constant 0 : i32
    %c0_i32_1 = arith.constant 0 : i32
    %c0_i32_2 = arith.constant 0 : i32
    return %c0_i32, %c0_i32_0, %c0_i32_1 : i32, i32, i32
  }
  func.func @transform_14(%arg0: i32) -> (i32, i32, i32) {
    %c0_i32 = arith.constant 0 : i32
    %c0_i32_0 = arith.constant 0 : i32
    %c0_i32_1 = arith.constant 0 : i32
    %c0_i32_2 = arith.constant 0 : i32
    return %c0_i32, %c0_i32_0, %c0_i32_1 : i32, i32, i32
  }
  func.func @transform_15(%arg0: i32) -> (i32, i32, i32) {
    %c0_i32 = arith.constant 0 : i32
    %c0_i32_0 = arith.constant 0 : i32
    %c0_i32_1 = arith.constant 0 : i32
    %c0_i32_2 = arith.constant 0 : i32
    return %c0_i32, %c0_i32_0, %c0_i32_1 : i32, i32, i32
  }
  func.func @transform_16(%arg0: i32) -> (i32, i32) {
    %c0_i32 = arith.constant 0 : i32
    %c0_i32_0 = arith.constant 0 : i32
    %c0_i32_1 = arith.constant 0 : i32
    return %c0_i32, %c0_i32_0 : i32, i32
  }
  func.func @transform_17(%arg0: i32) -> (i32, i32) {
    %c0_i32 = arith.constant 0 : i32
    %c0_i32_0 = arith.constant 0 : i32
    %c0_i32_1 = arith.constant 0 : i32
    return %c0_i32, %c0_i32_0 : i32, i32
  }
  func.func @transform_18(%arg0: i32) -> (i32, i32) {
    %c0_i32 = arith.constant 0 : i32
    %c0_i32_0 = arith.constant 0 : i32
    %c0_i32_1 = arith.constant 0 : i32
    return %c0_i32, %c0_i32_0 : i32, i32
  }
  func.func @transform_19(%arg0: i32) -> (i32, i32) {
    %c0_i32 = arith.constant 0 : i32
    %c0_i32_0 = arith.constant 0 : i32
    %c0_i32_1 = arith.constant 0 : i32
    return %c0_i32, %c0_i32_0 : i32, i32
  }
  func.func @transform_20(%arg0: i32) -> (i32, i32, i32) {
    %c0_i32 = arith.constant 0 : i32
    %c0_i32_0 = arith.constant 0 : i32
    %c0_i32_1 = arith.constant 0 : i32
    return %arg0, %c0_i32, %c0_i32_0 : i32, i32, i32
  }
}

</mosaic_0001>

<llo_original>
// kernel: custom_bert_forward.1
$region0: #{custom_bert_forward.1}
  #allocation0 [shape = 'u32[]', space=smem, size = 0x4, offset = 0x4, fixed_abs, tag = 'smem constant byte address 0x4 - core index']
  #allocation1 [shape = 'u32[144,128]{1,0:T(1,128)}', space=vmem, size = 0x12000, scoped, tag = 'internal scratch']
  %s0 = inlined_call_operand.vmem [shape: f32[2,8,32], index: 0, kind: input, shape index: {}]
  %s1 = inlined_call_operand.vmem [shape: f32[2,1,8], index: 1, kind: input, shape index: {}]
  %s2 = inlined_call_operand.vmem [shape: f32[1,32], index: 2, kind: input, shape index: {}]
  %s3 = inlined_call_operand.vmem [shape: f32[1,32], index: 3, kind: input, shape index: {}]
  %s4 = inlined_call_operand.vmem [shape: bf16[2,32,96], index: 4, kind: input, shape index: {}]
  %s5 = inlined_call_operand.vmem [shape: f32[2,1,96], index: 5, kind: input, shape index: {}]
  %s6 = inlined_call_operand.vmem [shape: bf16[2,32,32], index: 6, kind: input, shape index: {}]
  %s7 = inlined_call_operand.vmem [shape: f32[2,1,32], index: 7, kind: input, shape index: {}]
  %s8 = inlined_call_operand.vmem [shape: f32[2,1,32], index: 8, kind: input, shape index: {}]
  %s9 = inlined_call_operand.vmem [shape: f32[2,1,32], index: 9, kind: input, shape index: {}]
  %s10 = inlined_call_operand.vmem [shape: bf16[2,32,64], index: 10, kind: input, shape index: {}]
  %s11 = inlined_call_operand.vmem [shape: f32[2,1,64], index: 11, kind: input, shape index: {}]
  %s12 = inlined_call_operand.vmem [shape: bf16[2,64,32], index: 12, kind: input, shape index: {}]
  %s13 = inlined_call_operand.vmem [shape: f32[2,1,32], index: 13, kind: input, shape index: {}]
  %s14 = inlined_call_operand.vmem [shape: f32[2,1,32], index: 14, kind: input, shape index: {}]
  %s15 = inlined_call_operand.vmem [shape: f32[2,1,32], index: 15, kind: input, shape index: {}]
  %s16 = inlined_call_operand.vmem [shape: bf16[32,32], index: 16, kind: input, shape index: {}]
  %s17 = inlined_call_operand.vmem [shape: f32[1,32], index: 17, kind: input, shape index: {}]
  %s18 = inlined_call_operand.vmem [shape: bf16[32,128], index: 18, kind: input, shape index: {}]
  %s19 = inlined_call_operand.vmem [shape: f32[1,128], index: 19, kind: input, shape index: {}]
  %s20 = inlined_call_operand.vmem [shape: f32[2,8,128], index: 20, kind: output, shape index: {}]
  %s21 = sld [smem:[#allocation0]]
  $region113: #{custom_bert_forward.1} parent=0
    _
  %s23 = ssub.s32 1, %s21
  %s24 = scalar_select 0, %s23, %s21
  loop: start=0, step=1, limit=4
  $region2: #{custom_bert_forward.1} parent=0 // loop_pre_header
    _
  $region3: #{custom_bert_forward.1} parent=0 // loop_header
    %s26 = sphi 0, %s30
    %p27 = scmp.ge.s32.totalorder %s26, 4
    %s36 = sphi 0, %s38
    %s39 = sphi 0, %s36
    %s40 = sphi 0, %s39
    %s56 = sphi 0, %s40
    %s62 = sphi 0, %s64
    %s65 = sphi 0, %s62
    %s66 = sphi 0, %s65
    %s82 = sphi 0, %s66
    %s86 = sphi 0, %s86
    %s88 = sphi 0, %s86
    %s89 = sphi 0, %s88
    %s103 = sphi 0, %s89
    %s107 = sphi 0, %s107
    %s109 = sphi 0, %s107
    %s110 = sphi 0, %s109
    %s124 = sphi 0, %s110
    %s128 = sphi 0, %s128
    %s130 = sphi 0, %s128
    %s131 = sphi 0, %s130
    %s145 = sphi 0, %s131
    %s149 = sphi 0, %s149
    %s151 = sphi 0, %s149
    %s152 = sphi 0, %s151
    %s166 = sphi 0, %s152
    %s170 = sphi 0, %s170
    %s172 = sphi 0, %s170
    %s173 = sphi 0, %s172
    %s187 = sphi 0, %s173
    %s191 = sphi 0, %s191
    %s193 = sphi 0, %s191
    %s194 = sphi 0, %s193
    %s208 = sphi 0, %s194
    %s212 = sphi 0, %s212
    %s214 = sphi 0, %s212
    %s215 = sphi 0, %s214
    %s229 = sphi 0, %s215
    %s233 = sphi 0, %s233
    %s235 = sphi 0, %s233
    %s236 = sphi 0, %s235
    %s250 = sphi 0, %s236
    %s254 = sphi 0, %s254
    %s256 = sphi 0, %s254
    %s257 = sphi 0, %s256
    %s271 = sphi 0, %s257
    %s275 = sphi 0, %s275
    %s277 = sphi 0, %s275
    %s278 = sphi 0, %s277
    %s292 = sphi 0, %s278
    %s296 = sphi 0, %s296
    %s298 = sphi 0, %s296
    %s299 = sphi 0, %s298
    %s313 = sphi 0, %s299
    %s317 = sphi 0, %s317
    %s319 = sphi 0, %s317
    %s320 = sphi 0, %s319
    %s334 = sphi 0, %s320
    %s338 = sphi 0, %s338
    %s340 = sphi 0, %s338
    %s341 = sphi 0, %s340
    %s355 = sphi 0, %s341
    %s359 = sphi 0, %s359
    %s361 = sphi 0, %s359
    %s362 = sphi 0, %s361
    %s376 = sphi 0, %s362
    %s380 = sphi 0, %s380
    %s382 = sphi 0, %s380
    %s383 = sphi 0, %s382
    %s397 = sphi 0, %s383
    %s401 = sphi 0, %s401
    %s403 = sphi 0, %s401
    %s404 = sphi 0, %s403
    %s418 = sphi 0, %s404
    %s422 = sphi 0, %s422
    %s424 = sphi 0, %s422
    %s425 = sphi 0, %s424
    %s439 = sphi 0, %s425
    %s443 = sphi 0, %s443
    %s445 = sphi 0, %s443
    %s446 = sphi 0, %s445
    %s460 = sphi 0, %s446
    %s466 = sphi 0, %s468
    %s469 = sphi 0, %s466
    %s470 = sphi 0, %s469
    %s486 = sphi 0, %s470
  $region4: #{custom_bert_forward.1} parent=0 // loop_header_branch
    %29 = sbr.rel (%p27) target = $region8
  $region5: #{custom_bert_forward.1} parent=0 // loop_body
    %s31 = ssub.s32 %s26, 1
    %s32 = ssub.s32 %s26, 2
    %s33 = sadd.s32 %s26, 1
    %s34 = ssub.s32 %s26, %s33
    %p35 = scmp.eq.s32.totalorder %s34, 0
    %s37 = sadd.s32 %s36, 1
    %s38 = scalar_select %p35, %s36, %s37
    %p41 = pneg %p35
    %p42 = scmp.eq.s32.totalorder %s26, 1
    %p43 = por %p41, %p42
    %p44 = scmp.ne.s32.totalorder %s36, %s39
    %p45 = scmp.eq.s32.totalorder %s26, 0
    %p46 = por %p44, %p45
    %p47 = scmp.ne.s32.totalorder %s36, %s39
    %p48 = scmp.eq.s32.totalorder %s31, 1
    %p49 = por %p47, %p48
    %p50 = scmp.ne.s32.totalorder %s39, %s40
    %p51 = scmp.eq.s32.totalorder %s31, 0
    %p52 = por %p50, %p51
    %p53 = scmp.ne.s32.totalorder %s39, %s40
    %p54 = scmp.eq.s32.totalorder %s32, 1
    %p55 = por %p53, %p54
    %p57 = scmp.ne.s32.totalorder %s40, %s56
    %p58 = scmp.eq.s32.totalorder %s32, 0
    %p59 = por %p57, %p58
    %s60 = ssub.s32 %s26, %s33
    %p61 = scmp.eq.s32.totalorder %s60, 0
    %s63 = sadd.s32 %s62, 1
    %s64 = scalar_select %p61, %s62, %s63
    %p67 = pneg %p61
    %p68 = scmp.eq.s32.totalorder %s26, 1
    %p69 = por %p67, %p68
    %p70 = scmp.ne.s32.totalorder %s62, %s65
    %p71 = scmp.eq.s32.totalorder %s26, 0
    %p72 = por %p70, %p71
    %p73 = scmp.ne.s32.totalorder %s62, %s65
    %p74 = scmp.eq.s32.totalorder %s31, 1
    %p75 = por %p73, %p74
    %p76 = scmp.ne.s32.totalorder %s65, %s66
    %p77 = scmp.eq.s32.totalorder %s31, 0
    %p78 = por %p76, %p77
    %p79 = scmp.ne.s32.totalorder %s65, %s66
    %p80 = scmp.eq.s32.totalorder %s32, 1
    %p81 = por %p79, %p80
    %p83 = scmp.ne.s32.totalorder %s66, %s82
    %p84 = scmp.eq.s32.totalorder %s32, 0
    %p85 = por %p83, %p84
    %s87 = sadd.s32 %s86, 1
    %p90 = scmp.eq.s32.totalorder %s26, 1
    %p91 = scmp.ne.s32.totalorder %s86, %s88
    %p92 = scmp.eq.s32.totalorder %s26, 0
    %p93 = por %p91, %p92
    %p94 = scmp.ne.s32.totalorder %s86, %s88
    %p95 = scmp.eq.s32.totalorder %s31, 1
    %p96 = por %p94, %p95
    %p97 = scmp.ne.s32.totalorder %s88, %s89
    %p98 = scmp.eq.s32.totalorder %s31, 0
    %p99 = por %p97, %p98
    %p100 = scmp.ne.s32.totalorder %s88, %s89
    %p101 = scmp.eq.s32.totalorder %s32, 1
    %p102 = por %p100, %p101
    %p104 = scmp.ne.s32.totalorder %s89, %s103
    %p105 = scmp.eq.s32.totalorder %s32, 0
    %p106 = por %p104, %p105
    %s108 = sadd.s32 %s107, 1
    %p111 = scmp.eq.s32.totalorder %s26, 1
    %p112 = scmp.ne.s32.totalorder %s107, %s109
    %p113 = scmp.eq.s32.totalorder %s26, 0
    %p114 = por %p112, %p113
    %p115 = scmp.ne.s32.totalorder %s107, %s109
    %p116 = scmp.eq.s32.totalorder %s31, 1
    %p117 = por %p115, %p116
    %p118 = scmp.ne.s32.totalorder %s109, %s110
    %p119 = scmp.eq.s32.totalorder %s31, 0
    %p120 = por %p118, %p119
    %p121 = scmp.ne.s32.totalorder %s109, %s110
    %p122 = scmp.eq.s32.totalorder %s32, 1
    %p123 = por %p121, %p122
    %p125 = scmp.ne.s32.totalorder %s110, %s124
    %p126 = scmp.eq.s32.totalorder %s32, 0
    %p127 = por %p125, %p126
    %s129 = sadd.s32 %s128, 1
    %p132 = scmp.eq.s32.totalorder %s26, 1
    %p133 = scmp.ne.s32.totalorder %s128, %s130
    %p134 = scmp.eq.s32.totalorder %s26, 0
    %p135 = por %p133, %p134
    %p136 = scmp.ne.s32.totalorder %s128, %s130
    %p137 = scmp.eq.s32.totalorder %s31, 1
    %p138 = por %p136, %p137
    %p139 = scmp.ne.s32.totalorder %s130, %s131
    %p140 = scmp.eq.s32.totalorder %s31, 0
    %p141 = por %p139, %p140
    %p142 = scmp.ne.s32.totalorder %s130, %s131
    %p143 = scmp.eq.s32.totalorder %s32, 1
    %p144 = por %p142, %p143
    %p146 = scmp.ne.s32.totalorder %s131, %s145
    %p147 = scmp.eq.s32.totalorder %s32, 0
    %p148 = por %p146, %p147
    %s150 = sadd.s32 %s149, 1
    %p153 = scmp.eq.s32.totalorder %s26, 1
    %p154 = scmp.ne.s32.totalorder %s149, %s151
    %p155 = scmp.eq.s32.totalorder %s26, 0
    %p156 = por %p154, %p155
    %p157 = scmp.ne.s32.totalorder %s149, %s151
    %p158 = scmp.eq.s32.totalorder %s31, 1
    %p159 = por %p157, %p158
    %p160 = scmp.ne.s32.totalorder %s151, %s152
    %p161 = scmp.eq.s32.totalorder %s31, 0
    %p162 = por %p160, %p161
    %p163 = scmp.ne.s32.totalorder %s151, %s152
    %p164 = scmp.eq.s32.totalorder %s32, 1
    %p165 = por %p163, %p164
    %p167 = scmp.ne.s32.totalorder %s152, %s166
    %p168 = scmp.eq.s32.totalorder %s32, 0
    %p169 = por %p167, %p168
    %s171 = sadd.s32 %s170, 1
    %p174 = scmp.eq.s32.totalorder %s26, 1
    %p175 = scmp.ne.s32.totalorder %s170, %s172
    %p176 = scmp.eq.s32.totalorder %s26, 0
    %p177 = por %p175, %p176
    %p178 = scmp.ne.s32.totalorder %s170, %s172
    %p179 = scmp.eq.s32.totalorder %s31, 1
    %p180 = por %p178, %p179
    %p181 = scmp.ne.s32.totalorder %s172, %s173
    %p182 = scmp.eq.s32.totalorder %s31, 0
    %p183 = por %p181, %p182
    %p184 = scmp.ne.s32.totalorder %s172, %s173
    %p185 = scmp.eq.s32.totalorder %s32, 1
    %p186 = por %p184, %p185
    %p188 = scmp.ne.s32.totalorder %s173, %s187
    %p189 = scmp.eq.s32.totalorder %s32, 0
    %p190 = por %p188, %p189
    %s192 = sadd.s32 %s191, 1
    %p195 = scmp.eq.s32.totalorder %s26, 1
    %p196 = scmp.ne.s32.totalorder %s191, %s193
    %p197 = scmp.eq.s32.totalorder %s26, 0
    %p198 = por %p196, %p197
    %p199 = scmp.ne.s32.totalorder %s191, %s193
    %p200 = scmp.eq.s32.totalorder %s31, 1
    %p201 = por %p199, %p200
    %p202 = scmp.ne.s32.totalorder %s193, %s194
    %p203 = scmp.eq.s32.totalorder %s31, 0
    %p204 = por %p202, %p203
    %p205 = scmp.ne.s32.totalorder %s193, %s194
    %p206 = scmp.eq.s32.totalorder %s32, 1
    %p207 = por %p205, %p206
    %p209 = scmp.ne.s32.totalorder %s194, %s208
    %p210 = scmp.eq.s32.totalorder %s32, 0
    %p211 = por %p209, %p210
    %s213 = sadd.s32 %s212, 1
    %p216 = scmp.eq.s32.totalorder %s26, 1
    %p217 = scmp.ne.s32.totalorder %s212, %s214
    %p218 = scmp.eq.s32.totalorder %s26, 0
    %p219 = por %p217, %p218
    %p220 = scmp.ne.s32.totalorder %s212, %s214
    %p221 = scmp.eq.s32.totalorder %s31, 1
    %p222 = por %p220, %p221
    %p223 = scmp.ne.s32.totalorder %s214, %s215
    %p224 = scmp.eq.s32.totalorder %s31, 0
    %p225 = por %p223, %p224
    %p226 = scmp.ne.s32.totalorder %s214, %s215
    %p227 = scmp.eq.s32.totalorder %s32, 1
    %p228 = por %p226, %p227
    %p230 = scmp.ne.s32.totalorder %s215, %s229
    %p231 = scmp.eq.s32.totalorder %s32, 0
    %p232 = por %p230, %p231
    %s234 = sadd.s32 %s233, 1
    %p237 = scmp.eq.s32.totalorder %s26, 1
    %p238 = scmp.ne.s32.totalorder %s233, %s235
    %p239 = scmp.eq.s32.totalorder %s26, 0
    %p240 = por %p238, %p239
    %p241 = scmp.ne.s32.totalorder %s233, %s235
    %p242 = scmp.eq.s32.totalorder %s31, 1
    %p243 = por %p241, %p242
    %p244 = scmp.ne.s32.totalorder %s235, %s236
    %p245 = scmp.eq.s32.totalorder %s31, 0
    %p246 = por %p244, %p245
    %p247 = scmp.ne.s32.totalorder %s235, %s236
    %p248 = scmp.eq.s32.totalorder %s32, 1
    %p249 = por %p247, %p248
    %p251 = scmp.ne.s32.totalorder %s236, %s250
    %p252 = scmp.eq.s32.totalorder %s32, 0
    %p253 = por %p251, %p252
    %s255 = sadd.s32 %s254, 1
    %p258 = scmp.eq.s32.totalorder %s26, 1
    %p259 = scmp.ne.s32.totalorder %s254, %s256
    %p260 = scmp.eq.s32.totalorder %s26, 0
    %p261 = por %p259, %p260
    %p262 = scmp.ne.s32.totalorder %s254, %s256
    %p263 = scmp.eq.s32.totalorder %s31, 1
    %p264 = por %p262, %p263
    %p265 = scmp.ne.s32.totalorder %s256, %s257
    %p266 = scmp.eq.s32.totalorder %s31, 0
    %p267 = por %p265, %p266
    %p268 = scmp.ne.s32.totalorder %s256, %s257
    %p269 = scmp.eq.s32.totalorder %s32, 1
    %p270 = por %p268, %p269
    %p272 = scmp.ne.s32.totalorder %s257, %s271
    %p273 = scmp.eq.s32.totalorder %s32, 0
    %p274 = por %p272, %p273
    %s276 = sadd.s32 %s275, 1
    %p279 = scmp.eq.s32.totalorder %s26, 1
    %p280 = scmp.ne.s32.totalorder %s275, %s277
    %p281 = scmp.eq.s32.totalorder %s26, 0
    %p282 = por %p280, %p281
    %p283 = scmp.ne.s32.totalorder %s275, %s277
    %p284 = scmp.eq.s32.totalorder %s31, 1
    %p285 = por %p283, %p284
    %p286 = scmp.ne.s32.totalorder %s277, %s278
    %p287 = scmp.eq.s32.totalorder %s31, 0
    %p288 = por %p286, %p287
    %p289 = scmp.ne.s32.totalorder %s277, %s278
    %p290 = scmp.eq.s32.totalorder %s32, 1
    %p291 = por %p289, %p290
    %p293 = scmp.ne.s32.totalorder %s278, %s292
    %p294 = scmp.eq.s32.totalorder %s32, 0
    %p295 = por %p293, %p294
    %s297 = sadd.s32 %s296, 1
    %p300 = scmp.eq.s32.totalorder %s26, 1
    %p301 = scmp.ne.s32.totalorder %s296, %s298
    %p302 = scmp.eq.s32.totalorder %s26, 0
    %p303 = por %p301, %p302
    %p304 = scmp.ne.s32.totalorder %s296, %s298
    %p305 = scmp.eq.s32.totalorder %s31, 1
    %p306 = por %p304, %p305
    %p307 = scmp.ne.s32.totalorder %s298, %s299
    %p308 = scmp.eq.s32.totalorder %s31, 0
    %p309 = por %p307, %p308
    %p310 = scmp.ne.s32.totalorder %s298, %s299
    %p311 = scmp.eq.s32.totalorder %s32, 1
    %p312 = por %p310, %p311
    %p314 = scmp.ne.s32.totalorder %s299, %s313
    %p315 = scmp.eq.s32.totalorder %s32, 0
    %p316 = por %p314, %p315
    %s318 = sadd.s32 %s317, 1
    %p321 = scmp.eq.s32.totalorder %s26, 1
    %p322 = scmp.ne.s32.totalorder %s317, %s319
    %p323 = scmp.eq.s32.totalorder %s26, 0
    %p324 = por %p322, %p323
    %p325 = scmp.ne.s32.totalorder %s317, %s319
    %p326 = scmp.eq.s32.totalorder %s31, 1
    %p327 = por %p325, %p326
    %p328 = scmp.ne.s32.totalorder %s319, %s320
    %p329 = scmp.eq.s32.totalorder %s31, 0
    %p330 = por %p328, %p329
    %p331 = scmp.ne.s32.totalorder %s319, %s320
    %p332 = scmp.eq.s32.totalorder %s32, 1
    %p333 = por %p331, %p332
    %p335 = scmp.ne.s32.totalorder %s320, %s334
    %p336 = scmp.eq.s32.totalorder %s32, 0
    %p337 = por %p335, %p336
    %s339 = sadd.s32 %s338, 1
    %p342 = scmp.eq.s32.totalorder %s26, 1
    %p343 = scmp.ne.s32.totalorder %s338, %s340
    %p344 = scmp.eq.s32.totalorder %s26, 0
    %p345 = por %p343, %p344
    %p346 = scmp.ne.s32.totalorder %s338, %s340
    %p347 = scmp.eq.s32.totalorder %s31, 1
    %p348 = por %p346, %p347
    %p349 = scmp.ne.s32.totalorder %s340, %s341
    %p350 = scmp.eq.s32.totalorder %s31, 0
    %p351 = por %p349, %p350
    %p352 = scmp.ne.s32.totalorder %s340, %s341
    %p353 = scmp.eq.s32.totalorder %s32, 1
    %p354 = por %p352, %p353
    %p356 = scmp.ne.s32.totalorder %s341, %s355
    %p357 = scmp.eq.s32.totalorder %s32, 0
    %p358 = por %p356, %p357
    %s360 = sadd.s32 %s359, 1
    %p363 = scmp.eq.s32.totalorder %s26, 1
    %p364 = scmp.ne.s32.totalorder %s359, %s361
    %p365 = scmp.eq.s32.totalorder %s26, 0
    %p366 = por %p364, %p365
    %p367 = scmp.ne.s32.totalorder %s359, %s361
    %p368 = scmp.eq.s32.totalorder %s31, 1
    %p369 = por %p367, %p368
    %p370 = scmp.ne.s32.totalorder %s361, %s362
    %p371 = scmp.eq.s32.totalorder %s31, 0
    %p372 = por %p370, %p371
    %p373 = scmp.ne.s32.totalorder %s361, %s362
    %p374 = scmp.eq.s32.totalorder %s32, 1
    %p375 = por %p373, %p374
    %p377 = scmp.ne.s32.totalorder %s362, %s376
    %p378 = scmp.eq.s32.totalorder %s32, 0
    %p379 = por %p377, %p378
    %s381 = sadd.s32 %s380, 1
    %p384 = scmp.eq.s32.totalorder %s26, 1
    %p385 = scmp.ne.s32.totalorder %s380, %s382
    %p386 = scmp.eq.s32.totalorder %s26, 0
    %p387 = por %p385, %p386
    %p388 = scmp.ne.s32.totalorder %s380, %s382
    %p389 = scmp.eq.s32.totalorder %s31, 1
    %p390 = por %p388, %p389
    %p391 = scmp.ne.s32.totalorder %s382, %s383
    %p392 = scmp.eq.s32.totalorder %s31, 0
    %p393 = por %p391, %p392
    %p394 = scmp.ne.s32.totalorder %s382, %s383
    %p395 = scmp.eq.s32.totalorder %s32, 1
    %p396 = por %p394, %p395
    %p398 = scmp.ne.s32.totalorder %s383, %s397
    %p399 = scmp.eq.s32.totalorder %s32, 0
    %p400 = por %p398, %p399
    %s402 = sadd.s32 %s401, 1
    %p405 = scmp.eq.s32.totalorder %s26, 1
    %p406 = scmp.ne.s32.totalorder %s401, %s403
    %p407 = scmp.eq.s32.totalorder %s26, 0
    %p408 = por %p406, %p407
    %p409 = scmp.ne.s32.totalorder %s401, %s403
    %p410 = scmp.eq.s32.totalorder %s31, 1
    %p411 = por %p409, %p410
    %p412 = scmp.ne.s32.totalorder %s403, %s404
    %p413 = scmp.eq.s32.totalorder %s31, 0
    %p414 = por %p412, %p413
    %p415 = scmp.ne.s32.totalorder %s403, %s404
    %p416 = scmp.eq.s32.totalorder %s32, 1
    %p417 = por %p415, %p416
    %p419 = scmp.ne.s32.totalorder %s404, %s418
    %p420 = scmp.eq.s32.totalorder %s32, 0
    %p421 = por %p419, %p420
    %s423 = sadd.s32 %s422, 1
    %p426 = scmp.eq.s32.totalorder %s26, 1
    %p427 = scmp.ne.s32.totalorder %s422, %s424
    %p428 = scmp.eq.s32.totalorder %s26, 0
    %p429 = por %p427, %p428
    %p430 = scmp.ne.s32.totalorder %s422, %s424
    %p431 = scmp.eq.s32.totalorder %s31, 1
    %p432 = por %p430, %p431
    %p433 = scmp.ne.s32.totalorder %s424, %s425
    %p434 = scmp.eq.s32.totalorder %s31, 0
    %p435 = por %p433, %p434
    %p436 = scmp.ne.s32.totalorder %s424, %s425
    %p437 = scmp.eq.s32.totalorder %s32, 1
    %p438 = por %p436, %p437
    %p440 = scmp.ne.s32.totalorder %s425, %s439
    %p441 = scmp.eq.s32.totalorder %s32, 0
    %p442 = por %p440, %p441
    %s444 = sadd.s32 %s443, 1
    %p447 = scmp.eq.s32.totalorder %s26, 1
    %p448 = scmp.ne.s32.totalorder %s443, %s445
    %p449 = scmp.eq.s32.totalorder %s26, 0
    %p450 = por %p448, %p449
    %p451 = scmp.ne.s32.totalorder %s443, %s445
    %p452 = scmp.eq.s32.totalorder %s31, 1
    %p453 = por %p451, %p452
    %p454 = scmp.ne.s32.totalorder %s445, %s446
    %p455 = scmp.eq.s32.totalorder %s31, 0
    %p456 = por %p454, %p455
    %p457 = scmp.ne.s32.totalorder %s445, %s446
    %p458 = scmp.eq.s32.totalorder %s32, 1
    %p459 = por %p457, %p458
    %p461 = scmp.ne.s32.totalorder %s446, %s460
    %p462 = scmp.eq.s32.totalorder %s32, 0
    %p463 = por %p461, %p462
    %s464 = ssub.s32 %s26, %s33
    %p465 = scmp.eq.s32.totalorder %s464, 0
    %s467 = sadd.s32 %s466, 1
    %s468 = scalar_select %p465, %s466, %s467
    %p471 = pneg %p465
    %p472 = scmp.eq.s32.totalorder %s26, 1
    %p473 = por %p471, %p472
    %p474 = scmp.ne.s32.totalorder %s466, %s469
    %p475 = scmp.eq.s32.totalorder %s26, 0
    %p476 = por %p474, %p475
    %p477 = scmp.ne.s32.totalorder %s466, %s469
    %p478 = scmp.eq.s32.totalorder %s31, 1
    %p479 = por %p477, %p478
    %p480 = scmp.ne.s32.totalorder %s469, %s470
    %p481 = scmp.eq.s32.totalorder %s31, 0
    %p482 = por %p480, %p481
    %p483 = scmp.ne.s32.totalorder %s469, %s470
    %p484 = scmp.eq.s32.totalorder %s32, 1
    %p485 = por %p483, %p484
    %p487 = scmp.ne.s32.totalorder %s470, %s486
    %p488 = scmp.eq.s32.totalorder %s32, 0
    %p489 = por %p487, %p488
    %p490 = scmp.le.s32.totalorder 1, %s26
    %p491 = scmp.lt.s32.totalorder %s26, 3
    %p492 = pnand %p490, %p491
    %p493 = pneg %p492
    // Predicated region
    $region9: #{custom_bert_forward.1} parent=5 // pred_check
      _
    $region10: #{custom_bert_forward.1} parent=5 // pred_check_branch
      %495 = sbr.rel (%p492) target = $region12
    $region11: #{custom_bert_forward.1} parent=5 // pred_region
      %s496 = ssub.s32 %s26, 1
      // Predicated region
      $region13: #{custom_bert_forward.1} parent=11 // pred_check
        %p497 = pneg %p99
      $region14: #{custom_bert_forward.1} parent=11 // pred_check_branch
        %499 = sbr.rel (%p497) target = $region16
      $region15: #{custom_bert_forward.1} parent=11 // pred_region
        _
      $region16: #{custom_bert_forward.1} parent=11 // pred_fallthru
        _
      // Predicated region
      $region17: #{custom_bert_forward.1} parent=11 // pred_check
        %p500 = pneg %p120
      $region18: #{custom_bert_forward.1} parent=11 // pred_check_branch
        %502 = sbr.rel (%p500) target = $region20
      $region19: #{custom_bert_forward.1} parent=11 // pred_region
        _
      $region20: #{custom_bert_forward.1} parent=11 // pred_fallthru
        _
      // Predicated region
      $region21: #{custom_bert_forward.1} parent=11 // pred_check
        %p503 = pneg %p141
      $region22: #{custom_bert_forward.1} parent=11 // pred_check_branch
        %505 = sbr.rel (%p503) target = $region24
      $region23: #{custom_bert_forward.1} parent=11 // pred_region
        _
      $region24: #{custom_bert_forward.1} parent=11 // pred_fallthru
        _
      // Predicated region
      $region25: #{custom_bert_forward.1} parent=11 // pred_check
        %p506 = pneg %p162
      $region26: #{custom_bert_forward.1} parent=11 // pred_check_branch
        %508 = sbr.rel (%p506) target = $region28
      $region27: #{custom_bert_forward.1} parent=11 // pred_region
        _
      $region28: #{custom_bert_forward.1} parent=11 // pred_fallthru
        _
      // Predicated region
      $region29: #{custom_bert_forward.1} parent=11 // pred_check
        %p509 = pneg %p183
      $region30: #{custom_bert_forward.1} parent=11 // pred_check_branch
        %511 = sbr.rel (%p509) target = $region32
      $region31: #{custom_bert_forward.1} parent=11 // pred_region
        _
      $region32: #{custom_bert_forward.1} parent=11 // pred_fallthru
        _
      // Predicated region
      $region33: #{custom_bert_forward.1} parent=11 // pred_check
        %p512 = pneg %p204
      $region34: #{custom_bert_forward.1} parent=11 // pred_check_branch
        %514 = sbr.rel (%p512) target = $region36
      $region35: #{custom_bert_forward.1} parent=11 // pred_region
        _
      $region36: #{custom_bert_forward.1} parent=11 // pred_fallthru
        _
      // Predicated region
      $region37: #{custom_bert_forward.1} parent=11 // pred_check
        %p515 = pneg %p225
      $region38: #{custom_bert_forward.1} parent=11 // pred_check_branch
        %517 = sbr.rel (%p515) target = $region40
      $region39: #{custom_bert_forward.1} parent=11 // pred_region
        _
      $region40: #{custom_bert_forward.1} parent=11 // pred_fallthru
        _
      // Predicated region
      $region41: #{custom_bert_forward.1} parent=11 // pred_check
        %p518 = pneg %p246
      $region42: #{custom_bert_forward.1} parent=11 // pred_check_branch
        %520 = sbr.rel (%p518) target = $region44
      $region43: #{custom_bert_forward.1} parent=11 // pred_region
        _
      $region44: #{custom_bert_forward.1} parent=11 // pred_fallthru
        _
      // Predicated region
      $region45: #{custom_bert_forward.1} parent=11 // pred_check
        %p521 = pneg %p267
      $region46: #{custom_bert_forward.1} parent=11 // pred_check_branch
        %523 = sbr.rel (%p521) target = $region48
      $region47: #{custom_bert_forward.1} parent=11 // pred_region
        _
      $region48: #{custom_bert_forward.1} parent=11 // pred_fallthru
        _
      // Predicated region
      $region49: #{custom_bert_forward.1} parent=11 // pred_check
        %p524 = pneg %p288
      $region50: #{custom_bert_forward.1} parent=11 // pred_check_branch
        %526 = sbr.rel (%p524) target = $region52
      $region51: #{custom_bert_forward.1} parent=11 // pred_region
        _
      $region52: #{custom_bert_forward.1} parent=11 // pred_fallthru
        _
      // Predicated region
      $region53: #{custom_bert_forward.1} parent=11 // pred_check
        %p527 = pneg %p309
      $region54: #{custom_bert_forward.1} parent=11 // pred_check_branch
        %529 = sbr.rel (%p527) target = $region56
      $region55: #{custom_bert_forward.1} parent=11 // pred_region
        _
      $region56: #{custom_bert_forward.1} parent=11 // pred_fallthru
        _
      // Predicated region
      $region57: #{custom_bert_forward.1} parent=11 // pred_check
        %p530 = pneg %p330
      $region58: #{custom_bert_forward.1} parent=11 // pred_check_branch
        %532 = sbr.rel (%p530) target = $region60
      $region59: #{custom_bert_forward.1} parent=11 // pred_region
        _
      $region60: #{custom_bert_forward.1} parent=11 // pred_fallthru
        _
      // Predicated region
      $region61: #{custom_bert_forward.1} parent=11 // pred_check
        %p533 = pneg %p351
      $region62: #{custom_bert_forward.1} parent=11 // pred_check_branch
        %535 = sbr.rel (%p533) target = $region64
      $region63: #{custom_bert_forward.1} parent=11 // pred_region
        _
      $region64: #{custom_bert_forward.1} parent=11 // pred_fallthru
        _
      // Predicated region
      $region65: #{custom_bert_forward.1} parent=11 // pred_check
        %p536 = pneg %p372
      $region66: #{custom_bert_forward.1} parent=11 // pred_check_branch
        %538 = sbr.rel (%p536) target = $region68
      $region67: #{custom_bert_forward.1} parent=11 // pred_region
        _
      $region68: #{custom_bert_forward.1} parent=11 // pred_fallthru
        _
      // Predicated region
      $region69: #{custom_bert_forward.1} parent=11 // pred_check
        %p539 = pneg %p393
      $region70: #{custom_bert_forward.1} parent=11 // pred_check_branch
        %541 = sbr.rel (%p539) target = $region72
      $region71: #{custom_bert_forward.1} parent=11 // pred_region
        _
      $region72: #{custom_bert_forward.1} parent=11 // pred_fallthru
        _
      // Predicated region
      $region73: #{custom_bert_forward.1} parent=11 // pred_check
        %p542 = pneg %p414
      $region74: #{custom_bert_forward.1} parent=11 // pred_check_branch
        %544 = sbr.rel (%p542) target = $region76
      $region75: #{custom_bert_forward.1} parent=11 // pred_region
        _
      $region76: #{custom_bert_forward.1} parent=11 // pred_fallthru
        _
      // Predicated region
      $region77: #{custom_bert_forward.1} parent=11 // pred_check
        %p545 = pneg %p435
      $region78: #{custom_bert_forward.1} parent=11 // pred_check_branch
        %547 = sbr.rel (%p545) target = $region80
      $region79: #{custom_bert_forward.1} parent=11 // pred_region
        _
      $region80: #{custom_bert_forward.1} parent=11 // pred_fallthru
        _
      // Predicated region
      $region81: #{custom_bert_forward.1} parent=11 // pred_check
        %p548 = pneg %p456
      $region82: #{custom_bert_forward.1} parent=11 // pred_check_branch
        %550 = sbr.rel (%p548) target = $region84
      $region83: #{custom_bert_forward.1} parent=11 // pred_region
        _
      $region84: #{custom_bert_forward.1} parent=11 // pred_fallthru
        _
    $region12: #{custom_bert_forward.1} parent=5 // pred_fallthru
      _
    %p551 = scmp.lt.s32.totalorder %s26, 2
    // Predicated region
    $region85: #{custom_bert_forward.1} parent=5 // pred_check
      %p552 = pneg %p551
    $region86: #{custom_bert_forward.1} parent=5 // pred_check_branch
      %554 = sbr.rel (%p552) target = $region88
    $region87: #{custom_bert_forward.1} parent=5 // pred_region
      // Predicated region
      $region89: #{custom_bert_forward.1} parent=87 // pred_check
        %p555 = pneg %p46
      $region90: #{custom_bert_forward.1} parent=87 // pred_check_branch
        %557 = sbr.rel (%p555) target = $region92
      $region91: #{custom_bert_forward.1} parent=87 // pred_region
        %p558 = scmp.lt.s32.totalorder %s26, 1
        %s559 = scalar_select %p558, %s26, 1
        %s560 = smul.addr %s559, 8
        %s561 = scalar_lea.vmem %s0, %s560
      $region92: #{custom_bert_forward.1} parent=87 // pred_fallthru
        _
      // Predicated region
      $region93: #{custom_bert_forward.1} parent=87 // pred_check
        %p562 = pneg %p72
      $region94: #{custom_bert_forward.1} parent=87 // pred_check_branch
        %564 = sbr.rel (%p562) target = $region96
      $region95: #{custom_bert_forward.1} parent=87 // pred_region
        %p565 = scmp.lt.s32.totalorder %s26, 1
        %s566 = scalar_select %p565, %s26, 1
        %s567 = scalar_lea.vmem %s1, %s566
      $region96: #{custom_bert_forward.1} parent=87 // pred_fallthru
        _
    $region88: #{custom_bert_forward.1} parent=5 // pred_fallthru
      _
    %p568 = scmp.le.s32.totalorder 1, %s26
    %p569 = scmp.lt.s32.totalorder %s26, 3
    %p570 = pnand %p568, %p569
    %p571 = pneg %p570
    // Predicated region
    $region97: #{custom_bert_forward.1} parent=5 // pred_check
      _
    $region98: #{custom_bert_forward.1} parent=5 // pred_check_branch
      %573 = sbr.rel (%p570) target = $region100
    $region99: #{custom_bert_forward.1} parent=5 // pred_region
      %s574 = ssub.s32 %s26, 1
      %p575 = scmp.lt.s32.totalorder %s31, 1
      %s576 = scalar_select %p575, %s31, 1
      %s577 = smul.addr %s576, 8
      %s578 = scalar_lea.vmem %s0, %s577
      %p579 = pneg %p52
      %p580 = pneg %p49
      %p581 = scmp.lt.s32.totalorder %s31, 1
      %s582 = scalar_select %p581, %s31, 1
      %s583 = scalar_lea.vmem %s1, %s582
      %p584 = pneg %p78
      %p585 = pneg %p75
      %p586 = pneg %p99
      %p587 = pneg %p96
      %p588 = pneg %p120
      %p589 = pneg %p117
      %p590 = pneg %p141
      %p591 = pneg %p138
      %p592 = pneg %p162
      %p593 = pneg %p159
      %p594 = pneg %p183
      %p595 = pneg %p180
      %p596 = pneg %p204
      %p597 = pneg %p201
      %p598 = pneg %p225
      %p599 = pneg %p222
      %p600 = pneg %p246
      %p601 = pneg %p243
      %p602 = pneg %p267
      %p603 = pneg %p264
      %p604 = pneg %p288
      %p605 = pneg %p285
      %p606 = pneg %p309
      %p607 = pneg %p306
      %p608 = pneg %p330
      %p609 = pneg %p327
      %p610 = pneg %p351
      %p611 = pneg %p348
      %p612 = pneg %p372
      %p613 = pneg %p369
      %p614 = pneg %p393
      %p615 = pneg %p390
      %p616 = pneg %p414
      %p617 = pneg %p411
      %p618 = pneg %p435
      %p619 = pneg %p432
      %p620 = pneg %p456
      %p621 = pneg %p453
      %p622 = pneg %p482
      %p623 = pneg %p479
      %p624 = scmp.lt.s32.totalorder %s31, 1
      %s625 = scalar_select %p624, %s31, 1
      %s626 = smul.addr %s625, 8
      %s627 = scalar_lea.vmem %s20, %s626
      %p628 = scmp.lt.s32.totalorder %s31, 1
      %s629 = scalar_select %p628, %s31, 1
      %s630 = smul.addr %s629, 8
      %s631 = scalar_lea.vmem %s0, %s630
      %p632 = scmp.lt.s32.totalorder %s31, 1
      %s633 = scalar_select %p632, %s31, 1
      %s634 = scalar_lea.vmem %s1, %s633
      %p635 = scmp.lt.s32.totalorder %s31, 1
      %s636 = scalar_select %p635, %s31, 1
      %s637 = smul.addr %s636, 8
      %s638 = scalar_lea.vmem %s20, %s637
      %v640 = vld [vmem:[%s631] sm:$0xff]
      %v641 = vld [vmem:[%s2] sm:$0x1]
      %v642 = vld [vmem:[%s3] sm:$0x1]
      %vm643 = vcmask 261120
      %v644 = vsel %vm643, %v640, 0.0
      %645 = vadd.xlane.f32.xlu0 %v644
      %v646 = vpop.xlane.xlu0 %645
      %v647 = vrcp.pop 32.0
      %v648 = vmul.f32 %v646, %v647
      %v649 = vsub.f32 %v640, %v648
      %v650 = vmul.f32 %v649, %v649
      %v651 = vsel %vm643, %v650, 0.0
      %652 = vadd.xlane.f32.xlu0 %v651
      %v653 = vpop.xlane.xlu0 %652
      %v654 = vmul.f32 %v653, %v647
      %v655 = vadd.f32 %v654, 1e-12
      %v656 = vrsqrt.pop %v655
      %v657 = vmul.f32 %v649, %v656
      %v659 = vlaneseq
      %v660 = vshrl.u32 %v659, 7
      %v661 = vsub.s32 0, %v660
      %v662 = vrot.slane %v641, %v661
      %v664 = vmul.f32 %v657, %v662
      %v666 = vlaneseq
      %v667 = vshrl.u32 %v666, 7
      %v668 = vsub.s32 0, %v667
      %v669 = vrot.slane %v642, %v668
      %v671 = vadd.f32 %v664, %v669
      %v672 = vld [vmem:[%s634] sm:$0x1]
      %v674 = vlaneseq
      %v675 = vshrl.u32 %v674, 7
      %v676 = vsub.s32 0, %v675
      %v677 = vrot.slane %v672, %v676
      %v679 = vld [vmem:[%s4] sm:$0xf]
      %v680 = vld [vmem:[%s4 + $0x4] sm:$0xf]
      %v681 = vld [vmem:[%s4 + $0x8] sm:$0xf]
      %v682 = vld [vmem:[%s4 + $0xc] sm:$0xf]
      %v683 = vld [vmem:[%s5] sm:$0x1]
      %v684 = vpack.c.bf16 %v671, %v671
      %v686 = vlaneseq
      %v687 = vshrl.u32 %v686, 7
      %v688 = vsub.s32 0, %v687
      %v689 = vrot.slane %v683, %v688
      %v695 = vunpack.c.l.b16 %v679
      %v696 = vunpack.c.l.b16 %v680
      %v697 = vunpack.c.l.b16 %v681
      %v698 = vunpack.c.l.b16 %v682
      %v699 = vpack.c.b16 %v696, %v695
      %v700 = vpack.c.b16 %v698, %v697
      %v704 = vsel %vm643, %v684, 0
      %706 = vmatprep.subr.bf16.mxu0 0
      %707 = vmatpush1.bf16.msra.mxu0 %v699
      %708 = vmatprep.subr.bf16.mxu0 0
      %709 = vmatpush1.bf16.msra.mxu0 %v700
      %710 = vmatprep.subr.bf16.mxu0 0
      %711 = vmatpush1.bf16.msra.mxu0 0
      %712 = vmatprep.subr.bf16.mxu0 0
      %713 = vmatpush1.bf16.msra.mxu0 0
      %714 = vmatprep.subr.bf16.mxu0 0
      %715 = vmatpush1.bf16.msra.mxu0 0
      %716 = vmatprep.subr.bf16.mxu0 0
      %717 = vmatpush1.bf16.msra.mxu0 0
      %718 = vmatprep.subr.bf16.mxu0 0
      %719 = vmatpush1.bf16.msra.mxu0 0
      %720 = vmatprep.subr.bf16.mxu0 0
      %721 = vmatpush1.bf16.msra.mxu0 0
      %722 = vmatprep.subr.bf16.mxu0 0
      %723 = vmatpush1.bf16.msra.mxu0 0
      %724 = vmatprep.subr.bf16.mxu0 0
      %725 = vmatpush1.bf16.msra.mxu0 0
      %726 = vmatprep.subr.bf16.mxu0 0
      %727 = vmatpush1.bf16.msra.mxu0 0
      %728 = vmatprep.subr.bf16.mxu0 0
      %729 = vmatpush1.bf16.msra.mxu0 0
      %730 = vmatprep.subr.bf16.mxu0 0
      %731 = vmatpush1.bf16.msra.mxu0 0
      %732 = vmatprep.subr.bf16.mxu0 0
      %733 = vmatpush1.bf16.msra.mxu0 0
      %734 = vmatprep.subr.bf16.mxu0 0
      %735 = vmatpush1.bf16.msra.mxu0 0
      %736 = vmatprep.subr.bf16.mxu0 0
      %737 = vmatpush1.bf16.msra.mxu0 0
      %738 = vmatprep.mubr.bf16.mxu0 0
      %739 = vmatmul.mubr.bf16.gmra.mrb[0].mxu0 %v704
      %v740 = vpop.f32.mrb[0].mxu0
      %v741 = vadd.f32 %v689, %v740
      %v742 = vpop.f32.mrb[0].mxu0
      %v743 = vpop.f32.mrb[0].mxu0
      %v744 = vpop.f32.mrb[0].mxu0
      %745 = vdwg.mxu0
      %746 = vxpose.xlu0.b32.start [1/16] %v741, 128
      %747 = vxpose.xlu0.b32.cont [2/16] 0.0, 128
      %748 = vxpose.xlu0.b32.cont [3/16] 0.0, 128
      %749 = vxpose.xlu0.b32.cont [4/16] 0.0, 128
      %750 = vxpose.xlu0.b32.cont [5/16] 0.0, 128
      %751 = vxpose.xlu0.b32.cont [6/16] 0.0, 128
      %752 = vxpose.xlu0.b32.cont [7/16] 0.0, 128
      %753 = vxpose.xlu0.b32.cont [8/16] 0.0, 128
      %754 = vxpose.xlu0.b32.cont [9/16] 0.0, 128
      %755 = vxpose.xlu0.b32.cont [10/16] 0.0, 128
      %756 = vxpose.xlu0.b32.cont [11/16] 0.0, 128
      %757 = vxpose.xlu0.b32.cont [12/16] 0.0, 128
      %758 = vxpose.xlu0.b32.cont [13/16] 0.0, 128
      %759 = vxpose.xlu0.b32.cont [14/16] 0.0, 128
      %760 = vxpose.xlu0.b32.cont [15/16] 0.0, 128
      %761 = vxpose.xlu0.b32.end [16/16] 0.0, 128
      %v762 = vpop.trf.xlu0
      %v763 = vpop.trf.xlu0
      %v764 = vpop.trf.xlu0
      %v765 = vpop.trf.xlu0
      %v766 = vpop.trf.xlu0
      %v767 = vpop.trf.xlu0
      %v768 = vpop.trf.xlu0
      %v769 = vpop.trf.xlu0
      %v770 = vpop.trf.xlu0
      %v771 = vpop.trf.xlu0
      %v772 = vpop.trf.xlu0
      %v773 = vpop.trf.xlu0
      %v774 = vpop.trf.xlu0
      %v775 = vpop.trf.xlu0
      %v776 = vpop.trf.xlu0
      %v777 = vpop.trf.xlu0
      %778 = vxpose.xlu0.b32.start [1/16] %v762, 128
      %779 = vxpose.xlu0.b32.cont [2/16] 0.0, 128
      %780 = vxpose.xlu0.b32.cont [3/16] 0.0, 128
      %781 = vxpose.xlu0.b32.cont [4/16] 0.0, 128
      %782 = vxpose.xlu0.b32.cont [5/16] 0.0, 128
      %783 = vxpose.xlu0.b32.cont [6/16] 0.0, 128
      %784 = vxpose.xlu0.b32.cont [7/16] 0.0, 128
      %785 = vxpose.xlu0.b32.cont [8/16] 0.0, 128
      %786 = vxpose.xlu0.b32.cont [9/16] 0.0, 128
      %787 = vxpose.xlu0.b32.cont [10/16] 0.0, 128
      %788 = vxpose.xlu0.b32.cont [11/16] 0.0, 128
      %789 = vxpose.xlu0.b32.cont [12/16] 0.0, 128
      %790 = vxpose.xlu0.b32.cont [13/16] 0.0, 128
      %791 = vxpose.xlu0.b32.cont [14/16] 0.0, 128
      %792 = vxpose.xlu0.b32.cont [15/16] 0.0, 128
      %793 = vxpose.xlu0.b32.end [16/16] 0.0, 128
      %v794 = vpop.trf.xlu0
      %v795 = vpop.trf.xlu0
      %v796 = vpop.trf.xlu0
      %v797 = vpop.trf.xlu0
      %v798 = vpop.trf.xlu0
      %v799 = vpop.trf.xlu0
      %v800 = vpop.trf.xlu0
      %v801 = vpop.trf.xlu0
      %v802 = vpop.trf.xlu0
      %v803 = vpop.trf.xlu0
      %v804 = vpop.trf.xlu0
      %v805 = vpop.trf.xlu0
      %v806 = vpop.trf.xlu0
      %v807 = vpop.trf.xlu0
      %v808 = vpop.trf.xlu0
      %v809 = vpop.trf.xlu0
      %810 = vxpose.xlu0.b32.start [1/16] %v763, 128
      %811 = vxpose.xlu0.b32.cont [2/16] 0.0, 128
      %812 = vxpose.xlu0.b32.cont [3/16] 0.0, 128
      %813 = vxpose.xlu0.b32.cont [4/16] 0.0, 128
      %814 = vxpose.xlu0.b32.cont [5/16] 0.0, 128
      %815 = vxpose.xlu0.b32.cont [6/16] 0.0, 128
      %816 = vxpose.xlu0.b32.cont [7/16] 0.0, 128
      %817 = vxpose.xlu0.b32.cont [8/16] 0.0, 128
      %818 = vxpose.xlu0.b32.cont [9/16] 0.0, 128
      %819 = vxpose.xlu0.b32.cont [10/16] 0.0, 128
      %820 = vxpose.xlu0.b32.cont [11/16] 0.0, 128
      %821 = vxpose.xlu0.b32.cont [12/16] 0.0, 128
      %822 = vxpose.xlu0.b32.cont [13/16] 0.0, 128
      %823 = vxpose.xlu0.b32.cont [14/16] 0.0, 128
      %824 = vxpose.xlu0.b32.cont [15/16] 0.0, 128
      %825 = vxpose.xlu0.b32.end [16/16] 0.0, 128
      %v826 = vpop.trf.xlu0
      %v827 = vpop.trf.xlu0
      %v828 = vpop.trf.xlu0
      %v829 = vpop.trf.xlu0
      %v830 = vpop.trf.xlu0
      %v831 = vpop.trf.xlu0
      %v832 = vpop.trf.xlu0
      %v833 = vpop.trf.xlu0
      %v834 = vpop.trf.xlu0
      %v835 = vpop.trf.xlu0
      %v836 = vpop.trf.xlu0
      %v837 = vpop.trf.xlu0
      %v838 = vpop.trf.xlu0
      %v839 = vpop.trf.xlu0
      %v840 = vpop.trf.xlu0
      %v841 = vpop.trf.xlu0
      %842 = vxpose.xlu0.b32.start [1/16] %v764, 128
      %843 = vxpose.xlu0.b32.cont [2/16] 0.0, 128
      %844 = vxpose.xlu0.b32.cont [3/16] 0.0, 128
      %845 = vxpose.xlu0.b32.cont [4/16] 0.0, 128
      %846 = vxpose.xlu0.b32.cont [5/16] 0.0, 128
      %847 = vxpose.xlu0.b32.cont [6/16] 0.0, 128
      %848 = vxpose.xlu0.b32.cont [7/16] 0.0, 128
      %849 = vxpose.xlu0.b32.cont [8/16] 0.0, 128
      %850 = vxpose.xlu0.b32.cont [9/16] 0.0, 128
      %851 = vxpose.xlu0.b32.cont [10/16] 0.0, 128
      %852 = vxpose.xlu0.b32.cont [11/16] 0.0, 128
      %853 = vxpose.xlu0.b32.cont [12/16] 0.0, 128
      %854 = vxpose.xlu0.b32.cont [13/16] 0.0, 128
      %855 = vxpose.xlu0.b32.cont [14/16] 0.0, 128
      %856 = vxpose.xlu0.b32.cont [15/16] 0.0, 128
      %857 = vxpose.xlu0.b32.end [16/16] 0.0, 128
      %v858 = vpop.trf.xlu0
      %v859 = vpop.trf.xlu0
      %v860 = vpop.trf.xlu0
      %v861 = vpop.trf.xlu0
      %v862 = vpop.trf.xlu0
      %v863 = vpop.trf.xlu0
      %v864 = vpop.trf.xlu0
      %v865 = vpop.trf.xlu0
      %v866 = vpop.trf.xlu0
      %v867 = vpop.trf.xlu0
      %v868 = vpop.trf.xlu0
      %v869 = vpop.trf.xlu0
      %v870 = vpop.trf.xlu0
      %v871 = vpop.trf.xlu0
      %v872 = vpop.trf.xlu0
      %v873 = vpop.trf.xlu0
      %874 = vxpose.xlu0.b32.start [1/16] %v765, 128
      %875 = vxpose.xlu0.b32.cont [2/16] 0.0, 128
      %876 = vxpose.xlu0.b32.cont [3/16] 0.0, 128
      %877 = vxpose.xlu0.b32.cont [4/16] 0.0, 128
      %878 = vxpose.xlu0.b32.cont [5/16] 0.0, 128
      %879 = vxpose.xlu0.b32.cont [6/16] 0.0, 128
      %880 = vxpose.xlu0.b32.cont [7/16] 0.0, 128
      %881 = vxpose.xlu0.b32.cont [8/16] 0.0, 128
      %882 = vxpose.xlu0.b32.cont [9/16] 0.0, 128
      %883 = vxpose.xlu0.b32.cont [10/16] 0.0, 128
      %884 = vxpose.xlu0.b32.cont [11/16] 0.0, 128
      %885 = vxpose.xlu0.b32.cont [12/16] 0.0, 128
      %886 = vxpose.xlu0.b32.cont [13/16] 0.0, 128
      %887 = vxpose.xlu0.b32.cont [14/16] 0.0, 128
      %888 = vxpose.xlu0.b32.cont [15/16] 0.0, 128
      %889 = vxpose.xlu0.b32.end [16/16] 0.0, 128
      %v890 = vpop.trf.xlu0
      %v891 = vpop.trf.xlu0
      %v892 = vpop.trf.xlu0
      %v893 = vpop.trf.xlu0
      %v894 = vpop.trf.xlu0
      %v895 = vpop.trf.xlu0
      %v896 = vpop.trf.xlu0
      %v897 = vpop.trf.xlu0
      %v898 = vpop.trf.xlu0
      %v899 = vpop.trf.xlu0
      %v900 = vpop.trf.xlu0
      %v901 = vpop.trf.xlu0
      %v902 = vpop.trf.xlu0
      %v903 = vpop.trf.xlu0
      %v904 = vpop.trf.xlu0
      %v905 = vpop.trf.xlu0
      %906 = vxpose.xlu0.b32.start [1/16] %v770, 128
      %907 = vxpose.xlu0.b32.cont [2/16] 0.0, 128
      %908 = vxpose.xlu0.b32.cont [3/16] 0.0, 128
      %909 = vxpose.xlu0.b32.cont [4/16] 0.0, 128
      %910 = vxpose.xlu0.b32.cont [5/16] 0.0, 128
      %911 = vxpose.xlu0.b32.cont [6/16] 0.0, 128
      %912 = vxpose.xlu0.b32.cont [7/16] 0.0, 128
      %913 = vxpose.xlu0.b32.cont [8/16] 0.0, 128
      %914 = vxpose.xlu0.b32.cont [9/16] 0.0, 128
      %915 = vxpose.xlu0.b32.cont [10/16] 0.0, 128
      %916 = vxpose.xlu0.b32.cont [11/16] 0.0, 128
      %917 = vxpose.xlu0.b32.cont [12/16] 0.0, 128
      %918 = vxpose.xlu0.b32.cont [13/16] 0.0, 128
      %919 = vxpose.xlu0.b32.cont [14/16] 0.0, 128
      %920 = vxpose.xlu0.b32.cont [15/16] 0.0, 128
      %921 = vxpose.xlu0.b32.end [16/16] 0.0, 128
      %v922 = vpop.trf.xlu0
      %v923 = vpop.trf.xlu0
      %v924 = vpop.trf.xlu0
      %v925 = vpop.trf.xlu0
      %v926 = vpop.trf.xlu0
      %v927 = vpop.trf.xlu0
      %v928 = vpop.trf.xlu0
      %v929 = vpop.trf.xlu0
      %v930 = vpop.trf.xlu0
      %v931 = vpop.trf.xlu0
      %v932 = vpop.trf.xlu0
      %v933 = vpop.trf.xlu0
      %v934 = vpop.trf.xlu0
      %v935 = vpop.trf.xlu0
      %v936 = vpop.trf.xlu0
      %v937 = vpop.trf.xlu0
      %938 = vxpose.xlu0.b32.start [1/16] %v771, 128
      %939 = vxpose.xlu0.b32.cont [2/16] 0.0, 128
      %940 = vxpose.xlu0.b32.cont [3/16] 0.0, 128
      %941 = vxpose.xlu0.b32.cont [4/16] 0.0, 128
      %942 = vxpose.xlu0.b32.cont [5/16] 0.0, 128
      %943 = vxpose.xlu0.b32.cont [6/16] 0.0, 128
      %944 = vxpose.xlu0.b32.cont [7/16] 0.0, 128
      %945 = vxpose.xlu0.b32.cont [8/16] 0.0, 128
      %946 = vxpose.xlu0.b32.cont [9/16] 0.0, 128
      %947 = vxpose.xlu0.b32.cont [10/16] 0.0, 128
      %948 = vxpose.xlu0.b32.cont [11/16] 0.0, 128
      %949 = vxpose.xlu0.b32.cont [12/16] 0.0, 128
      %950 = vxpose.xlu0.b32.cont [13/16] 0.0, 128
      %951 = vxpose.xlu0.b32.cont [14/16] 0.0, 128
      %952 = vxpose.xlu0.b32.cont [15/16] 0.0, 128
      %953 = vxpose.xlu0.b32.end [16/16] 0.0, 128
      %v954 = vpop.trf.xlu0
      %v955 = vpop.trf.xlu0
      %v956 = vpop.trf.xlu0
      %v957 = vpop.trf.xlu0
      %v958 = vpop.trf.xlu0
      %v959 = vpop.trf.xlu0
      %v960 = vpop.trf.xlu0
      %v961 = vpop.trf.xlu0
      %v962 = vpop.trf.xlu0
      %v963 = vpop.trf.xlu0
      %v964 = vpop.trf.xlu0
      %v965 = vpop.trf.xlu0
      %v966 = vpop.trf.xlu0
      %v967 = vpop.trf.xlu0
      %v968 = vpop.trf.xlu0
      %v969 = vpop.trf.xlu0
      %970 = vxpose.xlu0.b32.start [1/16] %v772, 128
      %971 = vxpose.xlu0.b32.cont [2/16] 0.0, 128
      %972 = vxpose.xlu0.b32.cont [3/16] 0.0, 128
      %973 = vxpose.xlu0.b32.cont [4/16] 0.0, 128
      %974 = vxpose.xlu0.b32.cont [5/16] 0.0, 128
      %975 = vxpose.xlu0.b32.cont [6/16] 0.0, 128
      %976 = vxpose.xlu0.b32.cont [7/16] 0.0, 128
      %977 = vxpose.xlu0.b32.cont [8/16] 0.0, 128
      %978 = vxpose.xlu0.b32.cont [9/16] 0.0, 128
      %979 = vxpose.xlu0.b32.cont [10/16] 0.0, 128
      %980 = vxpose.xlu0.b32.cont [11/16] 0.0, 128
      %981 = vxpose.xlu0.b32.cont [12/16] 0.0, 128
      %982 = vxpose.xlu0.b32.cont [13/16] 0.0, 128
      %983 = vxpose.xlu0.b32.cont [14/16] 0.0, 128
      %984 = vxpose.xlu0.b32.cont [15/16] 0.0, 128
      %985 = vxpose.xlu0.b32.end [16/16] 0.0, 128
      %v986 = vpop.trf.xlu0
      %v987 = vpop.trf.xlu0
      %v988 = vpop.trf.xlu0
      %v989 = vpop.trf.xlu0
      %v990 = vpop.trf.xlu0
      %v991 = vpop.trf.xlu0
      %v992 = vpop.trf.xlu0
      %v993 = vpop.trf.xlu0
      %v994 = vpop.trf.xlu0
      %v995 = vpop.trf.xlu0
      %v996 = vpop.trf.xlu0
      %v997 = vpop.trf.xlu0
      %v998 = vpop.trf.xlu0
      %v999 = vpop.trf.xlu0
      %v1000 = vpop.trf.xlu0
      %v1001 = vpop.trf.xlu0
      %1002 = vxpose.xlu0.b32.start [1/16] %v773, 128
      %1003 = vxpose.xlu0.b32.cont [2/16] 0.0, 128
      %1004 = vxpose.xlu0.b32.cont [3/16] 0.0, 128
      %1005 = vxpose.xlu0.b32.cont [4/16] 0.0, 128
      %1006 = vxpose.xlu0.b32.cont [5/16] 0.0, 128
      %1007 = vxpose.xlu0.b32.cont [6/16] 0.0, 128
      %1008 = vxpose.xlu0.b32.cont [7/16] 0.0, 128
      %1009 = vxpose.xlu0.b32.cont [8/16] 0.0, 128
      %1010 = vxpose.xlu0.b32.cont [9/16] 0.0, 128
      %1011 = vxpose.xlu0.b32.cont [10/16] 0.0, 128
      %1012 = vxpose.xlu0.b32.cont [11/16] 0.0, 128
      %1013 = vxpose.xlu0.b32.cont [12/16] 0.0, 128
      %1014 = vxpose.xlu0.b32.cont [13/16] 0.0, 128
      %1015 = vxpose.xlu0.b32.cont [14/16] 0.0, 128
      %1016 = vxpose.xlu0.b32.cont [15/16] 0.0, 128
      %1017 = vxpose.xlu0.b32.end [16/16] 0.0, 128
      %v1018 = vpop.trf.xlu0
      %v1019 = vpop.trf.xlu0
      %v1020 = vpop.trf.xlu0
      %v1021 = vpop.trf.xlu0
      %v1022 = vpop.trf.xlu0
      %v1023 = vpop.trf.xlu0
      %v1024 = vpop.trf.xlu0
      %v1025 = vpop.trf.xlu0
      %v1026 = vpop.trf.xlu0
      %v1027 = vpop.trf.xlu0
      %v1028 = vpop.trf.xlu0
      %v1029 = vpop.trf.xlu0
      %v1030 = vpop.trf.xlu0
      %v1031 = vpop.trf.xlu0
      %v1032 = vpop.trf.xlu0
      %v1033 = vpop.trf.xlu0
      %v1034 = vpack.c.bf16 %v794, %v794
      %v1035 = vpack.c.bf16 %v826, %v826
      %v1036 = vpack.c.bf16 %v858, %v858
      %v1037 = vpack.c.bf16 %v890, %v890
      %v1038 = vpack.c.bf16 %v766, %v766
      %v1039 = vpack.c.bf16 %v767, %v767
      %v1040 = vpack.c.bf16 %v768, %v768
      %v1041 = vpack.c.bf16 %v769, %v769
      %vm1042 = vcmask 64512
      %v1044 = vsel %vm1042, %v1034, 0
      %vm1046 = vcmask 1043456
      %v1048 = vsel %vm1046, %v1038, 0
      %1050 = vmatprep.subr.bf16.mxu0 0
      %1051 = vmatpush1.bf16.msra.mxu0 %v1048
      %1052 = vmatprep.subr.bf16.mxu0 0
      %1053 = vmatpush1.bf16.msra.mxu0 0
      %1054 = vmatprep.subr.bf16.mxu0 0
      %1055 = vmatpush1.bf16.msra.mxu0 0
      %1056 = vmatprep.subr.bf16.mxu0 0
      %1057 = vmatpush1.bf16.msra.mxu0 0
      %1058 = vmatprep.subr.bf16.mxu0 0
      %1059 = vmatpush1.bf16.msra.mxu0 0
      %1060 = vmatprep.subr.bf16.mxu0 0
      %1061 = vmatpush1.bf16.msra.mxu0 0
      %1062 = vmatprep.subr.bf16.mxu0 0
      %1063 = vmatpush1.bf16.msra.mxu0 0
      %1064 = vmatprep.subr.bf16.mxu0 0
      %1065 = vmatpush1.bf16.msra.mxu0 0
      %1066 = vmatprep.subr.bf16.mxu0 0
      %1067 = vmatpush1.bf16.msra.mxu0 0
      %1068 = vmatprep.subr.bf16.mxu0 0
      %1069 = vmatpush1.bf16.msra.mxu0 0
      %1070 = vmatprep.subr.bf16.mxu0 0
      %1071 = vmatpush1.bf16.msra.mxu0 0
      %1072 = vmatprep.subr.bf16.mxu0 0
      %1073 = vmatpush1.bf16.msra.mxu0 0
      %1074 = vmatprep.subr.bf16.mxu0 0
      %1075 = vmatpush1.bf16.msra.mxu0 0
      %1076 = vmatprep.subr.bf16.mxu0 0
      %1077 = vmatpush1.bf16.msra.mxu0 0
      %1078 = vmatprep.subr.bf16.mxu0 0
      %1079 = vmatpush1.bf16.msra.mxu0 0
      %1080 = vmatprep.subr.bf16.mxu0 0
      %1081 = vmatpush1.bf16.msra.mxu0 0
      %1082 = vmatprep.mubr.bf16.mxu0 0
      %1083 = vmatmul.mubr.bf16.gmra.mrb[0].mxu0 %v1044
      %v1084 = vpop.f32.mrb[0].mxu0
      %v1085 = vadd.f32 %v677, %v1084
      %v1086 = vpop.f32.mrb[0].mxu0
      %v1087 = vpop.f32.mrb[0].mxu0
      %v1088 = vpop.f32.mrb[0].mxu0
      %1089 = vdwg.mxu0
      %v1091 = vsel %vm1042, %v1035, 0
      %v1094 = vsel %vm1046, %v1039, 0
      %1096 = vmatprep.subr.bf16.mxu0 0
      %1097 = vmatpush1.bf16.msra.mxu0 %v1094
      %1098 = vmatprep.subr.bf16.mxu0 0
      %1099 = vmatpush1.bf16.msra.mxu0 0
      %1100 = vmatprep.subr.bf16.mxu0 0
      %1101 = vmatpush1.bf16.msra.mxu0 0
      %1102 = vmatprep.subr.bf16.mxu0 0
      %1103 = vmatpush1.bf16.msra.mxu0 0
      %1104 = vmatprep.subr.bf16.mxu0 0
      %1105 = vmatpush1.bf16.msra.mxu0 0
      %1106 = vmatprep.subr.bf16.mxu0 0
      %1107 = vmatpush1.bf16.msra.mxu0 0
      %1108 = vmatprep.subr.bf16.mxu0 0
      %1109 = vmatpush1.bf16.msra.mxu0 0
      %1110 = vmatprep.subr.bf16.mxu0 0
      %1111 = vmatpush1.bf16.msra.mxu0 0
      %1112 = vmatprep.subr.bf16.mxu0 0
      %1113 = vmatpush1.bf16.msra.mxu0 0
      %1114 = vmatprep.subr.bf16.mxu0 0
      %1115 = vmatpush1.bf16.msra.mxu0 0
      %1116 = vmatprep.subr.bf16.mxu0 0
      %1117 = vmatpush1.bf16.msra.mxu0 0
      %1118 = vmatprep.subr.bf16.mxu0 0
      %1119 = vmatpush1.bf16.msra.mxu0 0
      %1120 = vmatprep.subr.bf16.mxu0 0
      %1121 = vmatpush1.bf16.msra.mxu0 0
      %1122 = vmatprep.subr.bf16.mxu0 0
      %1123 = vmatpush1.bf16.msra.mxu0 0
      %1124 = vmatprep.subr.bf16.mxu0 0
      %1125 = vmatpush1.bf16.msra.mxu0 0
      %1126 = vmatprep.subr.bf16.mxu0 0
      %1127 = vmatpush1.bf16.msra.mxu0 0
      %1128 = vmatprep.mubr.bf16.mxu0 0
      %1129 = vmatmul.mubr.bf16.gmra.mrb[0].mxu0 %v1091
      %v1130 = vpop.f32.mrb[0].mxu0
      %v1131 = vadd.f32 %v677, %v1130
      %v1132 = vpop.f32.mrb[0].mxu0
      %v1133 = vpop.f32.mrb[0].mxu0
      %v1134 = vpop.f32.mrb[0].mxu0
      %1135 = vdwg.mxu0
      %v1137 = vsel %vm1042, %v1036, 0
      %v1140 = vsel %vm1046, %v1040, 0
      %1142 = vmatprep.subr.bf16.mxu0 0
      %1143 = vmatpush1.bf16.msra.mxu0 %v1140
      %1144 = vmatprep.subr.bf16.mxu0 0
      %1145 = vmatpush1.bf16.msra.mxu0 0
      %1146 = vmatprep.subr.bf16.mxu0 0
      %1147 = vmatpush1.bf16.msra.mxu0 0
      %1148 = vmatprep.subr.bf16.mxu0 0
      %1149 = vmatpush1.bf16.msra.mxu0 0
      %1150 = vmatprep.subr.bf16.mxu0 0
      %1151 = vmatpush1.bf16.msra.mxu0 0
      %1152 = vmatprep.subr.bf16.mxu0 0
      %1153 = vmatpush1.bf16.msra.mxu0 0
      %1154 = vmatprep.subr.bf16.mxu0 0
      %1155 = vmatpush1.bf16.msra.mxu0 0
      %1156 = vmatprep.subr.bf16.mxu0 0
      %1157 = vmatpush1.bf16.msra.mxu0 0
      %1158 = vmatprep.subr.bf16.mxu0 0
      %1159 = vmatpush1.bf16.msra.mxu0 0
      %1160 = vmatprep.subr.bf16.mxu0 0
      %1161 = vmatpush1.bf16.msra.mxu0 0
      %1162 = vmatprep.subr.bf16.mxu0 0
      %1163 = vmatpush1.bf16.msra.mxu0 0
      %1164 = vmatprep.subr.bf16.mxu0 0
      %1165 = vmatpush1.bf16.msra.mxu0 0
      %1166 = vmatprep.subr.bf16.mxu0 0
      %1167 = vmatpush1.bf16.msra.mxu0 0
      %1168 = vmatprep.subr.bf16.mxu0 0
      %1169 = vmatpush1.bf16.msra.mxu0 0
      %1170 = vmatprep.subr.bf16.mxu0 0
      %1171 = vmatpush1.bf16.msra.mxu0 0
      %1172 = vmatprep.subr.bf16.mxu0 0
      %1173 = vmatpush1.bf16.msra.mxu0 0
      %1174 = vmatprep.mubr.bf16.mxu0 0
      %1175 = vmatmul.mubr.bf16.gmra.mrb[0].mxu0 %v1137
      %v1176 = vpop.f32.mrb[0].mxu0
      %v1177 = vadd.f32 %v677, %v1176
      %v1178 = vpop.f32.mrb[0].mxu0
      %v1179 = vpop.f32.mrb[0].mxu0
      %v1180 = vpop.f32.mrb[0].mxu0
      %1181 = vdwg.mxu0
      %v1183 = vsel %vm1042, %v1037, 0
      %v1186 = vsel %vm1046, %v1041, 0
      %1188 = vmatprep.subr.bf16.mxu0 0
      %1189 = vmatpush1.bf16.msra.mxu0 %v1186
      %1190 = vmatprep.subr.bf16.mxu0 0
      %1191 = vmatpush1.bf16.msra.mxu0 0
      %1192 = vmatprep.subr.bf16.mxu0 0
      %1193 = vmatpush1.bf16.msra.mxu0 0
      %1194 = vmatprep.subr.bf16.mxu0 0
      %1195 = vmatpush1.bf16.msra.mxu0 0
      %1196 = vmatprep.subr.bf16.mxu0 0
      %1197 = vmatpush1.bf16.msra.mxu0 0
      %1198 = vmatprep.subr.bf16.mxu0 0
      %1199 = vmatpush1.bf16.msra.mxu0 0
      %1200 = vmatprep.subr.bf16.mxu0 0
      %1201 = vmatpush1.bf16.msra.mxu0 0
      %1202 = vmatprep.subr.bf16.mxu0 0
      %1203 = vmatpush1.bf16.msra.mxu0 0
      %1204 = vmatprep.subr.bf16.mxu0 0
      %1205 = vmatpush1.bf16.msra.mxu0 0
      %1206 = vmatprep.subr.bf16.mxu0 0
      %1207 = vmatpush1.bf16.msra.mxu0 0
      %1208 = vmatprep.subr.bf16.mxu0 0
      %1209 = vmatpush1.bf16.msra.mxu0 0
      %1210 = vmatprep.subr.bf16.mxu0 0
      %1211 = vmatpush1.bf16.msra.mxu0 0
      %1212 = vmatprep.subr.bf16.mxu0 0
      %1213 = vmatpush1.bf16.msra.mxu0 0
      %1214 = vmatprep.subr.bf16.mxu0 0
      %1215 = vmatpush1.bf16.msra.mxu0 0
      %1216 = vmatprep.subr.bf16.mxu0 0
      %1217 = vmatpush1.bf16.msra.mxu0 0
      %1218 = vmatprep.subr.bf16.mxu0 0
      %1219 = vmatpush1.bf16.msra.mxu0 0
      %1220 = vmatprep.mubr.bf16.mxu0 0
      %1221 = vmatmul.mubr.bf16.gmra.mrb[0].mxu0 %v1183
      %v1222 = vpop.f32.mrb[0].mxu0
      %v1223 = vadd.f32 %v677, %v1222
      %v1224 = vpop.f32.mrb[0].mxu0
      %v1225 = vpop.f32.mrb[0].mxu0
      %v1226 = vpop.f32.mrb[0].mxu0
      %1227 = vdwg.mxu0
      %v1228 = vsel %vm1042, %v1085, -inf
      %1229 = vmax.xlane.f32.xlu0 %v1228
      %v1230 = vpop.xlane.xlu0 %1229
      %v1231 = vsel %vm1042, %v1131, -inf
      %1232 = vmax.xlane.f32.xlu0 %v1231
      %v1233 = vpop.xlane.xlu0 %1232
      %v1234 = vsel %vm1042, %v1177, -inf
      %1235 = vmax.xlane.f32.xlu0 %v1234
      %v1236 = vpop.xlane.xlu0 %1235
      %v1237 = vsel %vm1042, %v1223, -inf
      %1238 = vmax.xlane.f32.xlu0 %v1237
      %v1239 = vpop.xlane.xlu0 %1238
      %v1240 = vsub.f32 %v1085, %v1230
      %v1241 = vsub.f32 %v1131, %v1233
      %v1242 = vsub.f32 %v1177, %v1236
      %v1243 = vsub.f32 %v1223, %v1239
      %v1244 = vmul.f32 %v1240, 1.442695
      %v1245 = vpow.pop %v1244
      %v1246 = vmul.f32 %v1241, 1.442695
      %v1247 = vpow.pop %v1246
      %v1248 = vmul.f32 %v1242, 1.442695
      %v1249 = vpow.pop %v1248
      %v1250 = vmul.f32 %v1243, 1.442695
      %v1251 = vpow.pop %v1250
      %v1252 = vsel %vm1042, %v1245, 0.0
      %1253 = vadd.xlane.f32.xlu0 %v1252
      %v1254 = vpop.xlane.xlu0 %1253
      %v1255 = vsel %vm1042, %v1247, 0.0
      %1256 = vadd.xlane.f32.xlu0 %v1255
      %v1257 = vpop.xlane.xlu0 %1256
      %v1258 = vsel %vm1042, %v1249, 0.0
      %1259 = vadd.xlane.f32.xlu0 %v1258
      %v1260 = vpop.xlane.xlu0 %1259
      %v1261 = vsel %vm1042, %v1251, 0.0
      %1262 = vadd.xlane.f32.xlu0 %v1261
      %v1263 = vpop.xlane.xlu0 %1262
      %v1264 = vrcp.pop %v1254
      %v1265 = vrcp.pop %v1257
      %v1266 = vrcp.pop %v1260
      %v1267 = vrcp.pop %v1263
      %v1268 = vmul.f32 %v1245, %v1264
      %v1269 = vmul.f32 %v1247, %v1265
      %v1270 = vmul.f32 %v1249, %v1266
      %v1271 = vmul.f32 %v1251, %v1267
      %v1272 = vpack.c.bf16 %v1268, %v1268
      %v1273 = vpack.c.bf16 %v1269, %v1269
      %v1274 = vpack.c.bf16 %v1270, %v1270
      %v1275 = vpack.c.bf16 %v1271, %v1271
      %v1276 = vpack.c.bf16 %v922, %v922
      %v1277 = vpack.c.bf16 %v954, %v954
      %v1278 = vpack.c.bf16 %v986, %v986
      %v1279 = vpack.c.bf16 %v1018, %v1018
      %v1281 = vsel %vm1042, %v1272, 0
      %v1284 = vsel %vm1046, %v1276, 0
      %1286 = vmatprep.subr.bf16.mxu0 0
      %1287 = vmatpush1.bf16.msra.mxu0 %v1284
      %1288 = vmatprep.subr.bf16.mxu0 0
      %1289 = vmatpush1.bf16.msra.mxu0 0
      %1290 = vmatprep.subr.bf16.mxu0 0
      %1291 = vmatpush1.bf16.msra.mxu0 0
      %1292 = vmatprep.subr.bf16.mxu0 0
      %1293 = vmatpush1.bf16.msra.mxu0 0
      %1294 = vmatprep.subr.bf16.mxu0 0
      %1295 = vmatpush1.bf16.msra.mxu0 0
      %1296 = vmatprep.subr.bf16.mxu0 0
      %1297 = vmatpush1.bf16.msra.mxu0 0
      %1298 = vmatprep.subr.bf16.mxu0 0
      %1299 = vmatpush1.bf16.msra.mxu0 0
      %1300 = vmatprep.subr.bf16.mxu0 0
      %1301 = vmatpush1.bf16.msra.mxu0 0
      %1302 = vmatprep.subr.bf16.mxu0 0
      %1303 = vmatpush1.bf16.msra.mxu0 0
      %1304 = vmatprep.subr.bf16.mxu0 0
      %1305 = vmatpush1.bf16.msra.mxu0 0
      %1306 = vmatprep.subr.bf16.mxu0 0
      %1307 = vmatpush1.bf16.msra.mxu0 0
      %1308 = vmatprep.subr.bf16.mxu0 0
      %1309 = vmatpush1.bf16.msra.mxu0 0
      %1310 = vmatprep.subr.bf16.mxu0 0
      %1311 = vmatpush1.bf16.msra.mxu0 0
      %1312 = vmatprep.subr.bf16.mxu0 0
      %1313 = vmatpush1.bf16.msra.mxu0 0
      %1314 = vmatprep.subr.bf16.mxu0 0
      %1315 = vmatpush1.bf16.msra.mxu0 0
      %1316 = vmatprep.subr.bf16.mxu0 0
      %1317 = vmatpush1.bf16.msra.mxu0 0
      %1318 = vmatprep.mubr.bf16.mxu0 0
      %1319 = vmatmul.mubr.bf16.gmra.mrb[0].mxu0 %v1281
      %v1320 = vpop.f32.mrb[0].mxu0
      %v1321 = vadd.f32 0.0, %v1320
      %v1322 = vpop.f32.mrb[0].mxu0
      %v1323 = vpop.f32.mrb[0].mxu0
      %v1324 = vpop.f32.mrb[0].mxu0
      %1325 = vdwg.mxu0
      %v1327 = vsel %vm1042, %v1273, 0
      %v1330 = vsel %vm1046, %v1277, 0
      %1332 = vmatprep.subr.bf16.mxu0 0
      %1333 = vmatpush1.bf16.msra.mxu0 %v1330
      %1334 = vmatprep.subr.bf16.mxu0 0
      %1335 = vmatpush1.bf16.msra.mxu0 0
      %1336 = vmatprep.subr.bf16.mxu0 0
      %1337 = vmatpush1.bf16.msra.mxu0 0
      %1338 = vmatprep.subr.bf16.mxu0 0
      %1339 = vmatpush1.bf16.msra.mxu0 0
      %1340 = vmatprep.subr.bf16.mxu0 0
      %1341 = vmatpush1.bf16.msra.mxu0 0
      %1342 = vmatprep.subr.bf16.mxu0 0
      %1343 = vmatpush1.bf16.msra.mxu0 0
      %1344 = vmatprep.subr.bf16.mxu0 0
      %1345 = vmatpush1.bf16.msra.mxu0 0
      %1346 = vmatprep.subr.bf16.mxu0 0
      %1347 = vmatpush1.bf16.msra.mxu0 0
      %1348 = vmatprep.subr.bf16.mxu0 0
      %1349 = vmatpush1.bf16.msra.mxu0 0
      %1350 = vmatprep.subr.bf16.mxu0 0
      %1351 = vmatpush1.bf16.msra.mxu0 0
      %1352 = vmatprep.subr.bf16.mxu0 0
      %1353 = vmatpush1.bf16.msra.mxu0 0
      %1354 = vmatprep.subr.bf16.mxu0 0
      %1355 = vmatpush1.bf16.msra.mxu0 0
      %1356 = vmatprep.subr.bf16.mxu0 0
      %1357 = vmatpush1.bf16.msra.mxu0 0
      %1358 = vmatprep.subr.bf16.mxu0 0
      %1359 = vmatpush1.bf16.msra.mxu0 0
      %1360 = vmatprep.subr.bf16.mxu0 0
      %1361 = vmatpush1.bf16.msra.mxu0 0
      %1362 = vmatprep.subr.bf16.mxu0 0
      %1363 = vmatpush1.bf16.msra.mxu0 0
      %1364 = vmatprep.mubr.bf16.mxu0 0
      %1365 = vmatmul.mubr.bf16.gmra.mrb[0].mxu0 %v1327
      %v1366 = vpop.f32.mrb[0].mxu0
      %v1367 = vadd.f32 0.0, %v1366
      %v1368 = vpop.f32.mrb[0].mxu0
      %v1369 = vpop.f32.mrb[0].mxu0
      %v1370 = vpop.f32.mrb[0].mxu0
      %1371 = vdwg.mxu0
      %v1373 = vsel %vm1042, %v1274, 0
      %v1376 = vsel %vm1046, %v1278, 0
      %1378 = vmatprep.subr.bf16.mxu0 0
      %1379 = vmatpush1.bf16.msra.mxu0 %v1376
      %1380 = vmatprep.subr.bf16.mxu0 0
      %1381 = vmatpush1.bf16.msra.mxu0 0
      %1382 = vmatprep.subr.bf16.mxu0 0
      %1383 = vmatpush1.bf16.msra.mxu0 0
      %1384 = vmatprep.subr.bf16.mxu0 0
      %1385 = vmatpush1.bf16.msra.mxu0 0
      %1386 = vmatprep.subr.bf16.mxu0 0
      %1387 = vmatpush1.bf16.msra.mxu0 0
      %1388 = vmatprep.subr.bf16.mxu0 0
      %1389 = vmatpush1.bf16.msra.mxu0 0
      %1390 = vmatprep.subr.bf16.mxu0 0
      %1391 = vmatpush1.bf16.msra.mxu0 0
      %1392 = vmatprep.subr.bf16.mxu0 0
      %1393 = vmatpush1.bf16.msra.mxu0 0
      %1394 = vmatprep.subr.bf16.mxu0 0
      %1395 = vmatpush1.bf16.msra.mxu0 0
      %1396 = vmatprep.subr.bf16.mxu0 0
      %1397 = vmatpush1.bf16.msra.mxu0 0
      %1398 = vmatprep.subr.bf16.mxu0 0
      %1399 = vmatpush1.bf16.msra.mxu0 0
      %1400 = vmatprep.subr.bf16.mxu0 0
      %1401 = vmatpush1.bf16.msra.mxu0 0
      %1402 = vmatprep.subr.bf16.mxu0 0
      %1403 = vmatpush1.bf16.msra.mxu0 0
      %1404 = vmatprep.subr.bf16.mxu0 0
      %1405 = vmatpush1.bf16.msra.mxu0 0
      %1406 = vmatprep.subr.bf16.mxu0 0
      %1407 = vmatpush1.bf16.msra.mxu0 0
      %1408 = vmatprep.subr.bf16.mxu0 0
      %1409 = vmatpush1.bf16.msra.mxu0 0
      %1410 = vmatprep.mubr.bf16.mxu0 0
      %1411 = vmatmul.mubr.bf16.gmra.mrb[0].mxu0 %v1373
      %v1412 = vpop.f32.mrb[0].mxu0
      %v1413 = vadd.f32 0.0, %v1412
      %v1414 = vpop.f32.mrb[0].mxu0
      %v1415 = vpop.f32.mrb[0].mxu0
      %v1416 = vpop.f32.mrb[0].mxu0
      %1417 = vdwg.mxu0
      %v1419 = vsel %vm1042, %v1275, 0
      %v1422 = vsel %vm1046, %v1279, 0
      %1424 = vmatprep.subr.bf16.mxu0 0
      %1425 = vmatpush1.bf16.msra.mxu0 %v1422
      %1426 = vmatprep.subr.bf16.mxu0 0
      %1427 = vmatpush1.bf16.msra.mxu0 0
      %1428 = vmatprep.subr.bf16.mxu0 0
      %1429 = vmatpush1.bf16.msra.mxu0 0
      %1430 = vmatprep.subr.bf16.mxu0 0
      %1431 = vmatpush1.bf16.msra.mxu0 0
      %1432 = vmatprep.subr.bf16.mxu0 0
      %1433 = vmatpush1.bf16.msra.mxu0 0
      %1434 = vmatprep.subr.bf16.mxu0 0
      %1435 = vmatpush1.bf16.msra.mxu0 0
      %1436 = vmatprep.subr.bf16.mxu0 0
      %1437 = vmatpush1.bf16.msra.mxu0 0
      %1438 = vmatprep.subr.bf16.mxu0 0
      %1439 = vmatpush1.bf16.msra.mxu0 0
      %1440 = vmatprep.subr.bf16.mxu0 0
      %1441 = vmatpush1.bf16.msra.mxu0 0
      %1442 = vmatprep.subr.bf16.mxu0 0
      %1443 = vmatpush1.bf16.msra.mxu0 0
      %1444 = vmatprep.subr.bf16.mxu0 0
      %1445 = vmatpush1.bf16.msra.mxu0 0
      %1446 = vmatprep.subr.bf16.mxu0 0
      %1447 = vmatpush1.bf16.msra.mxu0 0
      %1448 = vmatprep.subr.bf16.mxu0 0
      %1449 = vmatpush1.bf16.msra.mxu0 0
      %1450 = vmatprep.subr.bf16.mxu0 0
      %1451 = vmatpush1.bf16.msra.mxu0 0
      %1452 = vmatprep.subr.bf16.mxu0 0
      %1453 = vmatpush1.bf16.msra.mxu0 0
      %1454 = vmatprep.subr.bf16.mxu0 0
      %1455 = vmatpush1.bf16.msra.mxu0 0
      %1456 = vmatprep.mubr.bf16.mxu0 0
      %1457 = vmatmul.mubr.bf16.gmra.mrb[0].mxu0 %v1419
      %v1458 = vpop.f32.mrb[0].mxu0
      %v1459 = vadd.f32 0.0, %v1458
      %v1460 = vpop.f32.mrb[0].mxu0
      %v1461 = vpop.f32.mrb[0].mxu0
      %v1462 = vpop.f32.mrb[0].mxu0
      %1463 = vdwg.mxu0
      %1464 = vxpose.xlu0.b32.start [1/16] %v1321, 128
      %1465 = vxpose.xlu0.b32.cont [2/16] 0.0, 128
      %1466 = vxpose.xlu0.b32.cont [3/16] 0.0, 128
      %1467 = vxpose.xlu0.b32.cont [4/16] 0.0, 128
      %1468 = vxpose.xlu0.b32.cont [5/16] 0.0, 128
      %1469 = vxpose.xlu0.b32.cont [6/16] 0.0, 128
      %1470 = vxpose.xlu0.b32.cont [7/16] 0.0, 128
      %1471 = vxpose.xlu0.b32.cont [8/16] 0.0, 128
      %1472 = vxpose.xlu0.b32.cont [9/16] 0.0, 128
      %1473 = vxpose.xlu0.b32.cont [10/16] 0.0, 128
      %1474 = vxpose.xlu0.b32.cont [11/16] 0.0, 128
      %1475 = vxpose.xlu0.b32.cont [12/16] 0.0, 128
      %1476 = vxpose.xlu0.b32.cont [13/16] 0.0, 128
      %1477 = vxpose.xlu0.b32.cont [14/16] 0.0, 128
      %1478 = vxpose.xlu0.b32.cont [15/16] 0.0, 128
      %1479 = vxpose.xlu0.b32.end [16/16] 0.0, 128
      %v1480 = vpop.trf.xlu0
      %v1481 = vpop.trf.xlu0
      %v1482 = vpop.trf.xlu0
      %v1483 = vpop.trf.xlu0
      %v1484 = vpop.trf.xlu0
      %v1485 = vpop.trf.xlu0
      %v1486 = vpop.trf.xlu0
      %v1487 = vpop.trf.xlu0
      %v1488 = vpop.trf.xlu0
      %v1489 = vpop.trf.xlu0
      %v1490 = vpop.trf.xlu0
      %v1491 = vpop.trf.xlu0
      %v1492 = vpop.trf.xlu0
      %v1493 = vpop.trf.xlu0
      %v1494 = vpop.trf.xlu0
      %v1495 = vpop.trf.xlu0
      %1496 = vxpose.xlu0.b32.start [1/16] %v1367, 128
      %1497 = vxpose.xlu0.b32.cont [2/16] 0.0, 128
      %1498 = vxpose.xlu0.b32.cont [3/16] 0.0, 128
      %1499 = vxpose.xlu0.b32.cont [4/16] 0.0, 128
      %1500 = vxpose.xlu0.b32.cont [5/16] 0.0, 128
      %1501 = vxpose.xlu0.b32.cont [6/16] 0.0, 128
      %1502 = vxpose.xlu0.b32.cont [7/16] 0.0, 128
      %1503 = vxpose.xlu0.b32.cont [8/16] 0.0, 128
      %1504 = vxpose.xlu0.b32.cont [9/16] 0.0, 128
      %1505 = vxpose.xlu0.b32.cont [10/16] 0.0, 128
      %1506 = vxpose.xlu0.b32.cont [11/16] 0.0, 128
      %1507 = vxpose.xlu0.b32.cont [12/16] 0.0, 128
      %1508 = vxpose.xlu0.b32.cont [13/16] 0.0, 128
      %1509 = vxpose.xlu0.b32.cont [14/16] 0.0, 128
      %1510 = vxpose.xlu0.b32.cont [15/16] 0.0, 128
      %1511 = vxpose.xlu0.b32.end [16/16] 0.0, 128
      %v1512 = vpop.trf.xlu0
      %v1513 = vpop.trf.xlu0
      %v1514 = vpop.trf.xlu0
      %v1515 = vpop.trf.xlu0
      %v1516 = vpop.trf.xlu0
      %v1517 = vpop.trf.xlu0
      %v1518 = vpop.trf.xlu0
      %v1519 = vpop.trf.xlu0
      %v1520 = vpop.trf.xlu0
      %v1521 = vpop.trf.xlu0
      %v1522 = vpop.trf.xlu0
      %v1523 = vpop.trf.xlu0
      %v1524 = vpop.trf.xlu0
      %v1525 = vpop.trf.xlu0
      %v1526 = vpop.trf.xlu0
      %v1527 = vpop.trf.xlu0
      %1528 = vxpose.xlu0.b32.start [1/16] %v1413, 128
      %1529 = vxpose.xlu0.b32.cont [2/16] 0.0, 128
      %1530 = vxpose.xlu0.b32.cont [3/16] 0.0, 128
      %1531 = vxpose.xlu0.b32.cont [4/16] 0.0, 128
      %1532 = vxpose.xlu0.b32.cont [5/16] 0.0, 128
      %1533 = vxpose.xlu0.b32.cont [6/16] 0.0, 128
      %1534 = vxpose.xlu0.b32.cont [7/16] 0.0, 128
      %1535 = vxpose.xlu0.b32.cont [8/16] 0.0, 128
      %1536 = vxpose.xlu0.b32.cont [9/16] 0.0, 128
      %1537 = vxpose.xlu0.b32.cont [10/16] 0.0, 128
      %1538 = vxpose.xlu0.b32.cont [11/16] 0.0, 128
      %1539 = vxpose.xlu0.b32.cont [12/16] 0.0, 128
      %1540 = vxpose.xlu0.b32.cont [13/16] 0.0, 128
      %1541 = vxpose.xlu0.b32.cont [14/16] 0.0, 128
      %1542 = vxpose.xlu0.b32.cont [15/16] 0.0, 128
      %1543 = vxpose.xlu0.b32.end [16/16] 0.0, 128
      %v1544 = vpop.trf.xlu0
      %v1545 = vpop.trf.xlu0
      %v1546 = vpop.trf.xlu0
      %v1547 = vpop.trf.xlu0
      %v1548 = vpop.trf.xlu0
      %v1549 = vpop.trf.xlu0
      %v1550 = vpop.trf.xlu0
      %v1551 = vpop.trf.xlu0
      %v1552 = vpop.trf.xlu0
      %v1553 = vpop.trf.xlu0
      %v1554 = vpop.trf.xlu0
      %v1555 = vpop.trf.xlu0
      %v1556 = vpop.trf.xlu0
      %v1557 = vpop.trf.xlu0
      %v1558 = vpop.trf.xlu0
      %v1559 = vpop.trf.xlu0
      %1560 = vxpose.xlu0.b32.start [1/16] %v1459, 128
      %1561 = vxpose.xlu0.b32.cont [2/16] 0.0, 128
      %1562 = vxpose.xlu0.b32.cont [3/16] 0.0, 128
      %1563 = vxpose.xlu0.b32.cont [4/16] 0.0, 128
      %1564 = vxpose.xlu0.b32.cont [5/16] 0.0, 128
      %1565 = vxpose.xlu0.b32.cont [6/16] 0.0, 128
      %1566 = vxpose.xlu0.b32.cont [7/16] 0.0, 128
      %1567 = vxpose.xlu0.b32.cont [8/16] 0.0, 128
      %1568 = vxpose.xlu0.b32.cont [9/16] 0.0, 128
      %1569 = vxpose.xlu0.b32.cont [10/16] 0.0, 128
      %1570 = vxpose.xlu0.b32.cont [11/16] 0.0, 128
      %1571 = vxpose.xlu0.b32.cont [12/16] 0.0, 128
      %1572 = vxpose.xlu0.b32.cont [13/16] 0.0, 128
      %1573 = vxpose.xlu0.b32.cont [14/16] 0.0, 128
      %1574 = vxpose.xlu0.b32.cont [15/16] 0.0, 128
      %1575 = vxpose.xlu0.b32.end [16/16] 0.0, 128
      %v1576 = vpop.trf.xlu0
      %v1577 = vpop.trf.xlu0
      %v1578 = vpop.trf.xlu0
      %v1579 = vpop.trf.xlu0
      %v1580 = vpop.trf.xlu0
      %v1581 = vpop.trf.xlu0
      %v1582 = vpop.trf.xlu0
      %v1583 = vpop.trf.xlu0
      %v1584 = vpop.trf.xlu0
      %v1585 = vpop.trf.xlu0
      %v1586 = vpop.trf.xlu0
      %v1587 = vpop.trf.xlu0
      %v1588 = vpop.trf.xlu0
      %v1589 = vpop.trf.xlu0
      %v1590 = vpop.trf.xlu0
      %v1591 = vpop.trf.xlu0
      %1592 = vxpose.xlu0.b32.start [1/16] %v1480, 128
      %1593 = vxpose.xlu0.b32.cont [2/16] %v1512, 128
      %1594 = vxpose.xlu0.b32.cont [3/16] %v1544, 128
      %1595 = vxpose.xlu0.b32.cont [4/16] %v1576, 128
      %1596 = vxpose.xlu0.b32.cont [5/16] 0.0, 128
      %1597 = vxpose.xlu0.b32.cont [6/16] 0.0, 128
      %1598 = vxpose.xlu0.b32.cont [7/16] 0.0, 128
      %1599 = vxpose.xlu0.b32.cont [8/16] 0.0, 128
      %1600 = vxpose.xlu0.b32.cont [9/16] 0.0, 128
      %1601 = vxpose.xlu0.b32.cont [10/16] 0.0, 128
      %1602 = vxpose.xlu0.b32.cont [11/16] 0.0, 128
      %1603 = vxpose.xlu0.b32.cont [12/16] 0.0, 128
      %1604 = vxpose.xlu0.b32.cont [13/16] 0.0, 128
      %1605 = vxpose.xlu0.b32.cont [14/16] 0.0, 128
      %1606 = vxpose.xlu0.b32.cont [15/16] 0.0, 128
      %1607 = vxpose.xlu0.b32.end [16/16] 0.0, 128
      %v1608 = vpop.trf.xlu0
      %v1609 = vpop.trf.xlu0
      %v1610 = vpop.trf.xlu0
      %v1611 = vpop.trf.xlu0
      %v1612 = vpop.trf.xlu0
      %v1613 = vpop.trf.xlu0
      %v1614 = vpop.trf.xlu0
      %v1615 = vpop.trf.xlu0
      %v1616 = vpop.trf.xlu0
      %v1617 = vpop.trf.xlu0
      %v1618 = vpop.trf.xlu0
      %v1619 = vpop.trf.xlu0
      %v1620 = vpop.trf.xlu0
      %v1621 = vpop.trf.xlu0
      %v1622 = vpop.trf.xlu0
      %v1623 = vpop.trf.xlu0
      %v1624 = vld [vmem:[%s6] sm:$0xf]
      %v1625 = vld [vmem:[%s6 + $0x4] sm:$0xf]
      %v1626 = vld [vmem:[%s6 + $0x8] sm:$0xf]
      %v1627 = vld [vmem:[%s6 + $0xc] sm:$0xf]
      %v1628 = vld [vmem:[%s7] sm:$0x1]
      %v1629 = vpack.c.bf16 %v1608, %v1608
      %v1631 = vlaneseq
      %v1632 = vshrl.u32 %v1631, 7
      %v1633 = vsub.s32 0, %v1632
      %v1634 = vrot.slane %v1628, %v1633
      %v1640 = vunpack.c.l.b16 %v1624
      %v1641 = vunpack.c.l.b16 %v1625
      %v1642 = vunpack.c.l.b16 %v1626
      %v1643 = vunpack.c.l.b16 %v1627
      %v1644 = vpack.c.b16 %v1641, %v1640
      %v1645 = vpack.c.b16 %v1643, %v1642
      %v1649 = vsel %vm643, %v1629, 0
      %1651 = vmatprep.subr.bf16.mxu0 0
      %1652 = vmatpush1.bf16.msra.mxu0 %v1644
      %1653 = vmatprep.subr.bf16.mxu0 0
      %1654 = vmatpush1.bf16.msra.mxu0 %v1645
      %1655 = vmatprep.subr.bf16.mxu0 0
      %1656 = vmatpush1.bf16.msra.mxu0 0
      %1657 = vmatprep.subr.bf16.mxu0 0
      %1658 = vmatpush1.bf16.msra.mxu0 0
      %1659 = vmatprep.subr.bf16.mxu0 0
      %1660 = vmatpush1.bf16.msra.mxu0 0
      %1661 = vmatprep.subr.bf16.mxu0 0
      %1662 = vmatpush1.bf16.msra.mxu0 0
      %1663 = vmatprep.subr.bf16.mxu0 0
      %1664 = vmatpush1.bf16.msra.mxu0 0
      %1665 = vmatprep.subr.bf16.mxu0 0
      %1666 = vmatpush1.bf16.msra.mxu0 0
      %1667 = vmatprep.subr.bf16.mxu0 0
      %1668 = vmatpush1.bf16.msra.mxu0 0
      %1669 = vmatprep.subr.bf16.mxu0 0
      %1670 = vmatpush1.bf16.msra.mxu0 0
      %1671 = vmatprep.subr.bf16.mxu0 0
      %1672 = vmatpush1.bf16.msra.mxu0 0
      %1673 = vmatprep.subr.bf16.mxu0 0
      %1674 = vmatpush1.bf16.msra.mxu0 0
      %1675 = vmatprep.subr.bf16.mxu0 0
      %1676 = vmatpush1.bf16.msra.mxu0 0
      %1677 = vmatprep.subr.bf16.mxu0 0
      %1678 = vmatpush1.bf16.msra.mxu0 0
      %1679 = vmatprep.subr.bf16.mxu0 0
      %1680 = vmatpush1.bf16.msra.mxu0 0
      %1681 = vmatprep.subr.bf16.mxu0 0
      %1682 = vmatpush1.bf16.msra.mxu0 0
      %1683 = vmatprep.mubr.bf16.mxu0 0
      %1684 = vmatmul.mubr.bf16.gmra.mrb[0].mxu0 %v1649
      %v1685 = vpop.f32.mrb[0].mxu0
      %v1686 = vadd.f32 %v1634, %v1685
      %v1687 = vpop.f32.mrb[0].mxu0
      %v1688 = vpop.f32.mrb[0].mxu0
      %v1689 = vpop.f32.mrb[0].mxu0
      %1690 = vdwg.mxu0
      %v1691 = vadd.f32 %v1686, %v671
      %v1692 = vld [vmem:[%s8] sm:$0x1]
      %v1693 = vld [vmem:[%s9] sm:$0x1]
      %v1694 = vsel %vm643, %v1691, 0.0
      %1695 = vadd.xlane.f32.xlu0 %v1694
      %v1696 = vpop.xlane.xlu0 %1695
      %v1697 = vmul.f32 %v1696, %v647
      %v1698 = vsub.f32 %v1691, %v1697
      %v1699 = vmul.f32 %v1698, %v1698
      %v1700 = vsel %vm643, %v1699, 0.0
      %1701 = vadd.xlane.f32.xlu0 %v1700
      %v1702 = vpop.xlane.xlu0 %1701
      %v1703 = vmul.f32 %v1702, %v647
      %v1704 = vadd.f32 %v1703, 1e-12
      %v1705 = vrsqrt.pop %v1704
      %v1706 = vmul.f32 %v1698, %v1705
      %v1708 = vlaneseq
      %v1709 = vshrl.u32 %v1708, 7
      %v1710 = vsub.s32 0, %v1709
      %v1711 = vrot.slane %v1692, %v1710
      %v1713 = vmul.f32 %v1706, %v1711
      %v1715 = vlaneseq
      %v1716 = vshrl.u32 %v1715, 7
      %v1717 = vsub.s32 0, %v1716
      %v1718 = vrot.slane %v1693, %v1717
      %v1720 = vadd.f32 %v1713, %v1718
      %v1721 = vld [vmem:[%s10] sm:$0xf]
      %v1722 = vld [vmem:[%s10 + $0x4] sm:$0xf]
      %v1723 = vld [vmem:[%s10 + $0x8] sm:$0xf]
      %v1724 = vld [vmem:[%s10 + $0xc] sm:$0xf]
      %v1725 = vld [vmem:[%s11] sm:$0x1]
      %v1726 = vpack.c.bf16 %v1720, %v1720
      %v1728 = vlaneseq
      %v1729 = vshrl.u32 %v1728, 7
      %v1730 = vsub.s32 0, %v1729
      %v1731 = vrot.slane %v1725, %v1730
      %v1737 = vunpack.c.l.b16 %v1721
      %v1738 = vunpack.c.l.b16 %v1722
      %v1739 = vunpack.c.l.b16 %v1723
      %v1740 = vunpack.c.l.b16 %v1724
      %v1741 = vpack.c.b16 %v1738, %v1737
      %v1742 = vpack.c.b16 %v1740, %v1739
      %v1746 = vsel %vm643, %v1726, 0
      %1748 = vmatprep.subr.bf16.mxu0 0
      %1749 = vmatpush1.bf16.msra.mxu0 %v1741
      %1750 = vmatprep.subr.bf16.mxu0 0
      %1751 = vmatpush1.bf16.msra.mxu0 %v1742
      %1752 = vmatprep.subr.bf16.mxu0 0
      %1753 = vmatpush1.bf16.msra.mxu0 0
      %1754 = vmatprep.subr.bf16.mxu0 0
      %1755 = vmatpush1.bf16.msra.mxu0 0
      %1756 = vmatprep.subr.bf16.mxu0 0
      %1757 = vmatpush1.bf16.msra.mxu0 0
      %1758 = vmatprep.subr.bf16.mxu0 0
      %1759 = vmatpush1.bf16.msra.mxu0 0
      %1760 = vmatprep.subr.bf16.mxu0 0
      %1761 = vmatpush1.bf16.msra.mxu0 0
      %1762 = vmatprep.subr.bf16.mxu0 0
      %1763 = vmatpush1.bf16.msra.mxu0 0
      %1764 = vmatprep.subr.bf16.mxu0 0
      %1765 = vmatpush1.bf16.msra.mxu0 0
      %1766 = vmatprep.subr.bf16.mxu0 0
      %1767 = vmatpush1.bf16.msra.mxu0 0
      %1768 = vmatprep.subr.bf16.mxu0 0
      %1769 = vmatpush1.bf16.msra.mxu0 0
      %1770 = vmatprep.subr.bf16.mxu0 0
      %1771 = vmatpush1.bf16.msra.mxu0 0
      %1772 = vmatprep.subr.bf16.mxu0 0
      %1773 = vmatpush1.bf16.msra.mxu0 0
      %1774 = vmatprep.subr.bf16.mxu0 0
      %1775 = vmatpush1.bf16.msra.mxu0 0
      %1776 = vmatprep.subr.bf16.mxu0 0
      %1777 = vmatpush1.bf16.msra.mxu0 0
      %1778 = vmatprep.subr.bf16.mxu0 0
      %1779 = vmatpush1.bf16.msra.mxu0 0
      %1780 = vmatprep.mubr.bf16.mxu0 0
      %1781 = vmatmul.mubr.bf16.gmra.mrb[0].mxu0 %v1746
      %v1782 = vpop.f32.mrb[0].mxu0
      %v1783 = vadd.f32 %v1731, %v1782
      %v1784 = vpop.f32.mrb[0].mxu0
      %v1785 = vpop.f32.mrb[0].mxu0
      %v1786 = vpop.f32.mrb[0].mxu0
      %1787 = vdwg.mxu0
      %v1788 = vmul.f32 %v1783, 0.5
      %v1789 = vmul.f32 %v1783, 0.044715
      %v1790 = vmul.f32 %v1789, %v1783
      %v1791 = vmul.f32 %v1790, %v1783
      %v1792 = vadd.f32 %v1783, %v1791
      %v1793 = vmul.f32 %v1792, 0.7978846
      %v1794 = vtanh.pop %v1793
      %v1795 = vadd.f32 %v1794, 1.0
      %v1796 = vmul.f32 %v1788, %v1795
      %v1797 = vld [vmem:[%s12] sm:$0xf]
      %v1798 = vld [vmem:[%s12 + $0x4] sm:$0xf]
      %v1799 = vld [vmem:[%s12 + $0x8] sm:$0xf]
      %v1800 = vld [vmem:[%s12 + $0xc] sm:$0xf]
      %v1801 = vld [vmem:[%s12 + $0x10] sm:$0xf]
      %v1802 = vld [vmem:[%s12 + $0x14] sm:$0xf]
      %v1803 = vld [vmem:[%s12 + $0x18] sm:$0xf]
      %v1804 = vld [vmem:[%s12 + $0x1c] sm:$0xf]
      %v1805 = vld [vmem:[%s13] sm:$0x1]
      %v1806 = vpack.c.bf16 %v1796, %v1796
      %v1808 = vlaneseq
      %v1809 = vshrl.u32 %v1808, 7
      %v1810 = vsub.s32 0, %v1809
      %v1811 = vrot.slane %v1805, %v1810
      %v1821 = vunpack.c.l.b16 %v1797
      %v1822 = vunpack.c.l.b16 %v1798
      %v1823 = vunpack.c.l.b16 %v1799
      %v1824 = vunpack.c.l.b16 %v1800
      %v1825 = vunpack.c.l.b16 %v1801
      %v1826 = vunpack.c.l.b16 %v1802
      %v1827 = vunpack.c.l.b16 %v1803
      %v1828 = vunpack.c.l.b16 %v1804
      %v1829 = vpack.c.b16 %v1822, %v1821
      %v1830 = vpack.c.b16 %v1824, %v1823
      %v1831 = vpack.c.b16 %v1826, %v1825
      %v1832 = vpack.c.b16 %v1828, %v1827
      %vm1837 = vcmask 523264
      %v1839 = vsel %vm1837, %v1806, 0
      %1841 = vmatprep.subr.bf16.mxu0 0
      %1842 = vmatpush1.bf16.msra.mxu0 %v1829
      %1843 = vmatprep.subr.bf16.mxu0 0
      %1844 = vmatpush1.bf16.msra.mxu0 %v1830
      %1845 = vmatprep.subr.bf16.mxu0 0
      %1846 = vmatpush1.bf16.msra.mxu0 %v1831
      %1847 = vmatprep.subr.bf16.mxu0 0
      %1848 = vmatpush1.bf16.msra.mxu0 %v1832
      %1849 = vmatprep.subr.bf16.mxu0 0
      %1850 = vmatpush1.bf16.msra.mxu0 0
      %1851 = vmatprep.subr.bf16.mxu0 0
      %1852 = vmatpush1.bf16.msra.mxu0 0
      %1853 = vmatprep.subr.bf16.mxu0 0
      %1854 = vmatpush1.bf16.msra.mxu0 0
      %1855 = vmatprep.subr.bf16.mxu0 0
      %1856 = vmatpush1.bf16.msra.mxu0 0
      %1857 = vmatprep.subr.bf16.mxu0 0
      %1858 = vmatpush1.bf16.msra.mxu0 0
      %1859 = vmatprep.subr.bf16.mxu0 0
      %1860 = vmatpush1.bf16.msra.mxu0 0
      %1861 = vmatprep.subr.bf16.mxu0 0
      %1862 = vmatpush1.bf16.msra.mxu0 0
      %1863 = vmatprep.subr.bf16.mxu0 0
      %1864 = vmatpush1.bf16.msra.mxu0 0
      %1865 = vmatprep.subr.bf16.mxu0 0
      %1866 = vmatpush1.bf16.msra.mxu0 0
      %1867 = vmatprep.subr.bf16.mxu0 0
      %1868 = vmatpush1.bf16.msra.mxu0 0
      %1869 = vmatprep.subr.bf16.mxu0 0
      %1870 = vmatpush1.bf16.msra.mxu0 0
      %1871 = vmatprep.subr.bf16.mxu0 0
      %1872 = vmatpush1.bf16.msra.mxu0 0
      %1873 = vmatprep.mubr.bf16.mxu0 0
      %1874 = vmatmul.mubr.bf16.gmra.mrb[0].mxu0 %v1839
      %v1875 = vpop.f32.mrb[0].mxu0
      %v1876 = vadd.f32 %v1811, %v1875
      %v1877 = vpop.f32.mrb[0].mxu0
      %v1878 = vpop.f32.mrb[0].mxu0
      %v1879 = vpop.f32.mrb[0].mxu0
      %1880 = vdwg.mxu0
      %v1881 = vadd.f32 %v1876, %v1720
      %v1882 = vld [vmem:[%s14] sm:$0x1]
      %v1883 = vld [vmem:[%s15] sm:$0x1]
      %v1884 = vsel %vm643, %v1881, 0.0
      %1885 = vadd.xlane.f32.xlu0 %v1884
      %v1886 = vpop.xlane.xlu0 %1885
      %v1887 = vmul.f32 %v1886, %v647
      %v1888 = vsub.f32 %v1881, %v1887
      %v1889 = vmul.f32 %v1888, %v1888
      %v1890 = vsel %vm643, %v1889, 0.0
      %1891 = vadd.xlane.f32.xlu0 %v1890
      %v1892 = vpop.xlane.xlu0 %1891
      %v1893 = vmul.f32 %v1892, %v647
      %v1894 = vadd.f32 %v1893, 1e-12
      %v1895 = vrsqrt.pop %v1894
      %v1896 = vmul.f32 %v1888, %v1895
      %v1898 = vlaneseq
      %v1899 = vshrl.u32 %v1898, 7
      %v1900 = vsub.s32 0, %v1899
      %v1901 = vrot.slane %v1882, %v1900
      %v1903 = vmul.f32 %v1896, %v1901
      %v1905 = vlaneseq
      %v1906 = vshrl.u32 %v1905, 7
      %v1907 = vsub.s32 0, %v1906
      %v1908 = vrot.slane %v1883, %v1907
      %v1910 = vadd.f32 %v1903, %v1908
      %s1911 = scalar_lea.vmem %s4, 16
      %v1912 = vld [vmem:[%s1911] sm:$0xf]
      %v1913 = vld [vmem:[%s1911 + $0x4] sm:$0xf]
      %v1914 = vld [vmem:[%s1911 + $0x8] sm:$0xf]
      %v1915 = vld [vmem:[%s1911 + $0xc] sm:$0xf]
      %s1916 = scalar_lea.vmem %s5, 1
      %v1917 = vld [vmem:[%s1916] sm:$0x1]
      %v1918 = vpack.c.bf16 %v1910, %v1910
      %v1920 = vlaneseq
      %v1921 = vshrl.u32 %v1920, 7
      %v1922 = vsub.s32 0, %v1921
      %v1923 = vrot.slane %v1917, %v1922
      %v1929 = vunpack.c.l.b16 %v1912
      %v1930 = vunpack.c.l.b16 %v1913
      %v1931 = vunpack.c.l.b16 %v1914
      %v1932 = vunpack.c.l.b16 %v1915
      %v1933 = vpack.c.b16 %v1930, %v1929
      %v1934 = vpack.c.b16 %v1932, %v1931
      %v1938 = vsel %vm643, %v1918, 0
      %1940 = vmatprep.subr.bf16.mxu0 0
      %1941 = vmatpush1.bf16.msra.mxu0 %v1933
      %1942 = vmatprep.subr.bf16.mxu0 0
      %1943 = vmatpush1.bf16.msra.mxu0 %v1934
      %1944 = vmatprep.subr.bf16.mxu0 0
      %1945 = vmatpush1.bf16.msra.mxu0 0
      %1946 = vmatprep.subr.bf16.mxu0 0
      %1947 = vmatpush1.bf16.msra.mxu0 0
      %1948 = vmatprep.subr.bf16.mxu0 0
      %1949 = vmatpush1.bf16.msra.mxu0 0
      %1950 = vmatprep.subr.bf16.mxu0 0
      %1951 = vmatpush1.bf16.msra.mxu0 0
      %1952 = vmatprep.subr.bf16.mxu0 0
      %1953 = vmatpush1.bf16.msra.mxu0 0
      %1954 = vmatprep.subr.bf16.mxu0 0
      %1955 = vmatpush1.bf16.msra.mxu0 0
      %1956 = vmatprep.subr.bf16.mxu0 0
      %1957 = vmatpush1.bf16.msra.mxu0 0
      %1958 = vmatprep.subr.bf16.mxu0 0
      %1959 = vmatpush1.bf16.msra.mxu0 0
      %1960 = vmatprep.subr.bf16.mxu0 0
      %1961 = vmatpush1.bf16.msra.mxu0 0
      %1962 = vmatprep.subr.bf16.mxu0 0
      %1963 = vmatpush1.bf16.msra.mxu0 0
      %1964 = vmatprep.subr.bf16.mxu0 0
      %1965 = vmatpush1.bf16.msra.mxu0 0
      %1966 = vmatprep.subr.bf16.mxu0 0
      %1967 = vmatpush1.bf16.msra.mxu0 0
      %1968 = vmatprep.subr.bf16.mxu0 0
      %1969 = vmatpush1.bf16.msra.mxu0 0
      %1970 = vmatprep.subr.bf16.mxu0 0
      %1971 = vmatpush1.bf16.msra.mxu0 0
      %1972 = vmatprep.mubr.bf16.mxu0 0
      %1973 = vmatmul.mubr.bf16.gmra.mrb[0].mxu0 %v1938
      %v1974 = vpop.f32.mrb[0].mxu0
      %v1975 = vadd.f32 %v1923, %v1974
      %v1976 = vpop.f32.mrb[0].mxu0
      %v1977 = vpop.f32.mrb[0].mxu0
      %v1978 = vpop.f32.mrb[0].mxu0
      %1979 = vdwg.mxu0
      %1980 = vxpose.xlu0.b32.start [1/16] %v1975, 128
      %1981 = vxpose.xlu0.b32.cont [2/16] 0.0, 128
      %1982 = vxpose.xlu0.b32.cont [3/16] 0.0, 128
      %1983 = vxpose.xlu0.b32.cont [4/16] 0.0, 128
      %1984 = vxpose.xlu0.b32.cont [5/16] 0.0, 128
      %1985 = vxpose.xlu0.b32.cont [6/16] 0.0, 128
      %1986 = vxpose.xlu0.b32.cont [7/16] 0.0, 128
      %1987 = vxpose.xlu0.b32.cont [8/16] 0.0, 128
      %1988 = vxpose.xlu0.b32.cont [9/16] 0.0, 128
      %1989 = vxpose.xlu0.b32.cont [10/16] 0.0, 128
      %1990 = vxpose.xlu0.b32.cont [11/16] 0.0, 128
      %1991 = vxpose.xlu0.b32.cont [12/16] 0.0, 128
      %1992 = vxpose.xlu0.b32.cont [13/16] 0.0, 128
      %1993 = vxpose.xlu0.b32.cont [14/16] 0.0, 128
      %1994 = vxpose.xlu0.b32.cont [15/16] 0.0, 128
      %1995 = vxpose.xlu0.b32.end [16/16] 0.0, 128
      %v1996 = vpop.trf.xlu0
      %v1997 = vpop.trf.xlu0
      %v1998 = vpop.trf.xlu0
      %v1999 = vpop.trf.xlu0
      %v2000 = vpop.trf.xlu0
      %v2001 = vpop.trf.xlu0
      %v2002 = vpop.trf.xlu0
      %v2003 = vpop.trf.xlu0
      %v2004 = vpop.trf.xlu0
      %v2005 = vpop.trf.xlu0
      %v2006 = vpop.trf.xlu0
      %v2007 = vpop.trf.xlu0
      %v2008 = vpop.trf.xlu0
      %v2009 = vpop.trf.xlu0
      %v2010 = vpop.trf.xlu0
      %v2011 = vpop.trf.xlu0
      %2012 = vxpose.xlu0.b32.start [1/16] %v1996, 128
      %2013 = vxpose.xlu0.b32.cont [2/16] 0.0, 128
      %2014 = vxpose.xlu0.b32.cont [3/16] 0.0, 128
      %2015 = vxpose.xlu0.b32.cont [4/16] 0.0, 128
      %2016 = vxpose.xlu0.b32.cont [5/16] 0.0, 128
      %2017 = vxpose.xlu0.b32.cont [6/16] 0.0, 128
      %2018 = vxpose.xlu0.b32.cont [7/16] 0.0, 128
      %2019 = vxpose.xlu0.b32.cont [8/16] 0.0, 128
      %2020 = vxpose.xlu0.b32.cont [9/16] 0.0, 128
      %2021 = vxpose.xlu0.b32.cont [10/16] 0.0, 128
      %2022 = vxpose.xlu0.b32.cont [11/16] 0.0, 128
      %2023 = vxpose.xlu0.b32.cont [12/16] 0.0, 128
      %2024 = vxpose.xlu0.b32.cont [13/16] 0.0, 128
      %2025 = vxpose.xlu0.b32.cont [14/16] 0.0, 128
      %2026 = vxpose.xlu0.b32.cont [15/16] 0.0, 128
      %2027 = vxpose.xlu0.b32.end [16/16] 0.0, 128
      %v2028 = vpop.trf.xlu0
      %v2029 = vpop.trf.xlu0
      %v2030 = vpop.trf.xlu0
      %v2031 = vpop.trf.xlu0
      %v2032 = vpop.trf.xlu0
      %v2033 = vpop.trf.xlu0
      %v2034 = vpop.trf.xlu0
      %v2035 = vpop.trf.xlu0
      %v2036 = vpop.trf.xlu0
      %v2037 = vpop.trf.xlu0
      %v2038 = vpop.trf.xlu0
      %v2039 = vpop.trf.xlu0
      %v2040 = vpop.trf.xlu0
      %v2041 = vpop.trf.xlu0
      %v2042 = vpop.trf.xlu0
      %v2043 = vpop.trf.xlu0
      %2044 = vxpose.xlu0.b32.start [1/16] %v1997, 128
      %2045 = vxpose.xlu0.b32.cont [2/16] 0.0, 128
      %2046 = vxpose.xlu0.b32.cont [3/16] 0.0, 128
      %2047 = vxpose.xlu0.b32.cont [4/16] 0.0, 128
      %2048 = vxpose.xlu0.b32.cont [5/16] 0.0, 128
      %2049 = vxpose.xlu0.b32.cont [6/16] 0.0, 128
      %2050 = vxpose.xlu0.b32.cont [7/16] 0.0, 128
      %2051 = vxpose.xlu0.b32.cont [8/16] 0.0, 128
      %2052 = vxpose.xlu0.b32.cont [9/16] 0.0, 128
      %2053 = vxpose.xlu0.b32.cont [10/16] 0.0, 128
      %2054 = vxpose.xlu0.b32.cont [11/16] 0.0, 128
      %2055 = vxpose.xlu0.b32.cont [12/16] 0.0, 128
      %2056 = vxpose.xlu0.b32.cont [13/16] 0.0, 128
      %2057 = vxpose.xlu0.b32.cont [14/16] 0.0, 128
      %2058 = vxpose.xlu0.b32.cont [15/16] 0.0, 128
      %2059 = vxpose.xlu0.b32.end [16/16] 0.0, 128
      %v2060 = vpop.trf.xlu0
      %v2061 = vpop.trf.xlu0
      %v2062 = vpop.trf.xlu0
      %v2063 = vpop.trf.xlu0
      %v2064 = vpop.trf.xlu0
      %v2065 = vpop.trf.xlu0
      %v2066 = vpop.trf.xlu0
      %v2067 = vpop.trf.xlu0
      %v2068 = vpop.trf.xlu0
      %v2069 = vpop.trf.xlu0
      %v2070 = vpop.trf.xlu0
      %v2071 = vpop.trf.xlu0
      %v2072 = vpop.trf.xlu0
      %v2073 = vpop.trf.xlu0
      %v2074 = vpop.trf.xlu0
      %v2075 = vpop.trf.xlu0
      %2076 = vxpose.xlu0.b32.start [1/16] %v1998, 128
      %2077 = vxpose.xlu0.b32.cont [2/16] 0.0, 128
      %2078 = vxpose.xlu0.b32.cont [3/16] 0.0, 128
      %2079 = vxpose.xlu0.b32.cont [4/16] 0.0, 128
      %2080 = vxpose.xlu0.b32.cont [5/16] 0.0, 128
      %2081 = vxpose.xlu0.b32.cont [6/16] 0.0, 128
      %2082 = vxpose.xlu0.b32.cont [7/16] 0.0, 128
      %2083 = vxpose.xlu0.b32.cont [8/16] 0.0, 128
      %2084 = vxpose.xlu0.b32.cont [9/16] 0.0, 128
      %2085 = vxpose.xlu0.b32.cont [10/16] 0.0, 128
      %2086 = vxpose.xlu0.b32.cont [11/16] 0.0, 128
      %2087 = vxpose.xlu0.b32.cont [12/16] 0.0, 128
      %2088 = vxpose.xlu0.b32.cont [13/16] 0.0, 128
      %2089 = vxpose.xlu0.b32.cont [14/16] 0.0, 128
      %2090 = vxpose.xlu0.b32.cont [15/16] 0.0, 128
      %2091 = vxpose.xlu0.b32.end [16/16] 0.0, 128
      %v2092 = vpop.trf.xlu0
      %v2093 = vpop.trf.xlu0
      %v2094 = vpop.trf.xlu0
      %v2095 = vpop.trf.xlu0
      %v2096 = vpop.trf.xlu0
      %v2097 = vpop.trf.xlu0
      %v2098 = vpop.trf.xlu0
      %v2099 = vpop.trf.xlu0
      %v2100 = vpop.trf.xlu0
      %v2101 = vpop.trf.xlu0
      %v2102 = vpop.trf.xlu0
      %v2103 = vpop.trf.xlu0
      %v2104 = vpop.trf.xlu0
      %v2105 = vpop.trf.xlu0
      %v2106 = vpop.trf.xlu0
      %v2107 = vpop.trf.xlu0
      %2108 = vxpose.xlu0.b32.start [1/16] %v1999, 128
      %2109 = vxpose.xlu0.b32.cont [2/16] 0.0, 128
      %2110 = vxpose.xlu0.b32.cont [3/16] 0.0, 128
      %2111 = vxpose.xlu0.b32.cont [4/16] 0.0, 128
      %2112 = vxpose.xlu0.b32.cont [5/16] 0.0, 128
      %2113 = vxpose.xlu0.b32.cont [6/16] 0.0, 128
      %2114 = vxpose.xlu0.b32.cont [7/16] 0.0, 128
      %2115 = vxpose.xlu0.b32.cont [8/16] 0.0, 128
      %2116 = vxpose.xlu0.b32.cont [9/16] 0.0, 128
      %2117 = vxpose.xlu0.b32.cont [10/16] 0.0, 128
      %2118 = vxpose.xlu0.b32.cont [11/16] 0.0, 128
      %2119 = vxpose.xlu0.b32.cont [12/16] 0.0, 128
      %2120 = vxpose.xlu0.b32.cont [13/16] 0.0, 128
      %2121 = vxpose.xlu0.b32.cont [14/16] 0.0, 128
      %2122 = vxpose.xlu0.b32.cont [15/16] 0.0, 128
      %2123 = vxpose.xlu0.b32.end [16/16] 0.0, 128
      %v2124 = vpop.trf.xlu0
      %v2125 = vpop.trf.xlu0
      %v2126 = vpop.trf.xlu0
      %v2127 = vpop.trf.xlu0
      %v2128 = vpop.trf.xlu0
      %v2129 = vpop.trf.xlu0
      %v2130 = vpop.trf.xlu0
      %v2131 = vpop.trf.xlu0
      %v2132 = vpop.trf.xlu0
      %v2133 = vpop.trf.xlu0
      %v2134 = vpop.trf.xlu0
      %v2135 = vpop.trf.xlu0
      %v2136 = vpop.trf.xlu0
      %v2137 = vpop.trf.xlu0
      %v2138 = vpop.trf.xlu0
      %v2139 = vpop.trf.xlu0
      %2140 = vxpose.xlu0.b32.start [1/16] %v2004, 128
      %2141 = vxpose.xlu0.b32.cont [2/16] 0.0, 128
      %2142 = vxpose.xlu0.b32.cont [3/16] 0.0, 128
      %2143 = vxpose.xlu0.b32.cont [4/16] 0.0, 128
      %2144 = vxpose.xlu0.b32.cont [5/16] 0.0, 128
      %2145 = vxpose.xlu0.b32.cont [6/16] 0.0, 128
      %2146 = vxpose.xlu0.b32.cont [7/16] 0.0, 128
      %2147 = vxpose.xlu0.b32.cont [8/16] 0.0, 128
      %2148 = vxpose.xlu0.b32.cont [9/16] 0.0, 128
      %2149 = vxpose.xlu0.b32.cont [10/16] 0.0, 128
      %2150 = vxpose.xlu0.b32.cont [11/16] 0.0, 128
      %2151 = vxpose.xlu0.b32.cont [12/16] 0.0, 128
      %2152 = vxpose.xlu0.b32.cont [13/16] 0.0, 128
      %2153 = vxpose.xlu0.b32.cont [14/16] 0.0, 128
      %2154 = vxpose.xlu0.b32.cont [15/16] 0.0, 128
      %2155 = vxpose.xlu0.b32.end [16/16] 0.0, 128
      %v2156 = vpop.trf.xlu0
      %v2157 = vpop.trf.xlu0
      %v2158 = vpop.trf.xlu0
      %v2159 = vpop.trf.xlu0
      %v2160 = vpop.trf.xlu0
      %v2161 = vpop.trf.xlu0
      %v2162 = vpop.trf.xlu0
      %v2163 = vpop.trf.xlu0
      %v2164 = vpop.trf.xlu0
      %v2165 = vpop.trf.xlu0
      %v2166 = vpop.trf.xlu0
      %v2167 = vpop.trf.xlu0
      %v2168 = vpop.trf.xlu0
      %v2169 = vpop.trf.xlu0
      %v2170 = vpop.trf.xlu0
      %v2171 = vpop.trf.xlu0
      %2172 = vxpose.xlu0.b32.start [1/16] %v2005, 128
      %2173 = vxpose.xlu0.b32.cont [2/16] 0.0, 128
      %2174 = vxpose.xlu0.b32.cont [3/16] 0.0, 128
      %2175 = vxpose.xlu0.b32.cont [4/16] 0.0, 128
      %2176 = vxpose.xlu0.b32.cont [5/16] 0.0, 128
      %2177 = vxpose.xlu0.b32.cont [6/16] 0.0, 128
      %2178 = vxpose.xlu0.b32.cont [7/16] 0.0, 128
      %2179 = vxpose.xlu0.b32.cont [8/16] 0.0, 128
      %2180 = vxpose.xlu0.b32.cont [9/16] 0.0, 128
      %2181 = vxpose.xlu0.b32.cont [10/16] 0.0, 128
      %2182 = vxpose.xlu0.b32.cont [11/16] 0.0, 128
      %2183 = vxpose.xlu0.b32.cont [12/16] 0.0, 128
      %2184 = vxpose.xlu0.b32.cont [13/16] 0.0, 128
      %2185 = vxpose.xlu0.b32.cont [14/16] 0.0, 128
      %2186 = vxpose.xlu0.b32.cont [15/16] 0.0, 128
      %2187 = vxpose.xlu0.b32.end [16/16] 0.0, 128
      %v2188 = vpop.trf.xlu0
      %v2189 = vpop.trf.xlu0
      %v2190 = vpop.trf.xlu0
      %v2191 = vpop.trf.xlu0
      %v2192 = vpop.trf.xlu0
      %v2193 = vpop.trf.xlu0
      %v2194 = vpop.trf.xlu0
      %v2195 = vpop.trf.xlu0
      %v2196 = vpop.trf.xlu0
      %v2197 = vpop.trf.xlu0
      %v2198 = vpop.trf.xlu0
      %v2199 = vpop.trf.xlu0
      %v2200 = vpop.trf.xlu0
      %v2201 = vpop.trf.xlu0
      %v2202 = vpop.trf.xlu0
      %v2203 = vpop.trf.xlu0
      %2204 = vxpose.xlu0.b32.start [1/16] %v2006, 128
      %2205 = vxpose.xlu0.b32.cont [2/16] 0.0, 128
      %2206 = vxpose.xlu0.b32.cont [3/16] 0.0, 128
      %2207 = vxpose.xlu0.b32.cont [4/16] 0.0, 128
      %2208 = vxpose.xlu0.b32.cont [5/16] 0.0, 128
      %2209 = vxpose.xlu0.b32.cont [6/16] 0.0, 128
      %2210 = vxpose.xlu0.b32.cont [7/16] 0.0, 128
      %2211 = vxpose.xlu0.b32.cont [8/16] 0.0, 128
      %2212 = vxpose.xlu0.b32.cont [9/16] 0.0, 128
      %2213 = vxpose.xlu0.b32.cont [10/16] 0.0, 128
      %2214 = vxpose.xlu0.b32.cont [11/16] 0.0, 128
      %2215 = vxpose.xlu0.b32.cont [12/16] 0.0, 128
      %2216 = vxpose.xlu0.b32.cont [13/16] 0.0, 128
      %2217 = vxpose.xlu0.b32.cont [14/16] 0.0, 128
      %2218 = vxpose.xlu0.b32.cont [15/16] 0.0, 128
      %2219 = vxpose.xlu0.b32.end [16/16] 0.0, 128
      %v2220 = vpop.trf.xlu0
      %v2221 = vpop.trf.xlu0
      %v2222 = vpop.trf.xlu0
      %v2223 = vpop.trf.xlu0
      %v2224 = vpop.trf.xlu0
      %v2225 = vpop.trf.xlu0
      %v2226 = vpop.trf.xlu0
      %v2227 = vpop.trf.xlu0
      %v2228 = vpop.trf.xlu0
      %v2229 = vpop.trf.xlu0
      %v2230 = vpop.trf.xlu0
      %v2231 = vpop.trf.xlu0
      %v2232 = vpop.trf.xlu0
      %v2233 = vpop.trf.xlu0
      %v2234 = vpop.trf.xlu0
      %v2235 = vpop.trf.xlu0
      %2236 = vxpose.xlu0.b32.start [1/16] %v2007, 128
      %2237 = vxpose.xlu0.b32.cont [2/16] 0.0, 128
      %2238 = vxpose.xlu0.b32.cont [3/16] 0.0, 128
      %2239 = vxpose.xlu0.b32.cont [4/16] 0.0, 128
      %2240 = vxpose.xlu0.b32.cont [5/16] 0.0, 128
      %2241 = vxpose.xlu0.b32.cont [6/16] 0.0, 128
      %2242 = vxpose.xlu0.b32.cont [7/16] 0.0, 128
      %2243 = vxpose.xlu0.b32.cont [8/16] 0.0, 128
      %2244 = vxpose.xlu0.b32.cont [9/16] 0.0, 128
      %2245 = vxpose.xlu0.b32.cont [10/16] 0.0, 128
      %2246 = vxpose.xlu0.b32.cont [11/16] 0.0, 128
      %2247 = vxpose.xlu0.b32.cont [12/16] 0.0, 128
      %2248 = vxpose.xlu0.b32.cont [13/16] 0.0, 128
      %2249 = vxpose.xlu0.b32.cont [14/16] 0.0, 128
      %2250 = vxpose.xlu0.b32.cont [15/16] 0.0, 128
      %2251 = vxpose.xlu0.b32.end [16/16] 0.0, 128
      %v2252 = vpop.trf.xlu0
      %v2253 = vpop.trf.xlu0
      %v2254 = vpop.trf.xlu0
      %v2255 = vpop.trf.xlu0
      %v2256 = vpop.trf.xlu0
      %v2257 = vpop.trf.xlu0
      %v2258 = vpop.trf.xlu0
      %v2259 = vpop.trf.xlu0
      %v2260 = vpop.trf.xlu0
      %v2261 = vpop.trf.xlu0
      %v2262 = vpop.trf.xlu0
      %v2263 = vpop.trf.xlu0
      %v2264 = vpop.trf.xlu0
      %v2265 = vpop.trf.xlu0
      %v2266 = vpop.trf.xlu0
      %v2267 = vpop.trf.xlu0
      %v2268 = vpack.c.bf16 %v2028, %v2028
      %v2269 = vpack.c.bf16 %v2060, %v2060
      %v2270 = vpack.c.bf16 %v2092, %v2092
      %v2271 = vpack.c.bf16 %v2124, %v2124
      %v2272 = vpack.c.bf16 %v2000, %v2000
      %v2273 = vpack.c.bf16 %v2001, %v2001
      %v2274 = vpack.c.bf16 %v2002, %v2002
      %v2275 = vpack.c.bf16 %v2003, %v2003
      %v2277 = vsel %vm1042, %v2268, 0
      %v2280 = vsel %vm1046, %v2272, 0
      %2282 = vmatprep.subr.bf16.mxu0 0
      %2283 = vmatpush1.bf16.msra.mxu0 %v2280
      %2284 = vmatprep.subr.bf16.mxu0 0
      %2285 = vmatpush1.bf16.msra.mxu0 0
      %2286 = vmatprep.subr.bf16.mxu0 0
      %2287 = vmatpush1.bf16.msra.mxu0 0
      %2288 = vmatprep.subr.bf16.mxu0 0
      %2289 = vmatpush1.bf16.msra.mxu0 0
      %2290 = vmatprep.subr.bf16.mxu0 0
      %2291 = vmatpush1.bf16.msra.mxu0 0
      %2292 = vmatprep.subr.bf16.mxu0 0
      %2293 = vmatpush1.bf16.msra.mxu0 0
      %2294 = vmatprep.subr.bf16.mxu0 0
      %2295 = vmatpush1.bf16.msra.mxu0 0
      %2296 = vmatprep.subr.bf16.mxu0 0
      %2297 = vmatpush1.bf16.msra.mxu0 0
      %2298 = vmatprep.subr.bf16.mxu0 0
      %2299 = vmatpush1.bf16.msra.mxu0 0
      %2300 = vmatprep.subr.bf16.mxu0 0
      %2301 = vmatpush1.bf16.msra.mxu0 0
      %2302 = vmatprep.subr.bf16.mxu0 0
      %2303 = vmatpush1.bf16.msra.mxu0 0
      %2304 = vmatprep.subr.bf16.mxu0 0
      %2305 = vmatpush1.bf16.msra.mxu0 0
      %2306 = vmatprep.subr.bf16.mxu0 0
      %2307 = vmatpush1.bf16.msra.mxu0 0
      %2308 = vmatprep.subr.bf16.mxu0 0
      %2309 = vmatpush1.bf16.msra.mxu0 0
      %2310 = vmatprep.subr.bf16.mxu0 0
      %2311 = vmatpush1.bf16.msra.mxu0 0
      %2312 = vmatprep.subr.bf16.mxu0 0
      %2313 = vmatpush1.bf16.msra.mxu0 0
      %2314 = vmatprep.mubr.bf16.mxu0 0
      %2315 = vmatmul.mubr.bf16.gmra.mrb[0].mxu0 %v2277
      %v2316 = vpop.f32.mrb[0].mxu0
      %v2317 = vadd.f32 %v677, %v2316
      %v2318 = vpop.f32.mrb[0].mxu0
      %v2319 = vpop.f32.mrb[0].mxu0
      %v2320 = vpop.f32.mrb[0].mxu0
      %2321 = vdwg.mxu0
      %v2323 = vsel %vm1042, %v2269, 0
      %v2326 = vsel %vm1046, %v2273, 0
      %2328 = vmatprep.subr.bf16.mxu0 0
      %2329 = vmatpush1.bf16.msra.mxu0 %v2326
      %2330 = vmatprep.subr.bf16.mxu0 0
      %2331 = vmatpush1.bf16.msra.mxu0 0
      %2332 = vmatprep.subr.bf16.mxu0 0
      %2333 = vmatpush1.bf16.msra.mxu0 0
      %2334 = vmatprep.subr.bf16.mxu0 0
      %2335 = vmatpush1.bf16.msra.mxu0 0
      %2336 = vmatprep.subr.bf16.mxu0 0
      %2337 = vmatpush1.bf16.msra.mxu0 0
      %2338 = vmatprep.subr.bf16.mxu0 0
      %2339 = vmatpush1.bf16.msra.mxu0 0
      %2340 = vmatprep.subr.bf16.mxu0 0
      %2341 = vmatpush1.bf16.msra.mxu0 0
      %2342 = vmatprep.subr.bf16.mxu0 0
      %2343 = vmatpush1.bf16.msra.mxu0 0
      %2344 = vmatprep.subr.bf16.mxu0 0
      %2345 = vmatpush1.bf16.msra.mxu0 0
      %2346 = vmatprep.subr.bf16.mxu0 0
      %2347 = vmatpush1.bf16.msra.mxu0 0
      %2348 = vmatprep.subr.bf16.mxu0 0
      %2349 = vmatpush1.bf16.msra.mxu0 0
      %2350 = vmatprep.subr.bf16.mxu0 0
      %2351 = vmatpush1.bf16.msra.mxu0 0
      %2352 = vmatprep.subr.bf16.mxu0 0
      %2353 = vmatpush1.bf16.msra.mxu0 0
      %2354 = vmatprep.subr.bf16.mxu0 0
      %2355 = vmatpush1.bf16.msra.mxu0 0
      %2356 = vmatprep.subr.bf16.mxu0 0
      %2357 = vmatpush1.bf16.msra.mxu0 0
      %2358 = vmatprep.subr.bf16.mxu0 0
      %2359 = vmatpush1.bf16.msra.mxu0 0
      %2360 = vmatprep.mubr.bf16.mxu0 0
      %2361 = vmatmul.mubr.bf16.gmra.mrb[0].mxu0 %v2323
      %v2362 = vpop.f32.mrb[0].mxu0
      %v2363 = vadd.f32 %v677, %v2362
      %v2364 = vpop.f32.mrb[0].mxu0
      %v2365 = vpop.f32.mrb[0].mxu0
      %v2366 = vpop.f32.mrb[0].mxu0
      %2367 = vdwg.mxu0
      %v2369 = vsel %vm1042, %v2270, 0
      %v2372 = vsel %vm1046, %v2274, 0
      %2374 = vmatprep.subr.bf16.mxu0 0
      %2375 = vmatpush1.bf16.msra.mxu0 %v2372
      %2376 = vmatprep.subr.bf16.mxu0 0
      %2377 = vmatpush1.bf16.msra.mxu0 0
      %2378 = vmatprep.subr.bf16.mxu0 0
      %2379 = vmatpush1.bf16.msra.mxu0 0
      %2380 = vmatprep.subr.bf16.mxu0 0
      %2381 = vmatpush1.bf16.msra.mxu0 0
      %2382 = vmatprep.subr.bf16.mxu0 0
      %2383 = vmatpush1.bf16.msra.mxu0 0
      %2384 = vmatprep.subr.bf16.mxu0 0
      %2385 = vmatpush1.bf16.msra.mxu0 0
      %2386 = vmatprep.subr.bf16.mxu0 0
      %2387 = vmatpush1.bf16.msra.mxu0 0
      %2388 = vmatprep.subr.bf16.mxu0 0
      %2389 = vmatpush1.bf16.msra.mxu0 0
      %2390 = vmatprep.subr.bf16.mxu0 0
      %2391 = vmatpush1.bf16.msra.mxu0 0
      %2392 = vmatprep.subr.bf16.mxu0 0
      %2393 = vmatpush1.bf16.msra.mxu0 0
      %2394 = vmatprep.subr.bf16.mxu0 0
      %2395 = vmatpush1.bf16.msra.mxu0 0
      %2396 = vmatprep.subr.bf16.mxu0 0
      %2397 = vmatpush1.bf16.msra.mxu0 0
      %2398 = vmatprep.subr.bf16.mxu0 0
      %2399 = vmatpush1.bf16.msra.mxu0 0
      %2400 = vmatprep.subr.bf16.mxu0 0
      %2401 = vmatpush1.bf16.msra.mxu0 0
      %2402 = vmatprep.subr.bf16.mxu0 0
      %2403 = vmatpush1.bf16.msra.mxu0 0
      %2404 = vmatprep.subr.bf16.mxu0 0
      %2405 = vmatpush1.bf16.msra.mxu0 0
      %2406 = vmatprep.mubr.bf16.mxu0 0
      %2407 = vmatmul.mubr.bf16.gmra.mrb[0].mxu0 %v2369
      %v2408 = vpop.f32.mrb[0].mxu0
      %v2409 = vadd.f32 %v677, %v2408
      %v2410 = vpop.f32.mrb[0].mxu0
      %v2411 = vpop.f32.mrb[0].mxu0
      %v2412 = vpop.f32.mrb[0].mxu0
      %2413 = vdwg.mxu0
      %v2415 = vsel %vm1042, %v2271, 0
      %v2418 = vsel %vm1046, %v2275, 0
      %2420 = vmatprep.subr.bf16.mxu0 0
      %2421 = vmatpush1.bf16.msra.mxu0 %v2418
      %2422 = vmatprep.subr.bf16.mxu0 0
      %2423 = vmatpush1.bf16.msra.mxu0 0
      %2424 = vmatprep.subr.bf16.mxu0 0
      %2425 = vmatpush1.bf16.msra.mxu0 0
      %2426 = vmatprep.subr.bf16.mxu0 0
      %2427 = vmatpush1.bf16.msra.mxu0 0
      %2428 = vmatprep.subr.bf16.mxu0 0
      %2429 = vmatpush1.bf16.msra.mxu0 0
      %2430 = vmatprep.subr.bf16.mxu0 0
      %2431 = vmatpush1.bf16.msra.mxu0 0
      %2432 = vmatprep.subr.bf16.mxu0 0
      %2433 = vmatpush1.bf16.msra.mxu0 0
      %2434 = vmatprep.subr.bf16.mxu0 0
      %2435 = vmatpush1.bf16.msra.mxu0 0
      %2436 = vmatprep.subr.bf16.mxu0 0
      %2437 = vmatpush1.bf16.msra.mxu0 0
      %2438 = vmatprep.subr.bf16.mxu0 0
      %2439 = vmatpush1.bf16.msra.mxu0 0
      %2440 = vmatprep.subr.bf16.mxu0 0
      %2441 = vmatpush1.bf16.msra.mxu0 0
      %2442 = vmatprep.subr.bf16.mxu0 0
      %2443 = vmatpush1.bf16.msra.mxu0 0
      %2444 = vmatprep.subr.bf16.mxu0 0
      %2445 = vmatpush1.bf16.msra.mxu0 0
      %2446 = vmatprep.subr.bf16.mxu0 0
      %2447 = vmatpush1.bf16.msra.mxu0 0
      %2448 = vmatprep.subr.bf16.mxu0 0
      %2449 = vmatpush1.bf16.msra.mxu0 0
      %2450 = vmatprep.subr.bf16.mxu0 0
      %2451 = vmatpush1.bf16.msra.mxu0 0
      %2452 = vmatprep.mubr.bf16.mxu0 0
      %2453 = vmatmul.mubr.bf16.gmra.mrb[0].mxu0 %v2415
      %v2454 = vpop.f32.mrb[0].mxu0
      %v2455 = vadd.f32 %v677, %v2454
      %v2456 = vpop.f32.mrb[0].mxu0
      %v2457 = vpop.f32.mrb[0].mxu0
      %v2458 = vpop.f32.mrb[0].mxu0
      %2459 = vdwg.mxu0
      %v2460 = vsel %vm1042, %v2317, -inf
      %2461 = vmax.xlane.f32.xlu0 %v2460
      %v2462 = vpop.xlane.xlu0 %2461
      %v2463 = vsel %vm1042, %v2363, -inf
      %2464 = vmax.xlane.f32.xlu0 %v2463
      %v2465 = vpop.xlane.xlu0 %2464
      %v2466 = vsel %vm1042, %v2409, -inf
      %2467 = vmax.xlane.f32.xlu0 %v2466
      %v2468 = vpop.xlane.xlu0 %2467
      %v2469 = vsel %vm1042, %v2455, -inf
      %2470 = vmax.xlane.f32.xlu0 %v2469
      %v2471 = vpop.xlane.xlu0 %2470
      %v2472 = vsub.f32 %v2317, %v2462
      %v2473 = vsub.f32 %v2363, %v2465
      %v2474 = vsub.f32 %v2409, %v2468
      %v2475 = vsub.f32 %v2455, %v2471
      %v2476 = vmul.f32 %v2472, 1.442695
      %v2477 = vpow.pop %v2476
      %v2478 = vmul.f32 %v2473, 1.442695
      %v2479 = vpow.pop %v2478
      %v2480 = vmul.f32 %v2474, 1.442695
      %v2481 = vpow.pop %v2480
      %v2482 = vmul.f32 %v2475, 1.442695
      %v2483 = vpow.pop %v2482
      %v2484 = vsel %vm1042, %v2477, 0.0
      %2485 = vadd.xlane.f32.xlu0 %v2484
      %v2486 = vpop.xlane.xlu0 %2485
      %v2487 = vsel %vm1042, %v2479, 0.0
      %2488 = vadd.xlane.f32.xlu0 %v2487
      %v2489 = vpop.xlane.xlu0 %2488
      %v2490 = vsel %vm1042, %v2481, 0.0
      %2491 = vadd.xlane.f32.xlu0 %v2490
      %v2492 = vpop.xlane.xlu0 %2491
      %v2493 = vsel %vm1042, %v2483, 0.0
      %2494 = vadd.xlane.f32.xlu0 %v2493
      %v2495 = vpop.xlane.xlu0 %2494
      %v2496 = vrcp.pop %v2486
      %v2497 = vrcp.pop %v2489
      %v2498 = vrcp.pop %v2492
      %v2499 = vrcp.pop %v2495
      %v2500 = vmul.f32 %v2477, %v2496
      %v2501 = vmul.f32 %v2479, %v2497
      %v2502 = vmul.f32 %v2481, %v2498
      %v2503 = vmul.f32 %v2483, %v2499
      %v2504 = vpack.c.bf16 %v2500, %v2500
      %v2505 = vpack.c.bf16 %v2501, %v2501
      %v2506 = vpack.c.bf16 %v2502, %v2502
      %v2507 = vpack.c.bf16 %v2503, %v2503
      %v2508 = vpack.c.bf16 %v2156, %v2156
      %v2509 = vpack.c.bf16 %v2188, %v2188
      %v2510 = vpack.c.bf16 %v2220, %v2220
      %v2511 = vpack.c.bf16 %v2252, %v2252
      %v2513 = vsel %vm1042, %v2504, 0
      %v2516 = vsel %vm1046, %v2508, 0
      %2518 = vmatprep.subr.bf16.mxu0 0
      %2519 = vmatpush1.bf16.msra.mxu0 %v2516
      %2520 = vmatprep.subr.bf16.mxu0 0
      %2521 = vmatpush1.bf16.msra.mxu0 0
      %2522 = vmatprep.subr.bf16.mxu0 0
      %2523 = vmatpush1.bf16.msra.mxu0 0
      %2524 = vmatprep.subr.bf16.mxu0 0
      %2525 = vmatpush1.bf16.msra.mxu0 0
      %2526 = vmatprep.subr.bf16.mxu0 0
      %2527 = vmatpush1.bf16.msra.mxu0 0
      %2528 = vmatprep.subr.bf16.mxu0 0
      %2529 = vmatpush1.bf16.msra.mxu0 0
      %2530 = vmatprep.subr.bf16.mxu0 0
      %2531 = vmatpush1.bf16.msra.mxu0 0
      %2532 = vmatprep.subr.bf16.mxu0 0
      %2533 = vmatpush1.bf16.msra.mxu0 0
      %2534 = vmatprep.subr.bf16.mxu0 0
      %2535 = vmatpush1.bf16.msra.mxu0 0
      %2536 = vmatprep.subr.bf16.mxu0 0
      %2537 = vmatpush1.bf16.msra.mxu0 0
      %2538 = vmatprep.subr.bf16.mxu0 0
      %2539 = vmatpush1.bf16.msra.mxu0 0
      %2540 = vmatprep.subr.bf16.mxu0 0
      %2541 = vmatpush1.bf16.msra.mxu0 0
      %2542 = vmatprep.subr.bf16.mxu0 0
      %2543 = vmatpush1.bf16.msra.mxu0 0
      %2544 = vmatprep.subr.bf16.mxu0 0
      %2545 = vmatpush1.bf16.msra.mxu0 0
      %2546 = vmatprep.subr.bf16.mxu0 0
      %2547 = vmatpush1.bf16.msra.mxu0 0
      %2548 = vmatprep.subr.bf16.mxu0 0
      %2549 = vmatpush1.bf16.msra.mxu0 0
      %2550 = vmatprep.mubr.bf16.mxu0 0
      %2551 = vmatmul.mubr.bf16.gmra.mrb[0].mxu0 %v2513
      %v2552 = vpop.f32.mrb[0].mxu0
      %v2553 = vadd.f32 0.0, %v2552
      %v2554 = vpop.f32.mrb[0].mxu0
      %v2555 = vpop.f32.mrb[0].mxu0
      %v2556 = vpop.f32.mrb[0].mxu0
      %2557 = vdwg.mxu0
      %v2559 = vsel %vm1042, %v2505, 0
      %v2562 = vsel %vm1046, %v2509, 0
      %2564 = vmatprep.subr.bf16.mxu0 0
      %2565 = vmatpush1.bf16.msra.mxu0 %v2562
      %2566 = vmatprep.subr.bf16.mxu0 0
      %2567 = vmatpush1.bf16.msra.mxu0 0
      %2568 = vmatprep.subr.bf16.mxu0 0
      %2569 = vmatpush1.bf16.msra.mxu0 0
      %2570 = vmatprep.subr.bf16.mxu0 0
      %2571 = vmatpush1.bf16.msra.mxu0 0
      %2572 = vmatprep.subr.bf16.mxu0 0
      %2573 = vmatpush1.bf16.msra.mxu0 0
      %2574 = vmatprep.subr.bf16.mxu0 0
      %2575 = vmatpush1.bf16.msra.mxu0 0
      %2576 = vmatprep.subr.bf16.mxu0 0
      %2577 = vmatpush1.bf16.msra.mxu0 0
      %2578 = vmatprep.subr.bf16.mxu0 0
      %2579 = vmatpush1.bf16.msra.mxu0 0
      %2580 = vmatprep.subr.bf16.mxu0 0
      %2581 = vmatpush1.bf16.msra.mxu0 0
      %2582 = vmatprep.subr.bf16.mxu0 0
      %2583 = vmatpush1.bf16.msra.mxu0 0
      %2584 = vmatprep.subr.bf16.mxu0 0
      %2585 = vmatpush1.bf16.msra.mxu0 0
      %2586 = vmatprep.subr.bf16.mxu0 0
      %2587 = vmatpush1.bf16.msra.mxu0 0
      %2588 = vmatprep.subr.bf16.mxu0 0
      %2589 = vmatpush1.bf16.msra.mxu0 0
      %2590 = vmatprep.subr.bf16.mxu0 0
      %2591 = vmatpush1.bf16.msra.mxu0 0
      %2592 = vmatprep.subr.bf16.mxu0 0
      %2593 = vmatpush1.bf16.msra.mxu0 0
      %2594 = vmatprep.subr.bf16.mxu0 0
      %2595 = vmatpush1.bf16.msra.mxu0 0
      %2596 = vmatprep.mubr.bf16.mxu0 0
      %2597 = vmatmul.mubr.bf16.gmra.mrb[0].mxu0 %v2559
      %v2598 = vpop.f32.mrb[0].mxu0
      %v2599 = vadd.f32 0.0, %v2598
      %v2600 = vpop.f32.mrb[0].mxu0
      %v2601 = vpop.f32.mrb[0].mxu0
      %v2602 = vpop.f32.mrb[0].mxu0
      %2603 = vdwg.mxu0
      %v2605 = vsel %vm1042, %v2506, 0
      %v2608 = vsel %vm1046, %v2510, 0
      %2610 = vmatprep.subr.bf16.mxu0 0
      %2611 = vmatpush1.bf16.msra.mxu0 %v2608
      %2612 = vmatprep.subr.bf16.mxu0 0
      %2613 = vmatpush1.bf16.msra.mxu0 0
      %2614 = vmatprep.subr.bf16.mxu0 0
      %2615 = vmatpush1.bf16.msra.mxu0 0
      %2616 = vmatprep.subr.bf16.mxu0 0
      %2617 = vmatpush1.bf16.msra.mxu0 0
      %2618 = vmatprep.subr.bf16.mxu0 0
      %2619 = vmatpush1.bf16.msra.mxu0 0
      %2620 = vmatprep.subr.bf16.mxu0 0
      %2621 = vmatpush1.bf16.msra.mxu0 0
      %2622 = vmatprep.subr.bf16.mxu0 0
      %2623 = vmatpush1.bf16.msra.mxu0 0
      %2624 = vmatprep.subr.bf16.mxu0 0
      %2625 = vmatpush1.bf16.msra.mxu0 0
      %2626 = vmatprep.subr.bf16.mxu0 0
      %2627 = vmatpush1.bf16.msra.mxu0 0
      %2628 = vmatprep.subr.bf16.mxu0 0
      %2629 = vmatpush1.bf16.msra.mxu0 0
      %2630 = vmatprep.subr.bf16.mxu0 0
      %2631 = vmatpush1.bf16.msra.mxu0 0
      %2632 = vmatprep.subr.bf16.mxu0 0
      %2633 = vmatpush1.bf16.msra.mxu0 0
      %2634 = vmatprep.subr.bf16.mxu0 0
      %2635 = vmatpush1.bf16.msra.mxu0 0
      %2636 = vmatprep.subr.bf16.mxu0 0
      %2637 = vmatpush1.bf16.msra.mxu0 0
      %2638 = vmatprep.subr.bf16.mxu0 0
      %2639 = vmatpush1.bf16.msra.mxu0 0
      %2640 = vmatprep.subr.bf16.mxu0 0
      %2641 = vmatpush1.bf16.msra.mxu0 0
      %2642 = vmatprep.mubr.bf16.mxu0 0
      %2643 = vmatmul.mubr.bf16.gmra.mrb[0].mxu0 %v2605
      %v2644 = vpop.f32.mrb[0].mxu0
      %v2645 = vadd.f32 0.0, %v2644
      %v2646 = vpop.f32.mrb[0].mxu0
      %v2647 = vpop.f32.mrb[0].mxu0
      %v2648 = vpop.f32.mrb[0].mxu0
      %2649 = vdwg.mxu0
      %v2651 = vsel %vm1042, %v2507, 0
      %v2654 = vsel %vm1046, %v2511, 0
      %2656 = vmatprep.subr.bf16.mxu0 0
      %2657 = vmatpush1.bf16.msra.mxu0 %v2654
      %2658 = vmatprep.subr.bf16.mxu0 0
      %2659 = vmatpush1.bf16.msra.mxu0 0
      %2660 = vmatprep.subr.bf16.mxu0 0
      %2661 = vmatpush1.bf16.msra.mxu0 0
      %2662 = vmatprep.subr.bf16.mxu0 0
      %2663 = vmatpush1.bf16.msra.mxu0 0
      %2664 = vmatprep.subr.bf16.mxu0 0
      %2665 = vmatpush1.bf16.msra.mxu0 0
      %2666 = vmatprep.subr.bf16.mxu0 0
      %2667 = vmatpush1.bf16.msra.mxu0 0
      %2668 = vmatprep.subr.bf16.mxu0 0
      %2669 = vmatpush1.bf16.msra.mxu0 0
      %2670 = vmatprep.subr.bf16.mxu0 0
      %2671 = vmatpush1.bf16.msra.mxu0 0
      %2672 = vmatprep.subr.bf16.mxu0 0
      %2673 = vmatpush1.bf16.msra.mxu0 0
      %2674 = vmatprep.subr.bf16.mxu0 0
      %2675 = vmatpush1.bf16.msra.mxu0 0
      %2676 = vmatprep.subr.bf16.mxu0 0
      %2677 = vmatpush1.bf16.msra.mxu0 0
      %2678 = vmatprep.subr.bf16.mxu0 0
      %2679 = vmatpush1.bf16.msra.mxu0 0
      %2680 = vmatprep.subr.bf16.mxu0 0
      %2681 = vmatpush1.bf16.msra.mxu0 0
      %2682 = vmatprep.subr.bf16.mxu0 0
      %2683 = vmatpush1.bf16.msra.mxu0 0
      %2684 = vmatprep.subr.bf16.mxu0 0
      %2685 = vmatpush1.bf16.msra.mxu0 0
      %2686 = vmatprep.subr.bf16.mxu0 0
      %2687 = vmatpush1.bf16.msra.mxu0 0
      %2688 = vmatprep.mubr.bf16.mxu0 0
      %2689 = vmatmul.mubr.bf16.gmra.mrb[0].mxu0 %v2651
      %v2690 = vpop.f32.mrb[0].mxu0
      %v2691 = vadd.f32 0.0, %v2690
      %v2692 = vpop.f32.mrb[0].mxu0
      %v2693 = vpop.f32.mrb[0].mxu0
      %v2694 = vpop.f32.mrb[0].mxu0
      %2695 = vdwg.mxu0
      %2696 = vxpose.xlu0.b32.start [1/16] %v2553, 128
      %2697 = vxpose.xlu0.b32.cont [2/16] 0.0, 128
      %2698 = vxpose.xlu0.b32.cont [3/16] 0.0, 128
      %2699 = vxpose.xlu0.b32.cont [4/16] 0.0, 128
      %2700 = vxpose.xlu0.b32.cont [5/16] 0.0, 128
      %2701 = vxpose.xlu0.b32.cont [6/16] 0.0, 128
      %2702 = vxpose.xlu0.b32.cont [7/16] 0.0, 128
      %2703 = vxpose.xlu0.b32.cont [8/16] 0.0, 128
      %2704 = vxpose.xlu0.b32.cont [9/16] 0.0, 128
      %2705 = vxpose.xlu0.b32.cont [10/16] 0.0, 128
      %2706 = vxpose.xlu0.b32.cont [11/16] 0.0, 128
      %2707 = vxpose.xlu0.b32.cont [12/16] 0.0, 128
      %2708 = vxpose.xlu0.b32.cont [13/16] 0.0, 128
      %2709 = vxpose.xlu0.b32.cont [14/16] 0.0, 128
      %2710 = vxpose.xlu0.b32.cont [15/16] 0.0, 128
      %2711 = vxpose.xlu0.b32.end [16/16] 0.0, 128
      %v2712 = vpop.trf.xlu0
      %v2713 = vpop.trf.xlu0
      %v2714 = vpop.trf.xlu0
      %v2715 = vpop.trf.xlu0
      %v2716 = vpop.trf.xlu0
      %v2717 = vpop.trf.xlu0
      %v2718 = vpop.trf.xlu0
      %v2719 = vpop.trf.xlu0
      %v2720 = vpop.trf.xlu0
      %v2721 = vpop.trf.xlu0
      %v2722 = vpop.trf.xlu0
      %v2723 = vpop.trf.xlu0
      %v2724 = vpop.trf.xlu0
      %v2725 = vpop.trf.xlu0
      %v2726 = vpop.trf.xlu0
      %v2727 = vpop.trf.xlu0
      %2728 = vxpose.xlu0.b32.start [1/16] %v2599, 128
      %2729 = vxpose.xlu0.b32.cont [2/16] 0.0, 128
      %2730 = vxpose.xlu0.b32.cont [3/16] 0.0, 128
      %2731 = vxpose.xlu0.b32.cont [4/16] 0.0, 128
      %2732 = vxpose.xlu0.b32.cont [5/16] 0.0, 128
      %2733 = vxpose.xlu0.b32.cont [6/16] 0.0, 128
      %2734 = vxpose.xlu0.b32.cont [7/16] 0.0, 128
      %2735 = vxpose.xlu0.b32.cont [8/16] 0.0, 128
      %2736 = vxpose.xlu0.b32.cont [9/16] 0.0, 128
      %2737 = vxpose.xlu0.b32.cont [10/16] 0.0, 128
      %2738 = vxpose.xlu0.b32.cont [11/16] 0.0, 128
      %2739 = vxpose.xlu0.b32.cont [12/16] 0.0, 128
      %2740 = vxpose.xlu0.b32.cont [13/16] 0.0, 128
      %2741 = vxpose.xlu0.b32.cont [14/16] 0.0, 128
      %2742 = vxpose.xlu0.b32.cont [15/16] 0.0, 128
      %2743 = vxpose.xlu0.b32.end [16/16] 0.0, 128
      %v2744 = vpop.trf.xlu0
      %v2745 = vpop.trf.xlu0
      %v2746 = vpop.trf.xlu0
      %v2747 = vpop.trf.xlu0
      %v2748 = vpop.trf.xlu0
      %v2749 = vpop.trf.xlu0
      %v2750 = vpop.trf.xlu0
      %v2751 = vpop.trf.xlu0
      %v2752 = vpop.trf.xlu0
      %v2753 = vpop.trf.xlu0
      %v2754 = vpop.trf.xlu0
      %v2755 = vpop.trf.xlu0
      %v2756 = vpop.trf.xlu0
      %v2757 = vpop.trf.xlu0
      %v2758 = vpop.trf.xlu0
      %v2759 = vpop.trf.xlu0
      %2760 = vxpose.xlu0.b32.start [1/16] %v2645, 128
      %2761 = vxpose.xlu0.b32.cont [2/16] 0.0, 128
      %2762 = vxpose.xlu0.b32.cont [3/16] 0.0, 128
      %2763 = vxpose.xlu0.b32.cont [4/16] 0.0, 128
      %2764 = vxpose.xlu0.b32.cont [5/16] 0.0, 128
      %2765 = vxpose.xlu0.b32.cont [6/16] 0.0, 128
      %2766 = vxpose.xlu0.b32.cont [7/16] 0.0, 128
      %2767 = vxpose.xlu0.b32.cont [8/16] 0.0, 128
      %2768 = vxpose.xlu0.b32.cont [9/16] 0.0, 128
      %2769 = vxpose.xlu0.b32.cont [10/16] 0.0, 128
      %2770 = vxpose.xlu0.b32.cont [11/16] 0.0, 128
      %2771 = vxpose.xlu0.b32.cont [12/16] 0.0, 128
      %2772 = vxpose.xlu0.b32.cont [13/16] 0.0, 128
      %2773 = vxpose.xlu0.b32.cont [14/16] 0.0, 128
      %2774 = vxpose.xlu0.b32.cont [15/16] 0.0, 128
      %2775 = vxpose.xlu0.b32.end [16/16] 0.0, 128
      %v2776 = vpop.trf.xlu0
      %v2777 = vpop.trf.xlu0
      %v2778 = vpop.trf.xlu0
      %v2779 = vpop.trf.xlu0
      %v2780 = vpop.trf.xlu0
      %v2781 = vpop.trf.xlu0
      %v2782 = vpop.trf.xlu0
      %v2783 = vpop.trf.xlu0
      %v2784 = vpop.trf.xlu0
      %v2785 = vpop.trf.xlu0
      %v2786 = vpop.trf.xlu0
      %v2787 = vpop.trf.xlu0
      %v2788 = vpop.trf.xlu0
      %v2789 = vpop.trf.xlu0
      %v2790 = vpop.trf.xlu0
      %v2791 = vpop.trf.xlu0
      %2792 = vxpose.xlu0.b32.start [1/16] %v2691, 128
      %2793 = vxpose.xlu0.b32.cont [2/16] 0.0, 128
      %2794 = vxpose.xlu0.b32.cont [3/16] 0.0, 128
      %2795 = vxpose.xlu0.b32.cont [4/16] 0.0, 128
      %2796 = vxpose.xlu0.b32.cont [5/16] 0.0, 128
      %2797 = vxpose.xlu0.b32.cont [6/16] 0.0, 128
      %2798 = vxpose.xlu0.b32.cont [7/16] 0.0, 128
      %2799 = vxpose.xlu0.b32.cont [8/16] 0.0, 128
      %2800 = vxpose.xlu0.b32.cont [9/16] 0.0, 128
      %2801 = vxpose.xlu0.b32.cont [10/16] 0.0, 128
      %2802 = vxpose.xlu0.b32.cont [11/16] 0.0, 128
      %2803 = vxpose.xlu0.b32.cont [12/16] 0.0, 128
      %2804 = vxpose.xlu0.b32.cont [13/16] 0.0, 128
      %2805 = vxpose.xlu0.b32.cont [14/16] 0.0, 128
      %2806 = vxpose.xlu0.b32.cont [15/16] 0.0, 128
      %2807 = vxpose.xlu0.b32.end [16/16] 0.0, 128
      %v2808 = vpop.trf.xlu0
      %v2809 = vpop.trf.xlu0
      %v2810 = vpop.trf.xlu0
      %v2811 = vpop.trf.xlu0
      %v2812 = vpop.trf.xlu0
      %v2813 = vpop.trf.xlu0
      %v2814 = vpop.trf.xlu0
      %v2815 = vpop.trf.xlu0
      %v2816 = vpop.trf.xlu0
      %v2817 = vpop.trf.xlu0
      %v2818 = vpop.trf.xlu0
      %v2819 = vpop.trf.xlu0
      %v2820 = vpop.trf.xlu0
      %v2821 = vpop.trf.xlu0
      %v2822 = vpop.trf.xlu0
      %v2823 = vpop.trf.xlu0
      %2824 = vxpose.xlu0.b32.start [1/16] %v2712, 128
      %2825 = vxpose.xlu0.b32.cont [2/16] %v2744, 128
      %2826 = vxpose.xlu0.b32.cont [3/16] %v2776, 128
      %2827 = vxpose.xlu0.b32.cont [4/16] %v2808, 128
      %2828 = vxpose.xlu0.b32.cont [5/16] 0.0, 128
      %2829 = vxpose.xlu0.b32.cont [6/16] 0.0, 128
      %2830 = vxpose.xlu0.b32.cont [7/16] 0.0, 128
      %2831 = vxpose.xlu0.b32.cont [8/16] 0.0, 128
      %2832 = vxpose.xlu0.b32.cont [9/16] 0.0, 128
      %2833 = vxpose.xlu0.b32.cont [10/16] 0.0, 128
      %2834 = vxpose.xlu0.b32.cont [11/16] 0.0, 128
      %2835 = vxpose.xlu0.b32.cont [12/16] 0.0, 128
      %2836 = vxpose.xlu0.b32.cont [13/16] 0.0, 128
      %2837 = vxpose.xlu0.b32.cont [14/16] 0.0, 128
      %2838 = vxpose.xlu0.b32.cont [15/16] 0.0, 128
      %2839 = vxpose.xlu0.b32.end [16/16] 0.0, 128
      %v2840 = vpop.trf.xlu0
      %v2841 = vpop.trf.xlu0
      %v2842 = vpop.trf.xlu0
      %v2843 = vpop.trf.xlu0
      %v2844 = vpop.trf.xlu0
      %v2845 = vpop.trf.xlu0
      %v2846 = vpop.trf.xlu0
      %v2847 = vpop.trf.xlu0
      %v2848 = vpop.trf.xlu0
      %v2849 = vpop.trf.xlu0
      %v2850 = vpop.trf.xlu0
      %v2851 = vpop.trf.xlu0
      %v2852 = vpop.trf.xlu0
      %v2853 = vpop.trf.xlu0
      %v2854 = vpop.trf.xlu0
      %v2855 = vpop.trf.xlu0
      %s2856 = scalar_lea.vmem %s6, 16
      %v2857 = vld [vmem:[%s2856] sm:$0xf]
      %v2858 = vld [vmem:[%s2856 + $0x4] sm:$0xf]
      %v2859 = vld [vmem:[%s2856 + $0x8] sm:$0xf]
      %v2860 = vld [vmem:[%s2856 + $0xc] sm:$0xf]
      %s2861 = scalar_lea.vmem %s7, 1
      %v2862 = vld [vmem:[%s2861] sm:$0x1]
      %v2863 = vpack.c.bf16 %v2840, %v2840
      %v2865 = vlaneseq
      %v2866 = vshrl.u32 %v2865, 7
      %v2867 = vsub.s32 0, %v2866
      %v2868 = vrot.slane %v2862, %v2867
      %v2874 = vunpack.c.l.b16 %v2857
      %v2875 = vunpack.c.l.b16 %v2858
      %v2876 = vunpack.c.l.b16 %v2859
      %v2877 = vunpack.c.l.b16 %v2860
      %v2878 = vpack.c.b16 %v2875, %v2874
      %v2879 = vpack.c.b16 %v2877, %v2876
      %v2883 = vsel %vm643, %v2863, 0
      %2885 = vmatprep.subr.bf16.mxu0 0
      %2886 = vmatpush1.bf16.msra.mxu0 %v2878
      %2887 = vmatprep.subr.bf16.mxu0 0
      %2888 = vmatpush1.bf16.msra.mxu0 %v2879
      %2889 = vmatprep.subr.bf16.mxu0 0
      %2890 = vmatpush1.bf16.msra.mxu0 0
      %2891 = vmatprep.subr.bf16.mxu0 0
      %2892 = vmatpush1.bf16.msra.mxu0 0
      %2893 = vmatprep.subr.bf16.mxu0 0
      %2894 = vmatpush1.bf16.msra.mxu0 0
      %2895 = vmatprep.subr.bf16.mxu0 0
      %2896 = vmatpush1.bf16.msra.mxu0 0
      %2897 = vmatprep.subr.bf16.mxu0 0
      %2898 = vmatpush1.bf16.msra.mxu0 0
      %2899 = vmatprep.subr.bf16.mxu0 0
      %2900 = vmatpush1.bf16.msra.mxu0 0
      %2901 = vmatprep.subr.bf16.mxu0 0
      %2902 = vmatpush1.bf16.msra.mxu0 0
      %2903 = vmatprep.subr.bf16.mxu0 0
      %2904 = vmatpush1.bf16.msra.mxu0 0
      %2905 = vmatprep.subr.bf16.mxu0 0
      %2906 = vmatpush1.bf16.msra.mxu0 0
      %2907 = vmatprep.subr.bf16.mxu0 0
      %2908 = vmatpush1.bf16.msra.mxu0 0
      %2909 = vmatprep.subr.bf16.mxu0 0
      %2910 = vmatpush1.bf16.msra.mxu0 0
      %2911 = vmatprep.subr.bf16.mxu0 0
      %2912 = vmatpush1.bf16.msra.mxu0 0
      %2913 = vmatprep.subr.bf16.mxu0 0
      %2914 = vmatpush1.bf16.msra.mxu0 0
      %2915 = vmatprep.subr.bf16.mxu0 0
      %2916 = vmatpush1.bf16.msra.mxu0 0
      %2917 = vmatprep.mubr.bf16.mxu0 0
      %2918 = vmatmul.mubr.bf16.gmra.mrb[0].mxu0 %v2883
      %v2919 = vpop.f32.mrb[0].mxu0
      %v2920 = vadd.f32 %v2868, %v2919
      %v2921 = vpop.f32.mrb[0].mxu0
      %v2922 = vpop.f32.mrb[0].mxu0
      %v2923 = vpop.f32.mrb[0].mxu0
      %2924 = vdwg.mxu0
      %v2925 = vadd.f32 %v2920, %v1910
      %s2926 = scalar_lea.vmem %s8, 1
      %v2927 = vld [vmem:[%s2926] sm:$0x1]
      %s2928 = scalar_lea.vmem %s9, 1
      %v2929 = vld [vmem:[%s2928] sm:$0x1]
      %v2930 = vsel %vm643, %v2925, 0.0
      %2931 = vadd.xlane.f32.xlu0 %v2930
      %v2932 = vpop.xlane.xlu0 %2931
      %v2933 = vmul.f32 %v2932, %v647
      %v2934 = vsub.f32 %v2925, %v2933
      %v2935 = vmul.f32 %v2934, %v2934
      %v2936 = vsel %vm643, %v2935, 0.0
      %2937 = vadd.xlane.f32.xlu0 %v2936
      %v2938 = vpop.xlane.xlu0 %2937
      %v2939 = vmul.f32 %v2938, %v647
      %v2940 = vadd.f32 %v2939, 1e-12
      %v2941 = vrsqrt.pop %v2940
      %v2942 = vmul.f32 %v2934, %v2941
      %v2944 = vlaneseq
      %v2945 = vshrl.u32 %v2944, 7
      %v2946 = vsub.s32 0, %v2945
      %v2947 = vrot.slane %v2927, %v2946
      %v2949 = vmul.f32 %v2942, %v2947
      %v2951 = vlaneseq
      %v2952 = vshrl.u32 %v2951, 7
      %v2953 = vsub.s32 0, %v2952
      %v2954 = vrot.slane %v2929, %v2953
      %v2956 = vadd.f32 %v2949, %v2954
      %s2957 = scalar_lea.vmem %s10, 16
      %v2958 = vld [vmem:[%s2957] sm:$0xf]
      %v2959 = vld [vmem:[%s2957 + $0x4] sm:$0xf]
      %v2960 = vld [vmem:[%s2957 + $0x8] sm:$0xf]
      %v2961 = vld [vmem:[%s2957 + $0xc] sm:$0xf]
      %s2962 = scalar_lea.vmem %s11, 1
      %v2963 = vld [vmem:[%s2962] sm:$0x1]
      %v2964 = vpack.c.bf16 %v2956, %v2956
      %v2966 = vlaneseq
      %v2967 = vshrl.u32 %v2966, 7
      %v2968 = vsub.s32 0, %v2967
      %v2969 = vrot.slane %v2963, %v2968
      %v2975 = vunpack.c.l.b16 %v2958
      %v2976 = vunpack.c.l.b16 %v2959
      %v2977 = vunpack.c.l.b16 %v2960
      %v2978 = vunpack.c.l.b16 %v2961
      %v2979 = vpack.c.b16 %v2976, %v2975
      %v2980 = vpack.c.b16 %v2978, %v2977
      %v2984 = vsel %vm643, %v2964, 0
      %2986 = vmatprep.subr.bf16.mxu0 0
      %2987 = vmatpush1.bf16.msra.mxu0 %v2979
      %2988 = vmatprep.subr.bf16.mxu0 0
      %2989 = vmatpush1.bf16.msra.mxu0 %v2980
      %2990 = vmatprep.subr.bf16.mxu0 0
      %2991 = vmatpush1.bf16.msra.mxu0 0
      %2992 = vmatprep.subr.bf16.mxu0 0
      %2993 = vmatpush1.bf16.msra.mxu0 0
      %2994 = vmatprep.subr.bf16.mxu0 0
      %2995 = vmatpush1.bf16.msra.mxu0 0
      %2996 = vmatprep.subr.bf16.mxu0 0
      %2997 = vmatpush1.bf16.msra.mxu0 0
      %2998 = vmatprep.subr.bf16.mxu0 0
      %2999 = vmatpush1.bf16.msra.mxu0 0
      %3000 = vmatprep.subr.bf16.mxu0 0
      %3001 = vmatpush1.bf16.msra.mxu0 0
      %3002 = vmatprep.subr.bf16.mxu0 0
      %3003 = vmatpush1.bf16.msra.mxu0 0
      %3004 = vmatprep.subr.bf16.mxu0 0
      %3005 = vmatpush1.bf16.msra.mxu0 0
      %3006 = vmatprep.subr.bf16.mxu0 0
      %3007 = vmatpush1.bf16.msra.mxu0 0
      %3008 = vmatprep.subr.bf16.mxu0 0
      %3009 = vmatpush1.bf16.msra.mxu0 0
      %3010 = vmatprep.subr.bf16.mxu0 0
      %3011 = vmatpush1.bf16.msra.mxu0 0
      %3012 = vmatprep.subr.bf16.mxu0 0
      %3013 = vmatpush1.bf16.msra.mxu0 0
      %3014 = vmatprep.subr.bf16.mxu0 0
      %3015 = vmatpush1.bf16.msra.mxu0 0
      %3016 = vmatprep.subr.bf16.mxu0 0
      %3017 = vmatpush1.bf16.msra.mxu0 0
      %3018 = vmatprep.mubr.bf16.mxu0 0
      %3019 = vmatmul.mubr.bf16.gmra.mrb[0].mxu0 %v2984
      %v3020 = vpop.f32.mrb[0].mxu0
      %v3021 = vadd.f32 %v2969, %v3020
      %v3022 = vpop.f32.mrb[0].mxu0
      %v3023 = vpop.f32.mrb[0].mxu0
      %v3024 = vpop.f32.mrb[0].mxu0
      %3025 = vdwg.mxu0
      %v3026 = vmul.f32 %v3021, 0.5
      %v3027 = vmul.f32 %v3021, 0.044715
      %v3028 = vmul.f32 %v3027, %v3021
      %v3029 = vmul.f32 %v3028, %v3021
      %v3030 = vadd.f32 %v3021, %v3029
      %v3031 = vmul.f32 %v3030, 0.7978846
      %v3032 = vtanh.pop %v3031
      %v3033 = vadd.f32 %v3032, 1.0
      %v3034 = vmul.f32 %v3026, %v3033
      %s3035 = scalar_lea.vmem %s12, 32
      %v3036 = vld [vmem:[%s3035] sm:$0xf]
      %v3037 = vld [vmem:[%s3035 + $0x4] sm:$0xf]
      %v3038 = vld [vmem:[%s3035 + $0x8] sm:$0xf]
      %v3039 = vld [vmem:[%s3035 + $0xc] sm:$0xf]
      %v3040 = vld [vmem:[%s3035 + $0x10] sm:$0xf]
      %v3041 = vld [vmem:[%s3035 + $0x14] sm:$0xf]
      %v3042 = vld [vmem:[%s3035 + $0x18] sm:$0xf]
      %v3043 = vld [vmem:[%s3035 + $0x1c] sm:$0xf]
      %s3044 = scalar_lea.vmem %s13, 1
      %v3045 = vld [vmem:[%s3044] sm:$0x1]
      %v3046 = vpack.c.bf16 %v3034, %v3034
      %v3048 = vlaneseq
      %v3049 = vshrl.u32 %v3048, 7
      %v3050 = vsub.s32 0, %v3049
      %v3051 = vrot.slane %v3045, %v3050
      %v3061 = vunpack.c.l.b16 %v3036
      %v3062 = vunpack.c.l.b16 %v3037
      %v3063 = vunpack.c.l.b16 %v3038
      %v3064 = vunpack.c.l.b16 %v3039
      %v3065 = vunpack.c.l.b16 %v3040
      %v3066 = vunpack.c.l.b16 %v3041
      %v3067 = vunpack.c.l.b16 %v3042
      %v3068 = vunpack.c.l.b16 %v3043
      %v3069 = vpack.c.b16 %v3062, %v3061
      %v3070 = vpack.c.b16 %v3064, %v3063
      %v3071 = vpack.c.b16 %v3066, %v3065
      %v3072 = vpack.c.b16 %v3068, %v3067
      %v3078 = vsel %vm1837, %v3046, 0
      %3080 = vmatprep.subr.bf16.mxu0 0
      %3081 = vmatpush1.bf16.msra.mxu0 %v3069
      %3082 = vmatprep.subr.bf16.mxu0 0
      %3083 = vmatpush1.bf16.msra.mxu0 %v3070
      %3084 = vmatprep.subr.bf16.mxu0 0
      %3085 = vmatpush1.bf16.msra.mxu0 %v3071
      %3086 = vmatprep.subr.bf16.mxu0 0
      %3087 = vmatpush1.bf16.msra.mxu0 %v3072
      %3088 = vmatprep.subr.bf16.mxu0 0
      %3089 = vmatpush1.bf16.msra.mxu0 0
      %3090 = vmatprep.subr.bf16.mxu0 0
      %3091 = vmatpush1.bf16.msra.mxu0 0
      %3092 = vmatprep.subr.bf16.mxu0 0
      %3093 = vmatpush1.bf16.msra.mxu0 0
      %3094 = vmatprep.subr.bf16.mxu0 0
      %3095 = vmatpush1.bf16.msra.mxu0 0
      %3096 = vmatprep.subr.bf16.mxu0 0
      %3097 = vmatpush1.bf16.msra.mxu0 0
      %3098 = vmatprep.subr.bf16.mxu0 0
      %3099 = vmatpush1.bf16.msra.mxu0 0
      %3100 = vmatprep.subr.bf16.mxu0 0
      %3101 = vmatpush1.bf16.msra.mxu0 0
      %3102 = vmatprep.subr.bf16.mxu0 0
      %3103 = vmatpush1.bf16.msra.mxu0 0
      %3104 = vmatprep.subr.bf16.mxu0 0
      %3105 = vmatpush1.bf16.msra.mxu0 0
      %3106 = vmatprep.subr.bf16.mxu0 0
      %3107 = vmatpush1.bf16.msra.mxu0 0
      %3108 = vmatprep.subr.bf16.mxu0 0
      %3109 = vmatpush1.bf16.msra.mxu0 0
      %3110 = vmatprep.subr.bf16.mxu0 0
      %3111 = vmatpush1.bf16.msra.mxu0 0
      %3112 = vmatprep.mubr.bf16.mxu0 0
      %3113 = vmatmul.mubr.bf16.gmra.mrb[0].mxu0 %v3078
      %v3114 = vpop.f32.mrb[0].mxu0
      %v3115 = vadd.f32 %v3051, %v3114
      %v3116 = vpop.f32.mrb[0].mxu0
      %v3117 = vpop.f32.mrb[0].mxu0
      %v3118 = vpop.f32.mrb[0].mxu0
      %3119 = vdwg.mxu0
      %v3120 = vadd.f32 %v3115, %v2956
      %s3121 = scalar_lea.vmem %s14, 1
      %v3122 = vld [vmem:[%s3121] sm:$0x1]
      %s3123 = scalar_lea.vmem %s15, 1
      %v3124 = vld [vmem:[%s3123] sm:$0x1]
      %v3125 = vsel %vm643, %v3120, 0.0
      %3126 = vadd.xlane.f32.xlu0 %v3125
      %v3127 = vpop.xlane.xlu0 %3126
      %v3128 = vmul.f32 %v3127, %v647
      %v3129 = vsub.f32 %v3120, %v3128
      %v3130 = vmul.f32 %v3129, %v3129
      %v3131 = vsel %vm643, %v3130, 0.0
      %3132 = vadd.xlane.f32.xlu0 %v3131
      %v3133 = vpop.xlane.xlu0 %3132
      %v3134 = vmul.f32 %v3133, %v647
      %v3135 = vadd.f32 %v3134, 1e-12
      %v3136 = vrsqrt.pop %v3135
      %v3137 = vmul.f32 %v3129, %v3136
      %v3139 = vlaneseq
      %v3140 = vshrl.u32 %v3139, 7
      %v3141 = vsub.s32 0, %v3140
      %v3142 = vrot.slane %v3122, %v3141
      %v3144 = vmul.f32 %v3137, %v3142
      %v3146 = vlaneseq
      %v3147 = vshrl.u32 %v3146, 7
      %v3148 = vsub.s32 0, %v3147
      %v3149 = vrot.slane %v3124, %v3148
      %v3151 = vadd.f32 %v3144, %v3149
      %v3152 = vld [vmem:[%s16] sm:$0xf]
      %v3153 = vld [vmem:[%s16 + $0x4] sm:$0xf]
      %v3154 = vld [vmem:[%s16 + $0x8] sm:$0xf]
      %v3155 = vld [vmem:[%s16 + $0xc] sm:$0xf]
      %v3156 = vld [vmem:[%s17] sm:$0x1]
      %v3157 = vpack.c.bf16 %v3151, %v3151
      %v3162 = vunpack.c.l.b16 %v3152
      %v3163 = vunpack.c.l.b16 %v3153
      %v3164 = vunpack.c.l.b16 %v3154
      %v3165 = vunpack.c.l.b16 %v3155
      %v3166 = vpack.c.b16 %v3163, %v3162
      %v3167 = vpack.c.b16 %v3165, %v3164
      %v3171 = vsel %vm643, %v3157, 0
      %3173 = vmatprep.subr.bf16.mxu0 0
      %3174 = vmatpush1.bf16.msra.mxu0 %v3166
      %3175 = vmatprep.subr.bf16.mxu0 0
      %3176 = vmatpush1.bf16.msra.mxu0 %v3167
      %3177 = vmatprep.subr.bf16.mxu0 0
      %3178 = vmatpush1.bf16.msra.mxu0 0
      %3179 = vmatprep.subr.bf16.mxu0 0
      %3180 = vmatpush1.bf16.msra.mxu0 0
      %3181 = vmatprep.subr.bf16.mxu0 0
      %3182 = vmatpush1.bf16.msra.mxu0 0
      %3183 = vmatprep.subr.bf16.mxu0 0
      %3184 = vmatpush1.bf16.msra.mxu0 0
      %3185 = vmatprep.subr.bf16.mxu0 0
      %3186 = vmatpush1.bf16.msra.mxu0 0
      %3187 = vmatprep.subr.bf16.mxu0 0
      %3188 = vmatpush1.bf16.msra.mxu0 0
      %3189 = vmatprep.subr.bf16.mxu0 0
      %3190 = vmatpush1.bf16.msra.mxu0 0
      %3191 = vmatprep.subr.bf16.mxu0 0
      %3192 = vmatpush1.bf16.msra.mxu0 0
      %3193 = vmatprep.subr.bf16.mxu0 0
      %3194 = vmatpush1.bf16.msra.mxu0 0
      %3195 = vmatprep.subr.bf16.mxu0 0
      %3196 = vmatpush1.bf16.msra.mxu0 0
      %3197 = vmatprep.subr.bf16.mxu0 0
      %3198 = vmatpush1.bf16.msra.mxu0 0
      %3199 = vmatprep.subr.bf16.mxu0 0
      %3200 = vmatpush1.bf16.msra.mxu0 0
      %3201 = vmatprep.subr.bf16.mxu0 0
      %3202 = vmatpush1.bf16.msra.mxu0 0
      %3203 = vmatprep.subr.bf16.mxu0 0
      %3204 = vmatpush1.bf16.msra.mxu0 0
      %3205 = vmatprep.mubr.bf16.mxu0 0
      %3206 = vmatmul.mubr.bf16.gmra.mrb[0].mxu0 %v3171
      %v3207 = vpop.f32.mrb[0].mxu0
      %v3208 = vadd.f32 %v3156, %v3207
      %v3209 = vpop.f32.mrb[0].mxu0
      %v3210 = vpop.f32.mrb[0].mxu0
      %v3211 = vpop.f32.mrb[0].mxu0
      %3212 = vdwg.mxu0
      %v3213 = vtanh.pop %v3208
      %v3214 = vld [vmem:[%s18] sm:$0xf]
      %v3215 = vld [vmem:[%s18 + $0x4] sm:$0xf]
      %v3216 = vld [vmem:[%s18 + $0x8] sm:$0xf]
      %v3217 = vld [vmem:[%s18 + $0xc] sm:$0xf]
      %v3218 = vld [vmem:[%s19] sm:$0x1]
      %v3219 = vpack.c.bf16 %v3213, %v3213
      %v3224 = vunpack.c.l.b16 %v3214
      %v3225 = vunpack.c.l.b16 %v3215
      %v3226 = vunpack.c.l.b16 %v3216
      %v3227 = vunpack.c.l.b16 %v3217
      %v3228 = vpack.c.b16 %v3225, %v3224
      %v3229 = vpack.c.b16 %v3227, %v3226
      %v3233 = vsel %vm643, %v3219, 0
      %3235 = vmatprep.subr.bf16.mxu0 0
      %3236 = vmatpush1.bf16.msra.mxu0 %v3228
      %3237 = vmatprep.subr.bf16.mxu0 0
      %3238 = vmatpush1.bf16.msra.mxu0 %v3229
      %3239 = vmatprep.subr.bf16.mxu0 0
      %3240 = vmatpush1.bf16.msra.mxu0 0
      %3241 = vmatprep.subr.bf16.mxu0 0
      %3242 = vmatpush1.bf16.msra.mxu0 0
      %3243 = vmatprep.subr.bf16.mxu0 0
      %3244 = vmatpush1.bf16.msra.mxu0 0
      %3245 = vmatprep.subr.bf16.mxu0 0
      %3246 = vmatpush1.bf16.msra.mxu0 0
      %3247 = vmatprep.subr.bf16.mxu0 0
      %3248 = vmatpush1.bf16.msra.mxu0 0
      %3249 = vmatprep.subr.bf16.mxu0 0
      %3250 = vmatpush1.bf16.msra.mxu0 0
      %3251 = vmatprep.subr.bf16.mxu0 0
      %3252 = vmatpush1.bf16.msra.mxu0 0
      %3253 = vmatprep.subr.bf16.mxu0 0
      %3254 = vmatpush1.bf16.msra.mxu0 0
      %3255 = vmatprep.subr.bf16.mxu0 0
      %3256 = vmatpush1.bf16.msra.mxu0 0
      %3257 = vmatprep.subr.bf16.mxu0 0
      %3258 = vmatpush1.bf16.msra.mxu0 0
      %3259 = vmatprep.subr.bf16.mxu0 0
      %3260 = vmatpush1.bf16.msra.mxu0 0
      %3261 = vmatprep.subr.bf16.mxu0 0
      %3262 = vmatpush1.bf16.msra.mxu0 0
      %3263 = vmatprep.subr.bf16.mxu0 0
      %3264 = vmatpush1.bf16.msra.mxu0 0
      %3265 = vmatprep.subr.bf16.mxu0 0
      %3266 = vmatpush1.bf16.msra.mxu0 0
      %3267 = vmatprep.mubr.bf16.mxu0 0
      %3268 = vmatmul.mubr.bf16.gmra.mrb[0].mxu0 %v3233
      %v3269 = vpop.f32.mrb[0].mxu0
      %v3270 = vadd.f32 %v3218, %v3269
      %v3271 = vpop.f32.mrb[0].mxu0
      %v3272 = vpop.f32.mrb[0].mxu0
      %v3273 = vpop.f32.mrb[0].mxu0
      %3274 = vdwg.mxu0
      %v3275 = vlaneseq
      %v3276 = vshrl.u32 %v3275, 7
      %v3277 = vsub.s32 0, %v3276
      %v3278 = vrot.slane %v3270, %v3277
      %3279 = vst [vmem:[%s638] sm:$0xff] %v3278
      %p3280 = scmp.lt.s32.totalorder %s31, 1
      %s3281 = scalar_select %p3280, %s31, 1
      %s3282 = smul.addr %s3281, 8
      %s3283 = scalar_lea.vmem %s20, %s3282
      // Predicated region
      $region101: #{custom_bert_forward.1} parent=99 // pred_check
        %p3284 = pneg %p479
      $region102: #{custom_bert_forward.1} parent=99 // pred_check_branch
        %3286 = sbr.rel (%p3284) target = $region104
      $region103: #{custom_bert_forward.1} parent=99 // pred_region
        _
      $region104: #{custom_bert_forward.1} parent=99 // pred_fallthru
        _
    $region100: #{custom_bert_forward.1} parent=5 // pred_fallthru
      _
    %p3287 = scmp.le.s32.totalorder 2, %s26
    // Predicated region
    $region105: #{custom_bert_forward.1} parent=5 // pred_check
      %p3288 = pneg %p3287
    $region106: #{custom_bert_forward.1} parent=5 // pred_check_branch
      %3290 = sbr.rel (%p3288) target = $region108
    $region107: #{custom_bert_forward.1} parent=5 // pred_region
      %s3291 = ssub.s32 %s26, 2
      // Predicated region
      $region109: #{custom_bert_forward.1} parent=107 // pred_check
        %p3292 = pneg %p485
      $region110: #{custom_bert_forward.1} parent=107 // pred_check_branch
        %3294 = sbr.rel (%p3292) target = $region112
      $region111: #{custom_bert_forward.1} parent=107 // pred_region
        %p3295 = scmp.lt.s32.totalorder %s32, 1
        %s3296 = scalar_select %p3295, %s32, 1
        %s3297 = smul.addr %s3296, 8
        %s3298 = scalar_lea.vmem %s20, %s3297
      $region112: #{custom_bert_forward.1} parent=107 // pred_fallthru
        _
    $region108: #{custom_bert_forward.1} parent=5 // pred_fallthru
      _
  $region6: #{custom_bert_forward.1} parent=0 // loop_footer
    %s30 = sadd.s32 1, %s26
  $region7: #{custom_bert_forward.1} parent=0 // loop_footer_branch
    %25 = sbr.rel target = $region3
  $region8: #{custom_bert_forward.1} parent=0 // loop_exit
    _

</llo_original>
